<compile_context>
chip_gen: v7x
topology: tpu7x:2x2x1
jax: 0.10.0
libtpu: 0.0.40
codegen_flags: <defaults>
</compile_context>

<pallas_src>
import jax
import jax.numpy as jnp
from jax.experimental import pallas as pl
from jax.experimental.pallas import tpu as pltpu

# -------------------------------- sizes --------------------------------------
NS = 4                         # grid steps (mini-batches per pallas_call)
B = 8                          # news items per step
FEAT = 768                     # raw text/image/video feature dim
H = 256                        # hidden_dim (matches the module default)
R_NODES = 4                    # repost nodes per news item
C_GRAPHS = 2                   # comment graphs per news item
C_NODES = 2                    # nodes per comment graph
N_R = B * R_NODES              # 32 repost nodes per step
N_C = B * C_GRAPHS * C_NODES   # 32 comment nodes per step
G_C = B * C_GRAPHS             # 16 comment graphs per step
NG = N_R + N_C                 # 64 graph nodes per step (block-diag size)
OFF_CONTENT = NG               # row offsets inside the stacked x_all slab
OFF_VIDEO = NG + B
OFF_IMAGE = NG + 2 * B
ROWS = 96                      # x_all rows per step (88 real, padded to 96)
GROWS = 96                     # graph-slab rows per step (88 real, padded)
WBIG_ROWS = 10 * H             # packed weight slab rows (4 GCN + cls1 + cls2)


# ------------------------------ fused kernel ----------------------------------
def fused_forward_kernel(x_ref, g_ref, wproj_ref, wbig_ref, bias_ref,
                         preds_ref, nll_ref):
    f32 = jnp.float32
    bf16 = jnp.bfloat16

    def mm(a, w):
        # bf16 MXU matmul with f32 accumulation.
        return jnp.dot(a.astype(bf16), w, preferred_element_type=f32)

    # ---- merged 768 -> 3H projection: [W_text | W_video | W_image] ----------
    # x_ref is already bf16; one weight stream, N=3H fills the 256-wide MXU.
    all_h = jnp.dot(x_ref[...], wproj_ref[...], preferred_element_type=f32)

    repost_h = all_h[0:N_R, 0:H]                       # text proj of repost x
    comment_h = all_h[N_R:NG, 0:H]                     # text proj of comment x
    content_reps = all_h[OFF_CONTENT:OFF_CONTENT + B, 0:H]
    video_reps = all_h[OFF_VIDEO:OFF_VIDEO + B, H:2 * H]
    image_reps = all_h[OFF_IMAGE:OFF_IMAGE + B, 2 * H:3 * H]

    # ---- packed weight slab slices (static, zero-cost) ----------------------
    w_rg1 = wbig_ref[0:H, :]
    w_rg2 = wbig_ref[H:2 * H, :]
    w_cg1 = wbig_ref[2 * H:3 * H, :]
    w_cg2 = wbig_ref[3 * H:4 * H, :]
    w_cls1 = wbig_ref[4 * H:9 * H, :]
    w_cls2 = wbig_ref[9 * H:10 * H, 0:128]             # zero-padded [H,128]

    # ---- packed per-step graph slab ------------------------------------------
    a_blk = g_ref[0:NG, 0:NG]                          # block-diag norm adj
    pool_blk = g_ref[NG:NG + 2 * B, 0:NG]              # block-diag (pool @ A)
    onehot = g_ref[NG + 2 * B:NG + 3 * B, :].astype(f32)   # [B,128] one-hot

    # ---- both GCN encoders, run on the block-diagonal graph ------------------
    # layer 1: A @ (X W1), ReLU (dropout = identity)
    h1 = jnp.concatenate([mm(repost_h, w_rg1), mm(comment_h, w_cg1)], axis=0)
    h1 = jnp.dot(a_blk, h1.astype(bf16), preferred_element_type=f32)
    h1 = jnp.maximum(h1, 0.0)
    # layer 2: X W2 ; the trailing A-aggregate is folded into pool_blk (exact)
    h2 = jnp.concatenate([mm(h1[0:N_R], w_rg2), mm(h1[N_R:NG], w_cg2)], axis=0)
    reps_rc = jnp.dot(pool_blk, h2.astype(bf16), preferred_element_type=f32)
    repost_reps = reps_rc[0:B]                         # global mean pool
    comment_reps = reps_rc[B:2 * B]                    # mean-pool + scatter-mean

    # ---- concat + classifier --------------------------------------------------
    reps = jnp.concatenate([content_reps, repost_reps, comment_reps,
                            video_reps, image_reps], axis=-1)   # [B, 5H]
    h = mm(reps, w_cls1) + bias_ref[0:1, :]
    h = jnp.maximum(h, 0.0)
    logits = mm(h, w_cls2) + bias_ref[1:2, 0:128]      # [B,128]; cols >= 2 are 0
    preds_ref[...] = logits                            # lane-dense store

    # ---- fused cross-entropy (per-item NLL; mean taken in the wrapper) -------
    col = jax.lax.broadcasted_iota(jnp.int32, logits.shape, 1)
    masked = jnp.where(col < 2, logits, -1e30)         # keep LSE lane-dense
    m = jnp.max(masked, axis=-1, keepdims=True)
    lse = m + jnp.log(jnp.sum(jnp.exp(masked - m), axis=-1, keepdims=True))
    nll_ref[...] = lse - jnp.sum(logits * onehot, axis=-1, keepdims=True)


def news_classifier_forward(params, data):
    preds_pad, nll = pl.pallas_call(
        fused_forward_kernel,
        out_shape=(jax.ShapeDtypeStruct((NS * B, 128), jnp.float32),
                   jax.ShapeDtypeStruct((NS * B, 1), jnp.float32)),
        grid=(NS,),
        in_specs=[
            # per-step activations: pipelined DMA, batch-indexed blocks
            pl.BlockSpec((ROWS, FEAT), lambda i: (i, 0)),
            pl.BlockSpec((GROWS, 128), lambda i: (i, 0)),
            # weights: constant block index -> fetched once, VMEM-resident
            pl.BlockSpec((FEAT, 3 * H), lambda i: (0, 0)),
            pl.BlockSpec((WBIG_ROWS, H), lambda i: (0, 0)),
            pl.BlockSpec((8, H), lambda i: (0, 0)),
        ],
        out_specs=(pl.BlockSpec((B, 128), lambda i: (i, 0)),
                   pl.BlockSpec((B, 1), lambda i: (i, 0))),
        compiler_params=pltpu.CompilerParams(
            dimension_semantics=("parallel",)),   # shards steps on v7x's 2 TCs
    )(data["x_all"], data["g_slab"],
      params["w_proj"], params["w_big"], params["bias"])
    preds = preds_pad[:, :2]                      # true logits
    loss = jnp.mean(nll)                          # CrossEntropyLoss(mean)
    return preds, loss


# ------------------------------ graph glue ------------------------------------
def build_norm_adj(num_nodes, edge_index):
    """Dense D^-1/2 (A + I) D^-1/2, undirected edges, as in PyG GCNConv."""
    src, dst = edge_index
    a = jnp.zeros((num_nodes, num_nodes), jnp.float32)
    a = a.at[src, dst].set(1.0)
    a = a.at[dst, src].set(1.0)
    a = a + jnp.eye(num_nodes, dtype=jnp.float32)
    deg = jnp.sum(a, axis=1)
    dinv = 1.0 / jnp.sqrt(deg)
    return a * dinv[:, None] * dinv[None, :]


def mean_pool_matrix(assign, num_groups):
    """[num_groups, num_items] matrix M so that M @ X = segment mean of X."""
    onehot = (assign[None, :] == jnp.arange(num_groups)[:, None]).astype(jnp.float32)
    counts = jnp.maximum(jnp.sum(onehot, axis=1, keepdims=True), 1.0)
    return onehot / counts


# ------------------------------ parameters ------------------------------------
def init_params(key):
    ks = jax.random.split(key, 11)
    scale = 0.02

    def w(k, shape):
        return scale * jax.random.normal(k, shape, jnp.float32)

    # merged text/video/image projection, stored pre-transposed [in, out], bf16
    w_proj = jnp.concatenate(
        [w(ks[0], (FEAT, H)), w(ks[1], (FEAT, H)), w(ks[2], (FEAT, H))], axis=1)

    # packed weight slab: 4 GCN weights + cls1 + (zero-padded) cls2
    w_big = jnp.zeros((WBIG_ROWS, H), jnp.float32)
    w_big = w_big.at[0:H].set(w(ks[3], (H, H)))              # repost gnn1
    w_big = w_big.at[H:2 * H].set(w(ks[4], (H, H)))          # repost gnn2
    w_big = w_big.at[2 * H:3 * H].set(w(ks[5], (H, H)))      # comment gnn1
    w_big = w_big.at[3 * H:4 * H].set(w(ks[6], (H, H)))      # comment gnn2
    w_big = w_big.at[4 * H:9 * H].set(w(ks[7], (5 * H, H)))  # cls linear 1
    w_big = w_big.at[9 * H:10 * H, 0:2].set(w(ks[8], (H, 2)))  # cls linear 2

    bias = jnp.zeros((8, H), jnp.float32)
    bias = bias.at[0, :].set(w(ks[9], (H,)))                 # b_cls1
    bias = bias.at[1, 0:2].set(w(ks[10], (2,)))              # b_cls2 (padded)

    return {"w_proj": w_proj.astype(jnp.bfloat16),
            "w_big": w_big.astype(jnp.bfloat16),
            "bias": bias}


# ------------------------------ main ------------------------------------------
if __name__ == "__main__":
    key = jax.random.PRNGKey(0)
    k_param, k_c, k_r, k_cm, k_v, k_i, k_l = jax.random.split(key, 7)

    params = init_params(k_param)

    # raw features for NS mini-batches of B news items each
    content = jax.random.normal(k_c, (NS, B, FEAT), jnp.float32)
    repost_x = jax.random.normal(k_r, (NS, N_R, FEAT), jnp.float32)
    comment_x = jax.random.normal(k_cm, (NS, N_C, FEAT), jnp.float32)
    video = jax.random.normal(k_v, (NS, B, FEAT), jnp.float32)
    image = jax.random.normal(k_i, (NS, B, FEAT), jnp.float32)
    labels = jax.random.randint(k_l, (NS, B), 0, 2)

    # repost graphs: B graphs x 4 nodes, chain edges inside each graph
    repost_batch = jnp.repeat(jnp.arange(B), R_NODES)
    r_src = jnp.concatenate(
        [jnp.arange(R_NODES - 1) + R_NODES * g for g in range(B)])
    r_dst = r_src + 1
    rep_adj = build_norm_adj(N_R, (r_src, r_dst))
    rep_pool = mean_pool_matrix(repost_batch, B)                 # [B, N_R]

    # comment graphs: 2 graphs per item x 2 nodes, one edge each
    comment_batch = jnp.repeat(jnp.arange(G_C), C_NODES)         # node -> graph
    comment_graph_batch = jnp.repeat(jnp.arange(B), C_GRAPHS)    # graph -> item
    c_src = jnp.arange(0, N_C, 2)
    c_dst = c_src + 1
    com_adj = build_norm_adj(N_C, (c_src, c_dst))
    # folded mean-of-means: scatter(mean) @ global_mean_pool
    com_pool = (mean_pool_matrix(comment_graph_batch, B)
                @ mean_pool_matrix(comment_batch, G_C))          # [B, N_C]

    # fold the trailing GCN adjacency aggregate into the pooling matrices
    pool_adj_r = rep_pool @ rep_adj                              # [B, N_R]
    pool_adj_c = com_pool @ com_adj                              # [B, N_C]

    # block-diagonal adjacency / pooling covering both branches at once
    a_blk = jnp.zeros((NG, NG), jnp.float32)
    a_blk = a_blk.at[0:N_R, 0:N_R].set(rep_adj)
    a_blk = a_blk.at[N_R:NG, N_R:NG].set(com_adj)
    pool_blk = jnp.zeros((2 * B, NG), jnp.float32)
    pool_blk = pool_blk.at[0:B, 0:N_R].set(pool_adj_r)
    pool_blk = pool_blk.at[B:2 * B, N_R:NG].set(pool_adj_c)

    onehot = jax.nn.one_hot(labels, 2, dtype=jnp.float32)        # [NS, B, 2]

    # stacked bf16 activation slab: [repost; comment; content; video; image]
    x_all = jnp.zeros((NS, ROWS, FEAT), jnp.float32)
    x_all = x_all.at[:, 0:N_R].set(repost_x)
    x_all = x_all.at[:, N_R:NG].set(comment_x)
    x_all = x_all.at[:, OFF_CONTENT:OFF_CONTENT + B].set(content)
    x_all = x_all.at[:, OFF_VIDEO:OFF_VIDEO + B].set(video)
    x_all = x_all.at[:, OFF_IMAGE:OFF_IMAGE + B].set(image)

    # packed bf16 graph slab: adjacency + folded pooling + one-hot labels
    g_slab = jnp.zeros((NS, GROWS, 128), jnp.float32)
    g_slab = g_slab.at[:, 0:NG, 0:NG].set(a_blk)
    g_slab = g_slab.at[:, NG:NG + 2 * B, 0:NG].set(pool_blk)
    g_slab = g_slab.at[:, NG + 2 * B:NG + 3 * B, 0:2].set(onehot)

    data = {
        "x_all": x_all.reshape(NS * ROWS, FEAT).astype(jnp.bfloat16),
        "g_slab": g_slab.reshape(NS * GROWS, 128).astype(jnp.bfloat16),
    }

    preds, loss = news_classifier_forward(params, data)
    jax.block_until_ready((preds, loss))
    assert preds.shape == (NS * B, 2) and preds.dtype == jnp.float32
    assert loss.shape == () and bool(jnp.isfinite(loss))
    print("KERNEL_OK")
</pallas_src>

<mosaic_0001>
module attributes {stable_mosaic.version = 11 : i64} {
  func.func @fused_forward_kernel(%arg0: i32, %arg1: memref<96x768xbf16, #tpu.memory_space<vmem>>, %arg2: memref<96x128xbf16, #tpu.memory_space<vmem>>, %arg3: memref<768x768xbf16, #tpu.memory_space<vmem>>, %arg4: memref<2560x256xbf16, #tpu.memory_space<vmem>>, %arg5: memref<8x256xf32, #tpu.memory_space<vmem>>, %arg6: memref<8x128xf32, #tpu.memory_space<vmem>>, %arg7: memref<8x1xf32, #tpu.memory_space<vmem>>) attributes {dimension_semantics = [#tpu.dimension_semantics<parallel>], iteration_bounds = array<i64: 4>, scalar_prefetch = 0 : i64, scratch_operands = 0 : i64, tpu.core_type = #tpu.core_type<tc>, window_params = [{transform_indices = @transform_0, window_bounds = array<i64: 96, 768>}, {transform_indices = @transform_1, window_bounds = array<i64: 96, 128>}, {pipeline_mode = #tpu.pipeline_mode<synchronous>, transform_indices = @transform_2, window_bounds = array<i64: 768, 768>}, {pipeline_mode = #tpu.pipeline_mode<synchronous>, transform_indices = @transform_3, window_bounds = array<i64: 2560, 256>}, {pipeline_mode = #tpu.pipeline_mode<synchronous>, transform_indices = @transform_4, window_bounds = array<i64: 8, 256>}, {transform_indices = @transform_5, window_bounds = array<i64: 8, 128>}, {transform_indices = @transform_6, window_bounds = array<i64: 8, 1>}]} {
    %c0 = arith.constant 0 : index
    %c0_0 = arith.constant 0 : index
    %0 = vector.load %arg1[%c0, %c0_0] : memref<96x768xbf16, #tpu.memory_space<vmem>>, vector<96x768xbf16>
    %c0_1 = arith.constant 0 : index
    %c0_2 = arith.constant 0 : index
    %1 = vector.load %arg3[%c0_1, %c0_2] : memref<768x768xbf16, #tpu.memory_space<vmem>>, vector<768x768xbf16>
    %cst = arith.constant dense<0.000000e+00> : vector<96x768xf32>
    %2 = tpu.matmul %0, %1, %cst {dimension_numbers = #tpu.dot_dimension_numbers<[1], [0], [0], [1], [0, 0, 1, 1], [], []>} : vector<96x768xbf16>, vector<768x768xbf16>, vector<96x768xf32> -> vector<96x768xf32>
    %3 = vector.extract_strided_slice %2 {offsets = [0, 0], sizes = [32, 256], strides = [1, 1]} : vector<96x768xf32> to vector<32x256xf32>
    %4 = vector.extract_strided_slice %2 {offsets = [32, 0], sizes = [32, 256], strides = [1, 1]} : vector<96x768xf32> to vector<32x256xf32>
    %5 = vector.extract_strided_slice %2 {offsets = [64, 0], sizes = [8, 256], strides = [1, 1]} : vector<96x768xf32> to vector<8x256xf32>
    %6 = vector.extract_strided_slice %2 {offsets = [72, 256], sizes = [8, 256], strides = [1, 1]} : vector<96x768xf32> to vector<8x256xf32>
    %7 = vector.extract_strided_slice %2 {offsets = [80, 512], sizes = [8, 256], strides = [1, 1]} : vector<96x768xf32> to vector<8x256xf32>
    %c0_3 = arith.constant 0 : index
    %c0_4 = arith.constant 0 : index
    %8 = vector.load %arg4[%c0_3, %c0_4] : memref<2560x256xbf16, #tpu.memory_space<vmem>>, vector<256x256xbf16>
    %c256 = arith.constant 256 : index
    %c0_5 = arith.constant 0 : index
    %9 = vector.load %arg4[%c256, %c0_5] : memref<2560x256xbf16, #tpu.memory_space<vmem>>, vector<256x256xbf16>
    %c512 = arith.constant 512 : index
    %c0_6 = arith.constant 0 : index
    %10 = vector.load %arg4[%c512, %c0_6] : memref<2560x256xbf16, #tpu.memory_space<vmem>>, vector<256x256xbf16>
    %c768 = arith.constant 768 : index
    %c0_7 = arith.constant 0 : index
    %11 = vector.load %arg4[%c768, %c0_7] : memref<2560x256xbf16, #tpu.memory_space<vmem>>, vector<256x256xbf16>
    %c1024 = arith.constant 1024 : index
    %c0_8 = arith.constant 0 : index
    %12 = vector.load %arg4[%c1024, %c0_8] : memref<2560x256xbf16, #tpu.memory_space<vmem>>, vector<1280x256xbf16>
    %c2304 = arith.constant 2304 : index
    %c0_9 = arith.constant 0 : index
    %13 = vector.load %arg4[%c2304, %c0_9] : memref<2560x256xbf16, #tpu.memory_space<vmem>>, vector<256x128xbf16>
    %c0_10 = arith.constant 0 : index
    %c0_11 = arith.constant 0 : index
    %14 = vector.load %arg2[%c0_10, %c0_11] : memref<96x128xbf16, #tpu.memory_space<vmem>>, vector<64x64xbf16>
    %c64 = arith.constant 64 : index
    %c0_12 = arith.constant 0 : index
    %15 = vector.load %arg2[%c64, %c0_12] : memref<96x128xbf16, #tpu.memory_space<vmem>>, vector<16x64xbf16>
    %c80 = arith.constant 80 : index
    %c0_13 = arith.constant 0 : index
    %16 = vector.load %arg2[%c80, %c0_13] : memref<96x128xbf16, #tpu.memory_space<vmem>>, vector<8x128xbf16>
    %17 = arith.extf %16 : vector<8x128xbf16> to vector<8x128xf32>
    %18 = arith.truncf %3 : vector<32x256xf32> to vector<32x256xbf16>
    %cst_14 = arith.constant dense<0.000000e+00> : vector<32x256xf32>
    %19 = tpu.matmul %18, %8, %cst_14 {dimension_numbers = #tpu.dot_dimension_numbers<[1], [0], [0], [1], [0, 0, 1, 1], [], []>} : vector<32x256xbf16>, vector<256x256xbf16>, vector<32x256xf32> -> vector<32x256xf32>
    %20 = arith.truncf %4 : vector<32x256xf32> to vector<32x256xbf16>
    %cst_15 = arith.constant dense<0.000000e+00> : vector<32x256xf32>
    %21 = tpu.matmul %20, %10, %cst_15 {dimension_numbers = #tpu.dot_dimension_numbers<[1], [0], [0], [1], [0, 0, 1, 1], [], []>} : vector<32x256xbf16>, vector<256x256xbf16>, vector<32x256xf32> -> vector<32x256xf32>
    %22 = tpu.concatenate %19, %21 in 0 : vector<32x256xf32>, vector<32x256xf32> -> vector<64x256xf32>
    %23 = arith.truncf %22 : vector<64x256xf32> to vector<64x256xbf16>
    %cst_16 = arith.constant dense<0.000000e+00> : vector<64x256xf32>
    %24 = tpu.matmul %14, %23, %cst_16 {dimension_numbers = #tpu.dot_dimension_numbers<[1], [0], [0], [1], [0, 0, 1, 1], [], []>} : vector<64x64xbf16>, vector<64x256xbf16>, vector<64x256xf32> -> vector<64x256xf32>
    %cst_17 = arith.constant 0.000000e+00 : f32
    %25 = vector.broadcast %cst_17 : f32 to vector<64x256xf32>
    %26 = arith.maximumf %24, %25 : vector<64x256xf32>
    %27 = vector.extract_strided_slice %26 {offsets = [0, 0], sizes = [32, 256], strides = [1, 1]} : vector<64x256xf32> to vector<32x256xf32>
    %28 = arith.truncf %27 : vector<32x256xf32> to vector<32x256xbf16>
    %cst_18 = arith.constant dense<0.000000e+00> : vector<32x256xf32>
    %29 = tpu.matmul %28, %9, %cst_18 {dimension_numbers = #tpu.dot_dimension_numbers<[1], [0], [0], [1], [0, 0, 1, 1], [], []>} : vector<32x256xbf16>, vector<256x256xbf16>, vector<32x256xf32> -> vector<32x256xf32>
    %30 = vector.extract_strided_slice %26 {offsets = [32, 0], sizes = [32, 256], strides = [1, 1]} : vector<64x256xf32> to vector<32x256xf32>
    %31 = arith.truncf %30 : vector<32x256xf32> to vector<32x256xbf16>
    %cst_19 = arith.constant dense<0.000000e+00> : vector<32x256xf32>
    %32 = tpu.matmul %31, %11, %cst_19 {dimension_numbers = #tpu.dot_dimension_numbers<[1], [0], [0], [1], [0, 0, 1, 1], [], []>} : vector<32x256xbf16>, vector<256x256xbf16>, vector<32x256xf32> -> vector<32x256xf32>
    %33 = tpu.concatenate %29, %32 in 0 : vector<32x256xf32>, vector<32x256xf32> -> vector<64x256xf32>
    %34 = arith.truncf %33 : vector<64x256xf32> to vector<64x256xbf16>
    %cst_20 = arith.constant dense<0.000000e+00> : vector<16x256xf32>
    %35 = tpu.matmul %15, %34, %cst_20 {dimension_numbers = #tpu.dot_dimension_numbers<[1], [0], [0], [1], [0, 0, 1, 1], [], []>} : vector<16x64xbf16>, vector<64x256xbf16>, vector<16x256xf32> -> vector<16x256xf32>
    %36 = vector.extract_strided_slice %35 {offsets = [0, 0], sizes = [8, 256], strides = [1, 1]} : vector<16x256xf32> to vector<8x256xf32>
    %37 = vector.extract_strided_slice %35 {offsets = [8, 0], sizes = [8, 256], strides = [1, 1]} : vector<16x256xf32> to vector<8x256xf32>
    %38 = tpu.concatenate %5, %36, %37, %6, %7 in 1 : vector<8x256xf32>, vector<8x256xf32>, vector<8x256xf32>, vector<8x256xf32>, vector<8x256xf32> -> vector<8x1280xf32>
    %39 = arith.truncf %38 : vector<8x1280xf32> to vector<8x1280xbf16>
    %cst_21 = arith.constant dense<0.000000e+00> : vector<8x256xf32>
    %40 = tpu.matmul %39, %12, %cst_21 {dimension_numbers = #tpu.dot_dimension_numbers<[1], [0], [0], [1], [0, 0, 1, 1], [], []>} : vector<8x1280xbf16>, vector<1280x256xbf16>, vector<8x256xf32> -> vector<8x256xf32>
    %c0_22 = arith.constant 0 : index
    %c0_23 = arith.constant 0 : index
    %41 = vector.load %arg5[%c0_22, %c0_23] : memref<8x256xf32, #tpu.memory_space<vmem>>, vector<1x256xf32>
    %42 = vector.broadcast %41 : vector<1x256xf32> to vector<8x256xf32>
    %43 = arith.addf %40, %42 : vector<8x256xf32>
    %cst_24 = arith.constant 0.000000e+00 : f32
    %44 = vector.broadcast %cst_24 : f32 to vector<8x256xf32>
    %45 = arith.maximumf %43, %44 : vector<8x256xf32>
    %46 = arith.truncf %45 : vector<8x256xf32> to vector<8x256xbf16>
    %cst_25 = arith.constant dense<0.000000e+00> : vector<8x128xf32>
    %47 = tpu.matmul %46, %13, %cst_25 {dimension_numbers = #tpu.dot_dimension_numbers<[1], [0], [0], [1], [0, 0, 1, 1], [], []>} : vector<8x256xbf16>, vector<256x128xbf16>, vector<8x128xf32> -> vector<8x128xf32>
    %c1 = arith.constant 1 : index
    %c0_26 = arith.constant 0 : index
    %48 = vector.load %arg5[%c1, %c0_26] : memref<8x256xf32, #tpu.memory_space<vmem>>, vector<1x128xf32>
    %49 = vector.broadcast %48 : vector<1x128xf32> to vector<8x128xf32>
    %50 = arith.addf %47, %49 : vector<8x128xf32>
    %c0_27 = arith.constant 0 : index
    %c0_28 = arith.constant 0 : index
    %51 = vector.load %arg6[%c0_27, %c0_28] : memref<8x128xf32, #tpu.memory_space<vmem>>, vector<8x128xf32>
    tpu.vector_store %arg6[%c0_27, %c0_28], %50 {strides = array<i32>} : memref<8x128xf32, #tpu.memory_space<vmem>>, vector<8x128xf32>,
    %52 = tpu.iota {dimensions = array<i32: 1>} : vector<8x128xi32>
    %c2_i32 = arith.constant 2 : i32
    %53 = vector.broadcast %c2_i32 : i32 to vector<8x128xi32>
    %54 = arith.cmpi slt, %52, %53 : vector<8x128xi32>
    %cst_29 = arith.constant -1.000000e+30 : f32
    %55 = vector.broadcast %cst_29 : f32 to vector<8x128xf32>
    %56 = arith.select %54, %50, %55 : vector<8x128xi1>, vector<8x128xf32>
    %cst_30 = arith.constant dense<0xFF800000> : vector<8xf32>
    %57 = vector.multi_reduction <maximumf>, %56, %cst_30 [1] : vector<8x128xf32> to vector<8xf32>
    %58 = vector.shape_cast %57 : vector<8xf32> to vector<8x1xf32>
    %59 = vector.broadcast %58 : vector<8x1xf32> to vector<8x128xf32>
    %60 = arith.subf %56, %59 : vector<8x128xf32>
    %61 = math.exp %60 : vector<8x128xf32>
    %cst_31 = arith.constant dense<0.000000e+00> : vector<8xf32>
    %62 = vector.multi_reduction <add>, %61, %cst_31 [1] : vector<8x128xf32> to vector<8xf32>
    %63 = vector.shape_cast %62 : vector<8xf32> to vector<8x1xf32>
    %64 = math.log %63 : vector<8x1xf32>
    %65 = arith.addf %58, %64 : vector<8x1xf32>
    %66 = arith.mulf %50, %17 : vector<8x128xf32>
    %cst_32 = arith.constant dense<0.000000e+00> : vector<8xf32>
    %67 = vector.multi_reduction <add>, %66, %cst_32 [1] : vector<8x128xf32> to vector<8xf32>
    %68 = vector.shape_cast %67 : vector<8xf32> to vector<8x1xf32>
    %69 = arith.subf %65, %68 : vector<8x1xf32>
    %c0_33 = arith.constant 0 : index
    %c0_34 = arith.constant 0 : index
    %70 = vector.load %arg7[%c0_33, %c0_34] : memref<8x1xf32, #tpu.memory_space<vmem>>, vector<8x1xf32>
    tpu.vector_store %arg7[%c0_33, %c0_34], %69 {strides = array<i32>} : memref<8x1xf32, #tpu.memory_space<vmem>>, vector<8x1xf32>,
    return
  }
  func.func @transform_0(%arg0: i32) -> (i32, i32) {
    %c0_i32 = arith.constant 0 : i32
    %c0_i32_0 = arith.constant 0 : i32
    return %arg0, %c0_i32 : i32, i32
  }
  func.func @transform_1(%arg0: i32) -> (i32, i32) {
    %c0_i32 = arith.constant 0 : i32
    %c0_i32_0 = arith.constant 0 : i32
    return %arg0, %c0_i32 : i32, i32
  }
  func.func @transform_2(%arg0: i32) -> (i32, i32) {
    %c0_i32 = arith.constant 0 : i32
    %c0_i32_0 = arith.constant 0 : i32
    %c0_i32_1 = arith.constant 0 : i32
    return %c0_i32, %c0_i32_0 : i32, i32
  }
  func.func @transform_3(%arg0: i32) -> (i32, i32) {
    %c0_i32 = arith.constant 0 : i32
    %c0_i32_0 = arith.constant 0 : i32
    %c0_i32_1 = arith.constant 0 : i32
    return %c0_i32, %c0_i32_0 : i32, i32
  }
  func.func @transform_4(%arg0: i32) -> (i32, i32) {
    %c0_i32 = arith.constant 0 : i32
    %c0_i32_0 = arith.constant 0 : i32
    %c0_i32_1 = arith.constant 0 : i32
    return %c0_i32, %c0_i32_0 : i32, i32
  }
  func.func @transform_5(%arg0: i32) -> (i32, i32) {
    %c0_i32 = arith.constant 0 : i32
    %c0_i32_0 = arith.constant 0 : i32
    return %arg0, %c0_i32 : i32, i32
  }
  func.func @transform_6(%arg0: i32) -> (i32, i32) {
    %c0_i32 = arith.constant 0 : i32
    %c0_i32_0 = arith.constant 0 : i32
    return %arg0, %c0_i32 : i32, i32
  }
}

</mosaic_0001>

<llo_original>
// kernel: tpu_custom_call.1
$region0: #{tpu_custom_call.1}
  #allocation0 [shape = 'u32[]', space=smem, size = 0x4, offset = 0x4, fixed_abs, tag = 'smem constant byte address 0x4 - core index']
  #allocation1 [shape = 'u32[144,128]{1,0:T(1,128)}', space=vmem, size = 0x12000, scoped, tag = 'internal scratch']
  %s0 = inlined_call_operand.hbm [shape: bf16[384,768], index: 0, kind: input, shape index: {}]
  %s1 = inlined_call_operand.hbm [shape: bf16[384,128], index: 1, kind: input, shape index: {}]
  %s2 = inlined_call_operand.hbm [shape: bf16[768,768], index: 2, kind: input, shape index: {}]
  %s3 = inlined_call_operand.hbm [shape: bf16[2560,256], index: 3, kind: input, shape index: {}]
  %s4 = inlined_call_operand.hbm [shape: f32[8,256], index: 4, kind: input, shape index: {}]
  %s5 = inlined_call_operand.hbm [shape: f32[32,128], index: 5, kind: output, shape index: {0}]
  %s6 = inlined_call_operand.vmem [shape: f32[32,1], index: 6, kind: output, shape index: {1}]
  %7 = xla_tuple %s5, %s6
  %s8 = sld [smem:[#allocation0]]
  $region81: #{tpu_custom_call.1} parent=0
    _
  %s10 = ssub.s32 1, %s8
  %s11 = scalar_select 0, %s10, %s8
  $region1: #{tpu_custom_call.1} parent=0
    #allocation2 [shape = 'u8[294912]{0}', space=vmem, size = 0x48000, scoped, tag = 'input window, operand 0']
    #allocation3 [shape = 's32[2]{0}', space=sflag, size = 0x8, scoped, tag = 'scoped memory for tpu_custom_call.1']
    #allocation4 [shape = 's32[2]{0}', space=sflag, size = 0x8, scoped, tag = 'scoped memory for tpu_custom_call.1']
    #allocation5 [shape = 'u8[49152]{0}', space=vmem, size = 0xc000, scoped, tag = 'input window, operand 1']
    #allocation6 [shape = 's32[2]{0}', space=sflag, size = 0x8, scoped, tag = 'scoped memory for tpu_custom_call.1']
    #allocation7 [shape = 'u8[1179648]{0}', space=vmem, size = 0x120000, scoped, tag = 'input window, operand 2, single buffered']
    #allocation8 [shape = 'u8[1310720]{0}', space=vmem, size = 0x140000, scoped, tag = 'input window, operand 3, single buffered']
    #allocation9 [shape = 's32[1]{0}', space=sflag, size = 0x4, scoped, tag = 'scoped memory for tpu_custom_call.1']
    #allocation10 [shape = 'u8[8192]{0}', space=vmem, size = 0x2000, scoped, tag = 'input window, operand 4, single buffered']
    #allocation11 [shape = 'u8[8192]{0}', space=vmem, size = 0x2000, scoped, tag = 'output window, operand 0']
    %12 = vsyncpa [#allocation3], 0
    %s13 = scalar_lea.sflag [#allocation3], 1
    %14 = vsyncpa %s13, 0
    %15 = vsyncpa [#allocation6], 0
    %s16 = scalar_lea.sflag [#allocation6], 1
    %17 = vsyncpa %s16, 0
    %18 = vsyncpa [#allocation9], 0
    %19 = vsyncpa [#allocation4], 0
    %s20 = scalar_lea.sflag [#allocation4], 1
    %21 = vsyncpa %s20, 0
    loop: start=0, step=1, limit=6
    $region2: #{tpu_custom_call.1} parent=1 // loop_pre_header
      _
    $region3: #{tpu_custom_call.1} parent=1 // loop_header
      %s23 = sphi 0, %s27
      %p24 = scmp.ge.s32.totalorder %s23, 6
      %s33 = sphi 0, %s35
      %s36 = sphi 0, %s33
      %s37 = sphi 0, %s36
      %s53 = sphi 0, %s37
      %s59 = sphi 0, %s61
      %s62 = sphi 0, %s59
      %s63 = sphi 0, %s62
      %s79 = sphi 0, %s63
      %s83 = sphi 0, %s83
      %s85 = sphi 0, %s83
      %s86 = sphi 0, %s85
      %s100 = sphi 0, %s86
      %s104 = sphi 0, %s104
      %s106 = sphi 0, %s104
      %s107 = sphi 0, %s106
      %s121 = sphi 0, %s107
      %s125 = sphi 0, %s125
      %s127 = sphi 0, %s125
      %s128 = sphi 0, %s127
      %s142 = sphi 0, %s128
      %s148 = sphi 0, %s150
      %s151 = sphi 0, %s148
      %s152 = sphi 0, %s151
      %s168 = sphi 0, %s152
      %s174 = sphi 0, %s176
      %s177 = sphi 0, %s174
      %s178 = sphi 0, %s177
      %s194 = sphi 0, %s178
    $region4: #{tpu_custom_call.1} parent=1 // loop_header_branch
      %26 = sbr.rel (%p24) target = $region8
    $region5: #{tpu_custom_call.1} parent=1 // loop_body
      %s28 = ssub.s32 %s23, 1
      %s29 = ssub.s32 %s23, 2
      %s30 = sadd.s32 %s23, 1
      %s31 = ssub.s32 %s23, %s30
      %p32 = scmp.eq.s32.totalorder %s31, 0
      %s34 = sadd.s32 %s33, 1
      %s35 = scalar_select %p32, %s33, %s34
      %p38 = pneg %p32
      %p39 = scmp.eq.s32.totalorder %s23, 3
      %p40 = por %p38, %p39
      %p41 = scmp.ne.s32.totalorder %s33, %s36
      %p42 = scmp.eq.s32.totalorder %s23, 0
      %p43 = por %p41, %p42
      %p44 = scmp.ne.s32.totalorder %s33, %s36
      %p45 = scmp.eq.s32.totalorder %s28, 3
      %p46 = por %p44, %p45
      %p47 = scmp.ne.s32.totalorder %s36, %s37
      %p48 = scmp.eq.s32.totalorder %s28, 0
      %p49 = por %p47, %p48
      %p50 = scmp.ne.s32.totalorder %s36, %s37
      %p51 = scmp.eq.s32.totalorder %s29, 3
      %p52 = por %p50, %p51
      %p54 = scmp.ne.s32.totalorder %s37, %s53
      %p55 = scmp.eq.s32.totalorder %s29, 0
      %p56 = por %p54, %p55
      %s57 = ssub.s32 %s23, %s30
      %p58 = scmp.eq.s32.totalorder %s57, 0
      %s60 = sadd.s32 %s59, 1
      %s61 = scalar_select %p58, %s59, %s60
      %p64 = pneg %p58
      %p65 = scmp.eq.s32.totalorder %s23, 3
      %p66 = por %p64, %p65
      %p67 = scmp.ne.s32.totalorder %s59, %s62
      %p68 = scmp.eq.s32.totalorder %s23, 0
      %p69 = por %p67, %p68
      %p70 = scmp.ne.s32.totalorder %s59, %s62
      %p71 = scmp.eq.s32.totalorder %s28, 3
      %p72 = por %p70, %p71
      %p73 = scmp.ne.s32.totalorder %s62, %s63
      %p74 = scmp.eq.s32.totalorder %s28, 0
      %p75 = por %p73, %p74
      %p76 = scmp.ne.s32.totalorder %s62, %s63
      %p77 = scmp.eq.s32.totalorder %s29, 3
      %p78 = por %p76, %p77
      %p80 = scmp.ne.s32.totalorder %s63, %s79
      %p81 = scmp.eq.s32.totalorder %s29, 0
      %p82 = por %p80, %p81
      %s84 = sadd.s32 %s83, 1
      %p87 = scmp.eq.s32.totalorder %s23, 3
      %p88 = scmp.ne.s32.totalorder %s83, %s85
      %p89 = scmp.eq.s32.totalorder %s23, 0
      %p90 = por %p88, %p89
      %p91 = scmp.ne.s32.totalorder %s83, %s85
      %p92 = scmp.eq.s32.totalorder %s28, 3
      %p93 = por %p91, %p92
      %p94 = scmp.ne.s32.totalorder %s85, %s86
      %p95 = scmp.eq.s32.totalorder %s28, 0
      %p96 = por %p94, %p95
      %p97 = scmp.ne.s32.totalorder %s85, %s86
      %p98 = scmp.eq.s32.totalorder %s29, 3
      %p99 = por %p97, %p98
      %p101 = scmp.ne.s32.totalorder %s86, %s100
      %p102 = scmp.eq.s32.totalorder %s29, 0
      %p103 = por %p101, %p102
      %s105 = sadd.s32 %s104, 1
      %p108 = scmp.eq.s32.totalorder %s23, 3
      %p109 = scmp.ne.s32.totalorder %s104, %s106
      %p110 = scmp.eq.s32.totalorder %s23, 0
      %p111 = por %p109, %p110
      %p112 = scmp.ne.s32.totalorder %s104, %s106
      %p113 = scmp.eq.s32.totalorder %s28, 3
      %p114 = por %p112, %p113
      %p115 = scmp.ne.s32.totalorder %s106, %s107
      %p116 = scmp.eq.s32.totalorder %s28, 0
      %p117 = por %p115, %p116
      %p118 = scmp.ne.s32.totalorder %s106, %s107
      %p119 = scmp.eq.s32.totalorder %s29, 3
      %p120 = por %p118, %p119
      %p122 = scmp.ne.s32.totalorder %s107, %s121
      %p123 = scmp.eq.s32.totalorder %s29, 0
      %p124 = por %p122, %p123
      %s126 = sadd.s32 %s125, 1
      %p129 = scmp.eq.s32.totalorder %s23, 3
      %p130 = scmp.ne.s32.totalorder %s125, %s127
      %p131 = scmp.eq.s32.totalorder %s23, 0
      %p132 = por %p130, %p131
      %p133 = scmp.ne.s32.totalorder %s125, %s127
      %p134 = scmp.eq.s32.totalorder %s28, 3
      %p135 = por %p133, %p134
      %p136 = scmp.ne.s32.totalorder %s127, %s128
      %p137 = scmp.eq.s32.totalorder %s28, 0
      %p138 = por %p136, %p137
      %p139 = scmp.ne.s32.totalorder %s127, %s128
      %p140 = scmp.eq.s32.totalorder %s29, 3
      %p141 = por %p139, %p140
      %p143 = scmp.ne.s32.totalorder %s128, %s142
      %p144 = scmp.eq.s32.totalorder %s29, 0
      %p145 = por %p143, %p144
      %s146 = ssub.s32 %s23, %s30
      %p147 = scmp.eq.s32.totalorder %s146, 0
      %s149 = sadd.s32 %s148, 1
      %s150 = scalar_select %p147, %s148, %s149
      %p153 = pneg %p147
      %p154 = scmp.eq.s32.totalorder %s23, 3
      %p155 = por %p153, %p154
      %p156 = scmp.ne.s32.totalorder %s148, %s151
      %p157 = scmp.eq.s32.totalorder %s23, 0
      %p158 = por %p156, %p157
      %p159 = scmp.ne.s32.totalorder %s148, %s151
      %p160 = scmp.eq.s32.totalorder %s28, 3
      %p161 = por %p159, %p160
      %p162 = scmp.ne.s32.totalorder %s151, %s152
      %p163 = scmp.eq.s32.totalorder %s28, 0
      %p164 = por %p162, %p163
      %p165 = scmp.ne.s32.totalorder %s151, %s152
      %p166 = scmp.eq.s32.totalorder %s29, 3
      %p167 = por %p165, %p166
      %p169 = scmp.ne.s32.totalorder %s152, %s168
      %p170 = scmp.eq.s32.totalorder %s29, 0
      %p171 = por %p169, %p170
      %s172 = ssub.s32 %s23, %s30
      %p173 = scmp.eq.s32.totalorder %s172, 0
      %s175 = sadd.s32 %s174, 1
      %s176 = scalar_select %p173, %s174, %s175
      %p179 = pneg %p173
      %p180 = scmp.eq.s32.totalorder %s23, 3
      %p181 = por %p179, %p180
      %p182 = scmp.ne.s32.totalorder %s174, %s177
      %p183 = scmp.eq.s32.totalorder %s23, 0
      %p184 = por %p182, %p183
      %p185 = scmp.ne.s32.totalorder %s174, %s177
      %p186 = scmp.eq.s32.totalorder %s28, 3
      %p187 = por %p185, %p186
      %p188 = scmp.ne.s32.totalorder %s177, %s178
      %p189 = scmp.eq.s32.totalorder %s28, 0
      %p190 = por %p188, %p189
      %p191 = scmp.ne.s32.totalorder %s177, %s178
      %p192 = scmp.eq.s32.totalorder %s29, 3
      %p193 = por %p191, %p192
      %p195 = scmp.ne.s32.totalorder %s178, %s194
      %p196 = scmp.eq.s32.totalorder %s29, 0
      %p197 = por %p195, %p196
      %p198 = scmp.le.s32.totalorder 1, %s23
      %p199 = scmp.lt.s32.totalorder %s23, 5
      %p200 = pnand %p198, %p199
      %p201 = pneg %p200
      // Predicated region
      $region9: #{tpu_custom_call.1} parent=5 // pred_check
        _
      $region10: #{tpu_custom_call.1} parent=5 // pred_check_branch
        %203 = sbr.rel (%p200) target = $region12
      $region11: #{tpu_custom_call.1} parent=5 // pred_region
        %s204 = ssub.s32 %s23, 1
        // Predicated region
        $region13: #{tpu_custom_call.1} parent=11 // pred_check
          %p205 = pneg %p96
        $region14: #{tpu_custom_call.1} parent=11 // pred_check_branch
          %207 = sbr.rel (%p205) target = $region16
        $region15: #{tpu_custom_call.1} parent=11 // pred_region
          %s209 = ssub.s32 36864, 36864
          %210 = vsyncadd [#allocation6], %s209
          %s211 = sshll.u32 [#allocation7], 4
          %s212 = int_to_ptr.vmem [resolvable:$true] %s211
          %217 = dma.hbm_to_vmem [thread:$0]  %s2, 36864, %s212, [#allocation6], 384, 384, 24
        $region16: #{tpu_custom_call.1} parent=11 // pred_fallthru
          _
        // Predicated region
        $region17: #{tpu_custom_call.1} parent=11 // pred_check
          %p218 = pneg %p117
        $region18: #{tpu_custom_call.1} parent=11 // pred_check_branch
          %220 = sbr.rel (%p218) target = $region20
        $region19: #{tpu_custom_call.1} parent=11 // pred_region
          %s222 = ssub.s32 40960, 40960
          %223 = vsyncadd [#allocation9], %s222
          %s224 = sshll.u32 [#allocation8], 4
          %s225 = int_to_ptr.vmem [resolvable:$true] %s224
          %230 = dma.hbm_to_vmem [thread:$0]  %s3, 40960, %s225, [#allocation9], 128, 128, 8
        $region20: #{tpu_custom_call.1} parent=11 // pred_fallthru
          _
        // Predicated region
        $region21: #{tpu_custom_call.1} parent=11 // pred_check
          %p231 = pneg %p138
        $region22: #{tpu_custom_call.1} parent=11 // pred_check_branch
          %233 = sbr.rel (%p231) target = $region24
        $region23: #{tpu_custom_call.1} parent=11 // pred_region
          %s235 = ssub.s32 256, 256
          %236 = vsyncadd [#allocation9], %s235
          %s238 = sshll.u32 [#allocation10], 4
          %s239 = int_to_ptr.vmem [resolvable:$true] %s238
          %241 = dma.hbm_to_vmem [thread:$0]  %s4, 256, %s239, [#allocation9]
        $region24: #{tpu_custom_call.1} parent=11 // pred_fallthru
          _
      $region12: #{tpu_custom_call.1} parent=5 // pred_fallthru
        _
      %p242 = scmp.lt.s32.totalorder %s23, 4
      // Predicated region
      $region25: #{tpu_custom_call.1} parent=5 // pred_check
        %p243 = pneg %p242
      $region26: #{tpu_custom_call.1} parent=5 // pred_check_branch
        %245 = sbr.rel (%p243) target = $region28
      $region27: #{tpu_custom_call.1} parent=5 // pred_region
        // Predicated region
        $region29: #{tpu_custom_call.1} parent=27 // pred_check
          %p246 = pneg %p43
        $region30: #{tpu_custom_call.1} parent=27 // pred_check_branch
          %248 = sbr.rel (%p246) target = $region32
        $region31: #{tpu_custom_call.1} parent=27 // pred_region
          %s249 = sand.u32 %s33, 1
          %s250 = scalar_lea.sflag [#allocation3], %s249
          %s251 = sand.u32 %s33, 1
          %s252 = smul.addr %s251, 288
          %s253 = scalar_lea.vmem [#allocation2], %s252
          %s254 = smul.u32 12, %s23
          %s256 = ssub.s32 4608, 4608
          %257 = vsyncadd %s250, %s256
          %s258 = smul.addr %s254, 6
          %s259 = smul.addr %s258, 64
          %s260 = scalar_lea.hbm %s0, %s259
          %s261 = sshll.u32 %s253, 4
          %s262 = int_to_ptr.vmem [resolvable:$true] %s261
          %267 = dma.hbm_to_vmem [thread:$0]  %s260, 4608, %s262, %s250, 384, 384, 24
        $region32: #{tpu_custom_call.1} parent=27 // pred_fallthru
          _
        // Predicated region
        $region33: #{tpu_custom_call.1} parent=27 // pred_check
          %p268 = pneg %p69
        $region34: #{tpu_custom_call.1} parent=27 // pred_check_branch
          %270 = sbr.rel (%p268) target = $region36
        $region35: #{tpu_custom_call.1} parent=27 // pred_region
          %s271 = sand.u32 %s23, 1
          %s272 = scalar_lea.sflag [#allocation6], %s271
          %s273 = sand.u32 %s59, 1
          %s274 = smul.addr %s273, 48
          %s275 = scalar_lea.vmem [#allocation5], %s274
          %s276 = smul.u32 12, %s23
          %s278 = ssub.s32 768, 768
          %279 = vsyncadd %s272, %s278
          %s280 = smul.addr %s276, 64
          %s281 = scalar_lea.hbm %s1, %s280
          %s282 = sshll.u32 %s275, 4
          %s283 = int_to_ptr.vmem [resolvable:$true] %s282
          %288 = dma.hbm_to_vmem [thread:$0]  %s281, 768, %s283, %s272, 64, 64, 4
        $region36: #{tpu_custom_call.1} parent=27 // pred_fallthru
          _
      $region28: #{tpu_custom_call.1} parent=5 // pred_fallthru
        _
      %p289 = scmp.le.s32.totalorder 1, %s23
      %p290 = scmp.lt.s32.totalorder %s23, 5
      %p291 = pnand %p289, %p290
      %p292 = pneg %p291
      // Predicated region
      $region37: #{tpu_custom_call.1} parent=5 // pred_check
        _
      $region38: #{tpu_custom_call.1} parent=5 // pred_check_branch
        %294 = sbr.rel (%p291) target = $region40
      $region39: #{tpu_custom_call.1} parent=5 // pred_region
        %s295 = ssub.s32 %s23, 1
        %s296 = sand.u32 %s36, 1
        %s297 = scalar_lea.sflag [#allocation3], %s296
        %s298 = sand.u32 %s36, 1
        %s299 = smul.addr %s298, 288
        %s300 = scalar_lea.vmem [#allocation2], %s299
        // Predicated region
        $region41: #{tpu_custom_call.1} parent=39 // pred_check
          %p301 = pneg %p49
        $region42: #{tpu_custom_call.1} parent=39 // pred_check_branch
          %303 = sbr.rel (%p301) target = $region44
        $region43: #{tpu_custom_call.1} parent=39 // pred_region
          %304 = dma.done %s297, 4608
        $region44: #{tpu_custom_call.1} parent=39 // pred_fallthru
          _
        %s305 = sand.u32 %s28, 1
        %s306 = scalar_lea.sflag [#allocation6], %s305
        %s307 = sand.u32 %s62, 1
        %s308 = smul.addr %s307, 48
        %s309 = scalar_lea.vmem [#allocation5], %s308
        // Predicated region
        $region45: #{tpu_custom_call.1} parent=39 // pred_check
          %p310 = pneg %p75
        $region46: #{tpu_custom_call.1} parent=39 // pred_check_branch
          %312 = sbr.rel (%p310) target = $region48
        $region47: #{tpu_custom_call.1} parent=39 // pred_region
          %313 = dma.done %s306, 768
        $region48: #{tpu_custom_call.1} parent=39 // pred_fallthru
          _
        // Predicated region
        $region49: #{tpu_custom_call.1} parent=39 // pred_check
          %p314 = pneg %p96
        $region50: #{tpu_custom_call.1} parent=39 // pred_check_branch
          %316 = sbr.rel (%p314) target = $region52
        $region51: #{tpu_custom_call.1} parent=39 // pred_region
          %317 = dma.done [#allocation6], 36864
        $region52: #{tpu_custom_call.1} parent=39 // pred_fallthru
          _
        // Predicated region
        $region53: #{tpu_custom_call.1} parent=39 // pred_check
          %p318 = pneg %p117
        $region54: #{tpu_custom_call.1} parent=39 // pred_check_branch
          %320 = sbr.rel (%p318) target = $region56
        $region55: #{tpu_custom_call.1} parent=39 // pred_region
          %321 = dma.done [#allocation9], 40960
        $region56: #{tpu_custom_call.1} parent=39 // pred_fallthru
          _
        // Predicated region
        $region57: #{tpu_custom_call.1} parent=39 // pred_check
          %p322 = pneg %p138
        $region58: #{tpu_custom_call.1} parent=39 // pred_check_branch
          %324 = sbr.rel (%p322) target = $region60
        $region59: #{tpu_custom_call.1} parent=39 // pred_region
          %325 = dma.done [#allocation9], 256
        $region60: #{tpu_custom_call.1} parent=39 // pred_fallthru
          _
        %s326 = sand.u32 %s36, 1
        %s327 = scalar_lea.sflag [#allocation3], %s326
        %s328 = sand.u32 %s36, 1
        %s329 = smul.addr %s328, 288
        %s330 = scalar_lea.vmem [#allocation2], %s329
        %p331 = pneg %p49
        %p332 = pneg %p46
        %s333 = sand.u32 %s28, 1
        %s334 = scalar_lea.sflag [#allocation6], %s333
        %s335 = sand.u32 %s62, 1
        %s336 = smul.addr %s335, 48
        %s337 = scalar_lea.vmem [#allocation5], %s336
        %p338 = pneg %p75
        %p339 = pneg %p72
        %p340 = pneg %p96
        %p341 = pneg %p93
        %p342 = pneg %p117
        %p343 = pneg %p114
        %p344 = pneg %p138
        %p345 = pneg %p135
        %p346 = pneg %p164
        %p347 = pneg %p161
        %s348 = sand.u32 %s151, 1
        %s349 = scalar_lea.sflag [#allocation4], %s348
        %s350 = sand.u32 %s151, 1
        %s351 = smul.addr %s350, 8
        %s352 = scalar_lea.vmem [#allocation11], %s351
        %p353 = pneg %p190
        %p354 = pneg %p187
        %p355 = scmp.lt.s32.totalorder %s28, 3
        %s356 = scalar_select %p355, %s28, 3
        %s357 = smul.addr %s356, 8
        %s358 = scalar_lea.vmem %s6, %s357
        %s359 = smul.u32 12, %s28
        %s360 = smul.u32 12, %s28
        %p361 = scmp.lt.s32.totalorder %s28, 3
        %s362 = scalar_select %p361, %s28, 3
        %s363 = smul.addr %s362, 8
        %s364 = scalar_lea.vmem %s6, %s363
        %v366 = vld [vmem:[%s300] sm:$0xff]
        %v367 = vld [vmem:[%s300 + $0x8] sm:$0xff]
        %v368 = vld [vmem:[%s300 + $0x10] sm:$0xff]
        %v369 = vld [vmem:[%s300 + $0x18] sm:$0xff]
        %v370 = vld [vmem:[%s300 + $0x20] sm:$0xff]
        %v371 = vld [vmem:[%s300 + $0x28] sm:$0xff]
        %v372 = vld [vmem:[%s300 + $0x30] sm:$0xff]
        %v373 = vld [vmem:[%s300 + $0x38] sm:$0xff]
        %v374 = vld [vmem:[%s300 + $0x40] sm:$0xff]
        %v375 = vld [vmem:[%s300 + $0x48] sm:$0xff]
        %v376 = vld [vmem:[%s300 + $0x50] sm:$0xff]
        %v377 = vld [vmem:[%s300 + $0x58] sm:$0xff]
        %v378 = vld [vmem:[%s300 + $0x60] sm:$0xff]
        %v379 = vld [vmem:[%s300 + $0x68] sm:$0xff]
        %v380 = vld [vmem:[%s300 + $0x70] sm:$0xff]
        %v381 = vld [vmem:[%s300 + $0x78] sm:$0xff]
        %v382 = vld [vmem:[%s300 + $0x80] sm:$0xff]
        %v383 = vld [vmem:[%s300 + $0x88] sm:$0xff]
        %v384 = vld [vmem:[%s300 + $0x90] sm:$0xff]
        %v385 = vld [vmem:[%s300 + $0x98] sm:$0xff]
        %v386 = vld [vmem:[%s300 + $0xa0] sm:$0xff]
        %v387 = vld [vmem:[%s300 + $0xa8] sm:$0xff]
        %v388 = vld [vmem:[%s300 + $0xb0] sm:$0xff]
        %v389 = vld [vmem:[%s300 + $0xb8] sm:$0xff]
        %v390 = vld [vmem:[%s300 + $0xc0] sm:$0xff]
        %v391 = vld [vmem:[%s300 + $0xc8] sm:$0xff]
        %v392 = vld [vmem:[%s300 + $0xd0] sm:$0xff]
        %v393 = vld [vmem:[%s300 + $0xd8] sm:$0xff]
        %v394 = vld [vmem:[%s300 + $0xe0] sm:$0xff]
        %v395 = vld [vmem:[%s300 + $0xe8] sm:$0xff]
        %v396 = vld [vmem:[%s300 + $0xf0] sm:$0xff]
        %v397 = vld [vmem:[%s300 + $0xf8] sm:$0xff]
        %v398 = vld [vmem:[%s300 + $0x100] sm:$0xff]
        %v399 = vld [vmem:[%s300 + $0x108] sm:$0xff]
        %v400 = vld [vmem:[%s300 + $0x110] sm:$0xff]
        %v401 = vld [vmem:[%s300 + $0x118] sm:$0xff]
        %v402 = vld [vmem:[#allocation7] sm:$0xff]
        %v403 = vld [vmem:[#allocation7 + $0x8] sm:$0xff]
        %v404 = vld [vmem:[#allocation7 + $0x10] sm:$0xff]
        %v405 = vld [vmem:[#allocation7 + $0x18] sm:$0xff]
        %v406 = vld [vmem:[#allocation7 + $0x20] sm:$0xff]
        %v407 = vld [vmem:[#allocation7 + $0x28] sm:$0xff]
        %v408 = vld [vmem:[#allocation7 + $0x30] sm:$0xff]
        %v409 = vld [vmem:[#allocation7 + $0x38] sm:$0xff]
        %v410 = vld [vmem:[#allocation7 + $0x40] sm:$0xff]
        %v411 = vld [vmem:[#allocation7 + $0x48] sm:$0xff]
        %v412 = vld [vmem:[#allocation7 + $0x50] sm:$0xff]
        %v413 = vld [vmem:[#allocation7 + $0x58] sm:$0xff]
        %v414 = vld [vmem:[#allocation7 + $0x60] sm:$0xff]
        %v415 = vld [vmem:[#allocation7 + $0x68] sm:$0xff]
        %v416 = vld [vmem:[#allocation7 + $0x70] sm:$0xff]
        %v417 = vld [vmem:[#allocation7 + $0x78] sm:$0xff]
        %v418 = vld [vmem:[#allocation7 + $0x80] sm:$0xff]
        %v419 = vld [vmem:[#allocation7 + $0x88] sm:$0xff]
        %v420 = vld [vmem:[#allocation7 + $0x90] sm:$0xff]
        %v421 = vld [vmem:[#allocation7 + $0x98] sm:$0xff]
        %v422 = vld [vmem:[#allocation7 + $0xa0] sm:$0xff]
        %v423 = vld [vmem:[#allocation7 + $0xa8] sm:$0xff]
        %v424 = vld [vmem:[#allocation7 + $0xb0] sm:$0xff]
        %v425 = vld [vmem:[#allocation7 + $0xb8] sm:$0xff]
        %v426 = vld [vmem:[#allocation7 + $0xc0] sm:$0xff]
        %v427 = vld [vmem:[#allocation7 + $0xc8] sm:$0xff]
        %v428 = vld [vmem:[#allocation7 + $0xd0] sm:$0xff]
        %v429 = vld [vmem:[#allocation7 + $0xd8] sm:$0xff]
        %v430 = vld [vmem:[#allocation7 + $0xe0] sm:$0xff]
        %v431 = vld [vmem:[#allocation7 + $0xe8] sm:$0xff]
        %v432 = vld [vmem:[#allocation7 + $0xf0] sm:$0xff]
        %v433 = vld [vmem:[#allocation7 + $0xf8] sm:$0xff]
        %v434 = vld [vmem:[#allocation7 + $0x100] sm:$0xff]
        %v435 = vld [vmem:[#allocation7 + $0x108] sm:$0xff]
        %v436 = vld [vmem:[#allocation7 + $0x110] sm:$0xff]
        %v437 = vld [vmem:[#allocation7 + $0x118] sm:$0xff]
        %v438 = vld [vmem:[#allocation7 + $0x120] sm:$0xff]
        %v439 = vld [vmem:[#allocation7 + $0x128] sm:$0xff]
        %v440 = vld [vmem:[#allocation7 + $0x130] sm:$0xff]
        %v441 = vld [vmem:[#allocation7 + $0x138] sm:$0xff]
        %v442 = vld [vmem:[#allocation7 + $0x140] sm:$0xff]
        %v443 = vld [vmem:[#allocation7 + $0x148] sm:$0xff]
        %v444 = vld [vmem:[#allocation7 + $0x150] sm:$0xff]
        %v445 = vld [vmem:[#allocation7 + $0x158] sm:$0xff]
        %v446 = vld [vmem:[#allocation7 + $0x160] sm:$0xff]
        %v447 = vld [vmem:[#allocation7 + $0x168] sm:$0xff]
        %v448 = vld [vmem:[#allocation7 + $0x170] sm:$0xff]
        %v449 = vld [vmem:[#allocation7 + $0x178] sm:$0xff]
        %v450 = vld [vmem:[#allocation7 + $0x180] sm:$0xff]
        %v451 = vld [vmem:[#allocation7 + $0x188] sm:$0xff]
        %v452 = vld [vmem:[#allocation7 + $0x190] sm:$0xff]
        %v453 = vld [vmem:[#allocation7 + $0x198] sm:$0xff]
        %v454 = vld [vmem:[#allocation7 + $0x1a0] sm:$0xff]
        %v455 = vld [vmem:[#allocation7 + $0x1a8] sm:$0xff]
        %v456 = vld [vmem:[#allocation7 + $0x1b0] sm:$0xff]
        %v457 = vld [vmem:[#allocation7 + $0x1b8] sm:$0xff]
        %v458 = vld [vmem:[#allocation7 + $0x1c0] sm:$0xff]
        %v459 = vld [vmem:[#allocation7 + $0x1c8] sm:$0xff]
        %v460 = vld [vmem:[#allocation7 + $0x1d0] sm:$0xff]
        %v461 = vld [vmem:[#allocation7 + $0x1d8] sm:$0xff]
        %v462 = vld [vmem:[#allocation7 + $0x1e0] sm:$0xff]
        %v463 = vld [vmem:[#allocation7 + $0x1e8] sm:$0xff]
        %v464 = vld [vmem:[#allocation7 + $0x1f0] sm:$0xff]
        %v465 = vld [vmem:[#allocation7 + $0x1f8] sm:$0xff]
        %v466 = vld [vmem:[#allocation7 + $0x200] sm:$0xff]
        %v467 = vld [vmem:[#allocation7 + $0x208] sm:$0xff]
        %v468 = vld [vmem:[#allocation7 + $0x210] sm:$0xff]
        %v469 = vld [vmem:[#allocation7 + $0x218] sm:$0xff]
        %v470 = vld [vmem:[#allocation7 + $0x220] sm:$0xff]
        %v471 = vld [vmem:[#allocation7 + $0x228] sm:$0xff]
        %v472 = vld [vmem:[#allocation7 + $0x230] sm:$0xff]
        %v473 = vld [vmem:[#allocation7 + $0x238] sm:$0xff]
        %v474 = vld [vmem:[#allocation7 + $0x240] sm:$0xff]
        %v475 = vld [vmem:[#allocation7 + $0x248] sm:$0xff]
        %v476 = vld [vmem:[#allocation7 + $0x250] sm:$0xff]
        %v477 = vld [vmem:[#allocation7 + $0x258] sm:$0xff]
        %v478 = vld [vmem:[#allocation7 + $0x260] sm:$0xff]
        %v479 = vld [vmem:[#allocation7 + $0x268] sm:$0xff]
        %v480 = vld [vmem:[#allocation7 + $0x270] sm:$0xff]
        %v481 = vld [vmem:[#allocation7 + $0x278] sm:$0xff]
        %v482 = vld [vmem:[#allocation7 + $0x280] sm:$0xff]
        %v483 = vld [vmem:[#allocation7 + $0x288] sm:$0xff]
        %v484 = vld [vmem:[#allocation7 + $0x290] sm:$0xff]
        %v485 = vld [vmem:[#allocation7 + $0x298] sm:$0xff]
        %v486 = vld [vmem:[#allocation7 + $0x2a0] sm:$0xff]
        %v487 = vld [vmem:[#allocation7 + $0x2a8] sm:$0xff]
        %v488 = vld [vmem:[#allocation7 + $0x2b0] sm:$0xff]
        %v489 = vld [vmem:[#allocation7 + $0x2b8] sm:$0xff]
        %v490 = vld [vmem:[#allocation7 + $0x2c0] sm:$0xff]
        %v491 = vld [vmem:[#allocation7 + $0x2c8] sm:$0xff]
        %v492 = vld [vmem:[#allocation7 + $0x2d0] sm:$0xff]
        %v493 = vld [vmem:[#allocation7 + $0x2d8] sm:$0xff]
        %v494 = vld [vmem:[#allocation7 + $0x2e0] sm:$0xff]
        %v495 = vld [vmem:[#allocation7 + $0x2e8] sm:$0xff]
        %v496 = vld [vmem:[#allocation7 + $0x2f0] sm:$0xff]
        %v497 = vld [vmem:[#allocation7 + $0x2f8] sm:$0xff]
        %v498 = vld [vmem:[#allocation7 + $0x300] sm:$0xff]
        %v499 = vld [vmem:[#allocation7 + $0x308] sm:$0xff]
        %v500 = vld [vmem:[#allocation7 + $0x310] sm:$0xff]
        %v501 = vld [vmem:[#allocation7 + $0x318] sm:$0xff]
        %v502 = vld [vmem:[#allocation7 + $0x320] sm:$0xff]
        %v503 = vld [vmem:[#allocation7 + $0x328] sm:$0xff]
        %v504 = vld [vmem:[#allocation7 + $0x330] sm:$0xff]
        %v505 = vld [vmem:[#allocation7 + $0x338] sm:$0xff]
        %v506 = vld [vmem:[#allocation7 + $0x340] sm:$0xff]
        %v507 = vld [vmem:[#allocation7 + $0x348] sm:$0xff]
        %v508 = vld [vmem:[#allocation7 + $0x350] sm:$0xff]
        %v509 = vld [vmem:[#allocation7 + $0x358] sm:$0xff]
        %v510 = vld [vmem:[#allocation7 + $0x360] sm:$0xff]
        %v511 = vld [vmem:[#allocation7 + $0x368] sm:$0xff]
        %v512 = vld [vmem:[#allocation7 + $0x370] sm:$0xff]
        %v513 = vld [vmem:[#allocation7 + $0x378] sm:$0xff]
        %v514 = vld [vmem:[#allocation7 + $0x380] sm:$0xff]
        %v515 = vld [vmem:[#allocation7 + $0x388] sm:$0xff]
        %v516 = vld [vmem:[#allocation7 + $0x390] sm:$0xff]
        %v517 = vld [vmem:[#allocation7 + $0x398] sm:$0xff]
        %v518 = vld [vmem:[#allocation7 + $0x3a0] sm:$0xff]
        %v519 = vld [vmem:[#allocation7 + $0x3a8] sm:$0xff]
        %v520 = vld [vmem:[#allocation7 + $0x3b0] sm:$0xff]
        %v521 = vld [vmem:[#allocation7 + $0x3b8] sm:$0xff]
        %v522 = vld [vmem:[#allocation7 + $0x3c0] sm:$0xff]
        %v523 = vld [vmem:[#allocation7 + $0x3c8] sm:$0xff]
        %v524 = vld [vmem:[#allocation7 + $0x3d0] sm:$0xff]
        %v525 = vld [vmem:[#allocation7 + $0x3d8] sm:$0xff]
        %v526 = vld [vmem:[#allocation7 + $0x3e0] sm:$0xff]
        %v527 = vld [vmem:[#allocation7 + $0x3e8] sm:$0xff]
        %v528 = vld [vmem:[#allocation7 + $0x3f0] sm:$0xff]
        %v529 = vld [vmem:[#allocation7 + $0x3f8] sm:$0xff]
        %v530 = vld [vmem:[#allocation7 + $0x400] sm:$0xff]
        %v531 = vld [vmem:[#allocation7 + $0x408] sm:$0xff]
        %v532 = vld [vmem:[#allocation7 + $0x410] sm:$0xff]
        %v533 = vld [vmem:[#allocation7 + $0x418] sm:$0xff]
        %v534 = vld [vmem:[#allocation7 + $0x420] sm:$0xff]
        %v535 = vld [vmem:[#allocation7 + $0x428] sm:$0xff]
        %v536 = vld [vmem:[#allocation7 + $0x430] sm:$0xff]
        %v537 = vld [vmem:[#allocation7 + $0x438] sm:$0xff]
        %v538 = vld [vmem:[#allocation7 + $0x440] sm:$0xff]
        %v539 = vld [vmem:[#allocation7 + $0x448] sm:$0xff]
        %v540 = vld [vmem:[#allocation7 + $0x450] sm:$0xff]
        %v541 = vld [vmem:[#allocation7 + $0x458] sm:$0xff]
        %v542 = vld [vmem:[#allocation7 + $0x460] sm:$0xff]
        %v543 = vld [vmem:[#allocation7 + $0x468] sm:$0xff]
        %v544 = vld [vmem:[#allocation7 + $0x470] sm:$0xff]
        %v545 = vld [vmem:[#allocation7 + $0x478] sm:$0xff]
        %v546 = vld [vmem:[#allocation7 + $0x480] sm:$0xff]
        %v547 = vld [vmem:[#allocation7 + $0x488] sm:$0xff]
        %v548 = vld [vmem:[#allocation7 + $0x490] sm:$0xff]
        %v549 = vld [vmem:[#allocation7 + $0x498] sm:$0xff]
        %v550 = vld [vmem:[#allocation7 + $0x4a0] sm:$0xff]
        %v551 = vld [vmem:[#allocation7 + $0x4a8] sm:$0xff]
        %v552 = vld [vmem:[#allocation7 + $0x4b0] sm:$0xff]
        %v553 = vld [vmem:[#allocation7 + $0x4b8] sm:$0xff]
        %v554 = vld [vmem:[#allocation7 + $0x4c0] sm:$0xff]
        %v555 = vld [vmem:[#allocation7 + $0x4c8] sm:$0xff]
        %v556 = vld [vmem:[#allocation7 + $0x4d0] sm:$0xff]
        %v557 = vld [vmem:[#allocation7 + $0x4d8] sm:$0xff]
        %v558 = vld [vmem:[#allocation7 + $0x4e0] sm:$0xff]
        %v559 = vld [vmem:[#allocation7 + $0x4e8] sm:$0xff]
        %v560 = vld [vmem:[#allocation7 + $0x4f0] sm:$0xff]
        %v561 = vld [vmem:[#allocation7 + $0x4f8] sm:$0xff]
        %v562 = vld [vmem:[#allocation7 + $0x500] sm:$0xff]
        %v563 = vld [vmem:[#allocation7 + $0x508] sm:$0xff]
        %v564 = vld [vmem:[#allocation7 + $0x510] sm:$0xff]
        %v565 = vld [vmem:[#allocation7 + $0x518] sm:$0xff]
        %v566 = vld [vmem:[#allocation7 + $0x520] sm:$0xff]
        %v567 = vld [vmem:[#allocation7 + $0x528] sm:$0xff]
        %v568 = vld [vmem:[#allocation7 + $0x530] sm:$0xff]
        %v569 = vld [vmem:[#allocation7 + $0x538] sm:$0xff]
        %v570 = vld [vmem:[#allocation7 + $0x540] sm:$0xff]
        %v571 = vld [vmem:[#allocation7 + $0x548] sm:$0xff]
        %v572 = vld [vmem:[#allocation7 + $0x550] sm:$0xff]
        %v573 = vld [vmem:[#allocation7 + $0x558] sm:$0xff]
        %v574 = vld [vmem:[#allocation7 + $0x560] sm:$0xff]
        %v575 = vld [vmem:[#allocation7 + $0x568] sm:$0xff]
        %v576 = vld [vmem:[#allocation7 + $0x570] sm:$0xff]
        %v577 = vld [vmem:[#allocation7 + $0x578] sm:$0xff]
        %v578 = vld [vmem:[#allocation7 + $0x580] sm:$0xff]
        %v579 = vld [vmem:[#allocation7 + $0x588] sm:$0xff]
        %v580 = vld [vmem:[#allocation7 + $0x590] sm:$0xff]
        %v581 = vld [vmem:[#allocation7 + $0x598] sm:$0xff]
        %v582 = vld [vmem:[#allocation7 + $0x5a0] sm:$0xff]
        %v583 = vld [vmem:[#allocation7 + $0x5a8] sm:$0xff]
        %v584 = vld [vmem:[#allocation7 + $0x5b0] sm:$0xff]
        %v585 = vld [vmem:[#allocation7 + $0x5b8] sm:$0xff]
        %v586 = vld [vmem:[#allocation7 + $0x5c0] sm:$0xff]
        %v587 = vld [vmem:[#allocation7 + $0x5c8] sm:$0xff]
        %v588 = vld [vmem:[#allocation7 + $0x5d0] sm:$0xff]
        %v589 = vld [vmem:[#allocation7 + $0x5d8] sm:$0xff]
        %v590 = vld [vmem:[#allocation7 + $0x5e0] sm:$0xff]
        %v591 = vld [vmem:[#allocation7 + $0x5e8] sm:$0xff]
        %v592 = vld [vmem:[#allocation7 + $0x5f0] sm:$0xff]
        %v593 = vld [vmem:[#allocation7 + $0x5f8] sm:$0xff]
        %v594 = vld [vmem:[#allocation7 + $0x600] sm:$0xff]
        %v595 = vld [vmem:[#allocation7 + $0x608] sm:$0xff]
        %v596 = vld [vmem:[#allocation7 + $0x610] sm:$0xff]
        %v597 = vld [vmem:[#allocation7 + $0x618] sm:$0xff]
        %v598 = vld [vmem:[#allocation7 + $0x620] sm:$0xff]
        %v599 = vld [vmem:[#allocation7 + $0x628] sm:$0xff]
        %v600 = vld [vmem:[#allocation7 + $0x630] sm:$0xff]
        %v601 = vld [vmem:[#allocation7 + $0x638] sm:$0xff]
        %v602 = vld [vmem:[#allocation7 + $0x640] sm:$0xff]
        %v603 = vld [vmem:[#allocation7 + $0x648] sm:$0xff]
        %v604 = vld [vmem:[#allocation7 + $0x650] sm:$0xff]
        %v605 = vld [vmem:[#allocation7 + $0x658] sm:$0xff]
        %v606 = vld [vmem:[#allocation7 + $0x660] sm:$0xff]
        %v607 = vld [vmem:[#allocation7 + $0x668] sm:$0xff]
        %v608 = vld [vmem:[#allocation7 + $0x670] sm:$0xff]
        %v609 = vld [vmem:[#allocation7 + $0x678] sm:$0xff]
        %v610 = vld [vmem:[#allocation7 + $0x680] sm:$0xff]
        %v611 = vld [vmem:[#allocation7 + $0x688] sm:$0xff]
        %v612 = vld [vmem:[#allocation7 + $0x690] sm:$0xff]
        %v613 = vld [vmem:[#allocation7 + $0x698] sm:$0xff]
        %v614 = vld [vmem:[#allocation7 + $0x6a0] sm:$0xff]
        %v615 = vld [vmem:[#allocation7 + $0x6a8] sm:$0xff]
        %v616 = vld [vmem:[#allocation7 + $0x6b0] sm:$0xff]
        %v617 = vld [vmem:[#allocation7 + $0x6b8] sm:$0xff]
        %v618 = vld [vmem:[#allocation7 + $0x6c0] sm:$0xff]
        %v619 = vld [vmem:[#allocation7 + $0x6c8] sm:$0xff]
        %v620 = vld [vmem:[#allocation7 + $0x6d0] sm:$0xff]
        %v621 = vld [vmem:[#allocation7 + $0x6d8] sm:$0xff]
        %v622 = vld [vmem:[#allocation7 + $0x6e0] sm:$0xff]
        %v623 = vld [vmem:[#allocation7 + $0x6e8] sm:$0xff]
        %v624 = vld [vmem:[#allocation7 + $0x6f0] sm:$0xff]
        %v625 = vld [vmem:[#allocation7 + $0x6f8] sm:$0xff]
        %v626 = vld [vmem:[#allocation7 + $0x700] sm:$0xff]
        %v627 = vld [vmem:[#allocation7 + $0x708] sm:$0xff]
        %v628 = vld [vmem:[#allocation7 + $0x710] sm:$0xff]
        %v629 = vld [vmem:[#allocation7 + $0x718] sm:$0xff]
        %v630 = vld [vmem:[#allocation7 + $0x720] sm:$0xff]
        %v631 = vld [vmem:[#allocation7 + $0x728] sm:$0xff]
        %v632 = vld [vmem:[#allocation7 + $0x730] sm:$0xff]
        %v633 = vld [vmem:[#allocation7 + $0x738] sm:$0xff]
        %v634 = vld [vmem:[#allocation7 + $0x740] sm:$0xff]
        %v635 = vld [vmem:[#allocation7 + $0x748] sm:$0xff]
        %v636 = vld [vmem:[#allocation7 + $0x750] sm:$0xff]
        %v637 = vld [vmem:[#allocation7 + $0x758] sm:$0xff]
        %v638 = vld [vmem:[#allocation7 + $0x760] sm:$0xff]
        %v639 = vld [vmem:[#allocation7 + $0x768] sm:$0xff]
        %v640 = vld [vmem:[#allocation7 + $0x770] sm:$0xff]
        %v641 = vld [vmem:[#allocation7 + $0x778] sm:$0xff]
        %v642 = vld [vmem:[#allocation7 + $0x780] sm:$0xff]
        %v643 = vld [vmem:[#allocation7 + $0x788] sm:$0xff]
        %v644 = vld [vmem:[#allocation7 + $0x790] sm:$0xff]
        %v645 = vld [vmem:[#allocation7 + $0x798] sm:$0xff]
        %v646 = vld [vmem:[#allocation7 + $0x7a0] sm:$0xff]
        %v647 = vld [vmem:[#allocation7 + $0x7a8] sm:$0xff]
        %v648 = vld [vmem:[#allocation7 + $0x7b0] sm:$0xff]
        %v649 = vld [vmem:[#allocation7 + $0x7b8] sm:$0xff]
        %v650 = vld [vmem:[#allocation7 + $0x7c0] sm:$0xff]
        %v651 = vld [vmem:[#allocation7 + $0x7c8] sm:$0xff]
        %v652 = vld [vmem:[#allocation7 + $0x7d0] sm:$0xff]
        %v653 = vld [vmem:[#allocation7 + $0x7d8] sm:$0xff]
        %v654 = vld [vmem:[#allocation7 + $0x7e0] sm:$0xff]
        %v655 = vld [vmem:[#allocation7 + $0x7e8] sm:$0xff]
        %v656 = vld [vmem:[#allocation7 + $0x7f0] sm:$0xff]
        %v657 = vld [vmem:[#allocation7 + $0x7f8] sm:$0xff]
        %v658 = vld [vmem:[#allocation7 + $0x800] sm:$0xff]
        %v659 = vld [vmem:[#allocation7 + $0x808] sm:$0xff]
        %v660 = vld [vmem:[#allocation7 + $0x810] sm:$0xff]
        %v661 = vld [vmem:[#allocation7 + $0x818] sm:$0xff]
        %v662 = vld [vmem:[#allocation7 + $0x820] sm:$0xff]
        %v663 = vld [vmem:[#allocation7 + $0x828] sm:$0xff]
        %v664 = vld [vmem:[#allocation7 + $0x830] sm:$0xff]
        %v665 = vld [vmem:[#allocation7 + $0x838] sm:$0xff]
        %v666 = vld [vmem:[#allocation7 + $0x840] sm:$0xff]
        %v667 = vld [vmem:[#allocation7 + $0x848] sm:$0xff]
        %v668 = vld [vmem:[#allocation7 + $0x850] sm:$0xff]
        %v669 = vld [vmem:[#allocation7 + $0x858] sm:$0xff]
        %v670 = vld [vmem:[#allocation7 + $0x860] sm:$0xff]
        %v671 = vld [vmem:[#allocation7 + $0x868] sm:$0xff]
        %v672 = vld [vmem:[#allocation7 + $0x870] sm:$0xff]
        %v673 = vld [vmem:[#allocation7 + $0x878] sm:$0xff]
        %v674 = vld [vmem:[#allocation7 + $0x880] sm:$0xff]
        %v675 = vld [vmem:[#allocation7 + $0x888] sm:$0xff]
        %v676 = vld [vmem:[#allocation7 + $0x890] sm:$0xff]
        %v677 = vld [vmem:[#allocation7 + $0x898] sm:$0xff]
        %v678 = vld [vmem:[#allocation7 + $0x8a0] sm:$0xff]
        %v679 = vld [vmem:[#allocation7 + $0x8a8] sm:$0xff]
        %v680 = vld [vmem:[#allocation7 + $0x8b0] sm:$0xff]
        %v681 = vld [vmem:[#allocation7 + $0x8b8] sm:$0xff]
        %v682 = vld [vmem:[#allocation7 + $0x8c0] sm:$0xff]
        %v683 = vld [vmem:[#allocation7 + $0x8c8] sm:$0xff]
        %v684 = vld [vmem:[#allocation7 + $0x8d0] sm:$0xff]
        %v685 = vld [vmem:[#allocation7 + $0x8d8] sm:$0xff]
        %v686 = vld [vmem:[#allocation7 + $0x8e0] sm:$0xff]
        %v687 = vld [vmem:[#allocation7 + $0x8e8] sm:$0xff]
        %v688 = vld [vmem:[#allocation7 + $0x8f0] sm:$0xff]
        %v689 = vld [vmem:[#allocation7 + $0x8f8] sm:$0xff]
        %v726 = vunpack.c.l.b16 %v366
        %v727 = vunpack.c.h.b16 %v366
        %v728 = vunpack.c.l.b16 %v367
        %v729 = vunpack.c.h.b16 %v367
        %v730 = vunpack.c.l.b16 %v368
        %v731 = vunpack.c.h.b16 %v368
        %v732 = vunpack.c.l.b16 %v369
        %v733 = vunpack.c.h.b16 %v369
        %v734 = vunpack.c.l.b16 %v370
        %v735 = vunpack.c.h.b16 %v370
        %v736 = vunpack.c.l.b16 %v371
        %v737 = vunpack.c.h.b16 %v371
        %v738 = vunpack.c.l.b16 %v372
        %v739 = vunpack.c.h.b16 %v372
        %v740 = vunpack.c.l.b16 %v373
        %v741 = vunpack.c.h.b16 %v373
        %v742 = vunpack.c.l.b16 %v374
        %v743 = vunpack.c.h.b16 %v374
        %v744 = vunpack.c.l.b16 %v375
        %v745 = vunpack.c.h.b16 %v375
        %v746 = vunpack.c.l.b16 %v376
        %v747 = vunpack.c.h.b16 %v376
        %v748 = vunpack.c.l.b16 %v377
        %v749 = vunpack.c.h.b16 %v377
        %v750 = vunpack.c.l.b16 %v378
        %v751 = vunpack.c.h.b16 %v378
        %v752 = vunpack.c.l.b16 %v379
        %v753 = vunpack.c.h.b16 %v379
        %v754 = vunpack.c.l.b16 %v380
        %v755 = vunpack.c.h.b16 %v380
        %v756 = vunpack.c.l.b16 %v381
        %v757 = vunpack.c.h.b16 %v381
        %v758 = vunpack.c.l.b16 %v382
        %v759 = vunpack.c.h.b16 %v382
        %v760 = vunpack.c.l.b16 %v383
        %v761 = vunpack.c.h.b16 %v383
        %v762 = vunpack.c.l.b16 %v384
        %v763 = vunpack.c.h.b16 %v384
        %v764 = vunpack.c.l.b16 %v385
        %v765 = vunpack.c.h.b16 %v385
        %v766 = vunpack.c.l.b16 %v386
        %v767 = vunpack.c.h.b16 %v386
        %v768 = vunpack.c.l.b16 %v387
        %v769 = vunpack.c.h.b16 %v387
        %v770 = vunpack.c.l.b16 %v388
        %v771 = vunpack.c.h.b16 %v388
        %v772 = vunpack.c.l.b16 %v389
        %v773 = vunpack.c.h.b16 %v389
        %v774 = vunpack.c.l.b16 %v390
        %v775 = vunpack.c.h.b16 %v390
        %v776 = vunpack.c.l.b16 %v391
        %v777 = vunpack.c.h.b16 %v391
        %v778 = vunpack.c.l.b16 %v392
        %v779 = vunpack.c.h.b16 %v392
        %v780 = vunpack.c.l.b16 %v393
        %v781 = vunpack.c.h.b16 %v393
        %v782 = vunpack.c.l.b16 %v394
        %v783 = vunpack.c.h.b16 %v394
        %v784 = vunpack.c.l.b16 %v395
        %v785 = vunpack.c.h.b16 %v395
        %v786 = vunpack.c.l.b16 %v396
        %v787 = vunpack.c.h.b16 %v396
        %v788 = vunpack.c.l.b16 %v397
        %v789 = vunpack.c.h.b16 %v397
        %v790 = vunpack.c.l.b16 %v398
        %v791 = vunpack.c.h.b16 %v398
        %v792 = vunpack.c.l.b16 %v399
        %v793 = vunpack.c.h.b16 %v399
        %v794 = vunpack.c.l.b16 %v400
        %v795 = vunpack.c.h.b16 %v400
        %v796 = vunpack.c.l.b16 %v401
        %v797 = vunpack.c.h.b16 %v401
        %v798 = vpack.c.b16 %v732, %v726
        %v799 = vpack.c.b16 %v733, %v727
        %v800 = vpack.c.b16 %v734, %v728
        %v801 = vpack.c.b16 %v735, %v729
        %v802 = vpack.c.b16 %v736, %v730
        %v803 = vpack.c.b16 %v737, %v731
        %v804 = vpack.c.b16 %v744, %v738
        %v805 = vpack.c.b16 %v745, %v739
        %v806 = vpack.c.b16 %v746, %v740
        %v807 = vpack.c.b16 %v747, %v741
        %v808 = vpack.c.b16 %v748, %v742
        %v809 = vpack.c.b16 %v749, %v743
        %v810 = vpack.c.b16 %v756, %v750
        %v811 = vpack.c.b16 %v757, %v751
        %v812 = vpack.c.b16 %v758, %v752
        %v813 = vpack.c.b16 %v759, %v753
        %v814 = vpack.c.b16 %v760, %v754
        %v815 = vpack.c.b16 %v761, %v755
        %v816 = vpack.c.b16 %v768, %v762
        %v817 = vpack.c.b16 %v769, %v763
        %v818 = vpack.c.b16 %v770, %v764
        %v819 = vpack.c.b16 %v771, %v765
        %v820 = vpack.c.b16 %v772, %v766
        %v821 = vpack.c.b16 %v773, %v767
        %v822 = vpack.c.b16 %v780, %v774
        %v823 = vpack.c.b16 %v781, %v775
        %v824 = vpack.c.b16 %v782, %v776
        %v825 = vpack.c.b16 %v783, %v777
        %v826 = vpack.c.b16 %v784, %v778
        %v827 = vpack.c.b16 %v785, %v779
        %v828 = vpack.c.b16 %v792, %v786
        %v829 = vpack.c.b16 %v793, %v787
        %v830 = vpack.c.b16 %v794, %v788
        %v831 = vpack.c.b16 %v795, %v789
        %v832 = vpack.c.b16 %v796, %v790
        %v833 = vpack.c.b16 %v797, %v791
        %v1158 = vunpack.c.l.b16 %v402
        %v1159 = vunpack.c.h.b16 %v402
        %v1160 = vunpack.c.l.b16 %v403
        %v1161 = vunpack.c.h.b16 %v403
        %v1162 = vunpack.c.l.b16 %v404
        %v1163 = vunpack.c.h.b16 %v404
        %v1164 = vunpack.c.l.b16 %v405
        %v1165 = vunpack.c.h.b16 %v405
        %v1166 = vunpack.c.l.b16 %v406
        %v1167 = vunpack.c.h.b16 %v406
        %v1168 = vunpack.c.l.b16 %v407
        %v1169 = vunpack.c.h.b16 %v407
        %v1170 = vunpack.c.l.b16 %v408
        %v1171 = vunpack.c.h.b16 %v408
        %v1172 = vunpack.c.l.b16 %v409
        %v1173 = vunpack.c.h.b16 %v409
        %v1174 = vunpack.c.l.b16 %v410
        %v1175 = vunpack.c.h.b16 %v410
        %v1176 = vunpack.c.l.b16 %v411
        %v1177 = vunpack.c.h.b16 %v411
        %v1178 = vunpack.c.l.b16 %v412
        %v1179 = vunpack.c.h.b16 %v412
        %v1180 = vunpack.c.l.b16 %v413
        %v1181 = vunpack.c.h.b16 %v413
        %v1182 = vunpack.c.l.b16 %v414
        %v1183 = vunpack.c.h.b16 %v414
        %v1184 = vunpack.c.l.b16 %v415
        %v1185 = vunpack.c.h.b16 %v415
        %v1186 = vunpack.c.l.b16 %v416
        %v1187 = vunpack.c.h.b16 %v416
        %v1188 = vunpack.c.l.b16 %v417
        %v1189 = vunpack.c.h.b16 %v417
        %v1190 = vunpack.c.l.b16 %v418
        %v1191 = vunpack.c.h.b16 %v418
        %v1192 = vunpack.c.l.b16 %v419
        %v1193 = vunpack.c.h.b16 %v419
        %v1194 = vunpack.c.l.b16 %v420
        %v1195 = vunpack.c.h.b16 %v420
        %v1196 = vunpack.c.l.b16 %v421
        %v1197 = vunpack.c.h.b16 %v421
        %v1198 = vunpack.c.l.b16 %v422
        %v1199 = vunpack.c.h.b16 %v422
        %v1200 = vunpack.c.l.b16 %v423
        %v1201 = vunpack.c.h.b16 %v423
        %v1202 = vunpack.c.l.b16 %v424
        %v1203 = vunpack.c.h.b16 %v424
        %v1204 = vunpack.c.l.b16 %v425
        %v1205 = vunpack.c.h.b16 %v425
        %v1206 = vunpack.c.l.b16 %v426
        %v1207 = vunpack.c.h.b16 %v426
        %v1208 = vunpack.c.l.b16 %v427
        %v1209 = vunpack.c.h.b16 %v427
        %v1210 = vunpack.c.l.b16 %v428
        %v1211 = vunpack.c.h.b16 %v428
        %v1212 = vunpack.c.l.b16 %v429
        %v1213 = vunpack.c.h.b16 %v429
        %v1214 = vunpack.c.l.b16 %v430
        %v1215 = vunpack.c.h.b16 %v430
        %v1216 = vunpack.c.l.b16 %v431
        %v1217 = vunpack.c.h.b16 %v431
        %v1218 = vunpack.c.l.b16 %v432
        %v1219 = vunpack.c.h.b16 %v432
        %v1220 = vunpack.c.l.b16 %v433
        %v1221 = vunpack.c.h.b16 %v433
        %v1222 = vunpack.c.l.b16 %v434
        %v1223 = vunpack.c.h.b16 %v434
        %v1224 = vunpack.c.l.b16 %v435
        %v1225 = vunpack.c.h.b16 %v435
        %v1226 = vunpack.c.l.b16 %v436
        %v1227 = vunpack.c.h.b16 %v436
        %v1228 = vunpack.c.l.b16 %v437
        %v1229 = vunpack.c.h.b16 %v437
        %v1230 = vunpack.c.l.b16 %v438
        %v1231 = vunpack.c.h.b16 %v438
        %v1232 = vunpack.c.l.b16 %v439
        %v1233 = vunpack.c.h.b16 %v439
        %v1234 = vunpack.c.l.b16 %v440
        %v1235 = vunpack.c.h.b16 %v440
        %v1236 = vunpack.c.l.b16 %v441
        %v1237 = vunpack.c.h.b16 %v441
        %v1238 = vunpack.c.l.b16 %v442
        %v1239 = vunpack.c.h.b16 %v442
        %v1240 = vunpack.c.l.b16 %v443
        %v1241 = vunpack.c.h.b16 %v443
        %v1242 = vunpack.c.l.b16 %v444
        %v1243 = vunpack.c.h.b16 %v444
        %v1244 = vunpack.c.l.b16 %v445
        %v1245 = vunpack.c.h.b16 %v445
        %v1246 = vunpack.c.l.b16 %v446
        %v1247 = vunpack.c.h.b16 %v446
        %v1248 = vunpack.c.l.b16 %v447
        %v1249 = vunpack.c.h.b16 %v447
        %v1250 = vunpack.c.l.b16 %v448
        %v1251 = vunpack.c.h.b16 %v448
        %v1252 = vunpack.c.l.b16 %v449
        %v1253 = vunpack.c.h.b16 %v449
        %v1254 = vunpack.c.l.b16 %v450
        %v1255 = vunpack.c.h.b16 %v450
        %v1256 = vunpack.c.l.b16 %v451
        %v1257 = vunpack.c.h.b16 %v451
        %v1258 = vunpack.c.l.b16 %v452
        %v1259 = vunpack.c.h.b16 %v452
        %v1260 = vunpack.c.l.b16 %v453
        %v1261 = vunpack.c.h.b16 %v453
        %v1262 = vunpack.c.l.b16 %v454
        %v1263 = vunpack.c.h.b16 %v454
        %v1264 = vunpack.c.l.b16 %v455
        %v1265 = vunpack.c.h.b16 %v455
        %v1266 = vunpack.c.l.b16 %v456
        %v1267 = vunpack.c.h.b16 %v456
        %v1268 = vunpack.c.l.b16 %v457
        %v1269 = vunpack.c.h.b16 %v457
        %v1270 = vunpack.c.l.b16 %v458
        %v1271 = vunpack.c.h.b16 %v458
        %v1272 = vunpack.c.l.b16 %v459
        %v1273 = vunpack.c.h.b16 %v459
        %v1274 = vunpack.c.l.b16 %v460
        %v1275 = vunpack.c.h.b16 %v460
        %v1276 = vunpack.c.l.b16 %v461
        %v1277 = vunpack.c.h.b16 %v461
        %v1278 = vunpack.c.l.b16 %v462
        %v1279 = vunpack.c.h.b16 %v462
        %v1280 = vunpack.c.l.b16 %v463
        %v1281 = vunpack.c.h.b16 %v463
        %v1282 = vunpack.c.l.b16 %v464
        %v1283 = vunpack.c.h.b16 %v464
        %v1284 = vunpack.c.l.b16 %v465
        %v1285 = vunpack.c.h.b16 %v465
        %v1286 = vunpack.c.l.b16 %v466
        %v1287 = vunpack.c.h.b16 %v466
        %v1288 = vunpack.c.l.b16 %v467
        %v1289 = vunpack.c.h.b16 %v467
        %v1290 = vunpack.c.l.b16 %v468
        %v1291 = vunpack.c.h.b16 %v468
        %v1292 = vunpack.c.l.b16 %v469
        %v1293 = vunpack.c.h.b16 %v469
        %v1294 = vunpack.c.l.b16 %v470
        %v1295 = vunpack.c.h.b16 %v470
        %v1296 = vunpack.c.l.b16 %v471
        %v1297 = vunpack.c.h.b16 %v471
        %v1298 = vunpack.c.l.b16 %v472
        %v1299 = vunpack.c.h.b16 %v472
        %v1300 = vunpack.c.l.b16 %v473
        %v1301 = vunpack.c.h.b16 %v473
        %v1302 = vunpack.c.l.b16 %v474
        %v1303 = vunpack.c.h.b16 %v474
        %v1304 = vunpack.c.l.b16 %v475
        %v1305 = vunpack.c.h.b16 %v475
        %v1306 = vunpack.c.l.b16 %v476
        %v1307 = vunpack.c.h.b16 %v476
        %v1308 = vunpack.c.l.b16 %v477
        %v1309 = vunpack.c.h.b16 %v477
        %v1310 = vunpack.c.l.b16 %v478
        %v1311 = vunpack.c.h.b16 %v478
        %v1312 = vunpack.c.l.b16 %v479
        %v1313 = vunpack.c.h.b16 %v479
        %v1314 = vunpack.c.l.b16 %v480
        %v1315 = vunpack.c.h.b16 %v480
        %v1316 = vunpack.c.l.b16 %v481
        %v1317 = vunpack.c.h.b16 %v481
        %v1318 = vunpack.c.l.b16 %v482
        %v1319 = vunpack.c.h.b16 %v482
        %v1320 = vunpack.c.l.b16 %v483
        %v1321 = vunpack.c.h.b16 %v483
        %v1322 = vunpack.c.l.b16 %v484
        %v1323 = vunpack.c.h.b16 %v484
        %v1324 = vunpack.c.l.b16 %v485
        %v1325 = vunpack.c.h.b16 %v485
        %v1326 = vunpack.c.l.b16 %v486
        %v1327 = vunpack.c.h.b16 %v486
        %v1328 = vunpack.c.l.b16 %v487
        %v1329 = vunpack.c.h.b16 %v487
        %v1330 = vunpack.c.l.b16 %v488
        %v1331 = vunpack.c.h.b16 %v488
        %v1332 = vunpack.c.l.b16 %v489
        %v1333 = vunpack.c.h.b16 %v489
        %v1334 = vunpack.c.l.b16 %v490
        %v1335 = vunpack.c.h.b16 %v490
        %v1336 = vunpack.c.l.b16 %v491
        %v1337 = vunpack.c.h.b16 %v491
        %v1338 = vunpack.c.l.b16 %v492
        %v1339 = vunpack.c.h.b16 %v492
        %v1340 = vunpack.c.l.b16 %v493
        %v1341 = vunpack.c.h.b16 %v493
        %v1342 = vunpack.c.l.b16 %v494
        %v1343 = vunpack.c.h.b16 %v494
        %v1344 = vunpack.c.l.b16 %v495
        %v1345 = vunpack.c.h.b16 %v495
        %v1346 = vunpack.c.l.b16 %v496
        %v1347 = vunpack.c.h.b16 %v496
        %v1348 = vunpack.c.l.b16 %v497
        %v1349 = vunpack.c.h.b16 %v497
        %v1350 = vunpack.c.l.b16 %v498
        %v1351 = vunpack.c.h.b16 %v498
        %v1352 = vunpack.c.l.b16 %v499
        %v1353 = vunpack.c.h.b16 %v499
        %v1354 = vunpack.c.l.b16 %v500
        %v1355 = vunpack.c.h.b16 %v500
        %v1356 = vunpack.c.l.b16 %v501
        %v1357 = vunpack.c.h.b16 %v501
        %v1358 = vunpack.c.l.b16 %v502
        %v1359 = vunpack.c.h.b16 %v502
        %v1360 = vunpack.c.l.b16 %v503
        %v1361 = vunpack.c.h.b16 %v503
        %v1362 = vunpack.c.l.b16 %v504
        %v1363 = vunpack.c.h.b16 %v504
        %v1364 = vunpack.c.l.b16 %v505
        %v1365 = vunpack.c.h.b16 %v505
        %v1366 = vunpack.c.l.b16 %v506
        %v1367 = vunpack.c.h.b16 %v506
        %v1368 = vunpack.c.l.b16 %v507
        %v1369 = vunpack.c.h.b16 %v507
        %v1370 = vunpack.c.l.b16 %v508
        %v1371 = vunpack.c.h.b16 %v508
        %v1372 = vunpack.c.l.b16 %v509
        %v1373 = vunpack.c.h.b16 %v509
        %v1374 = vunpack.c.l.b16 %v510
        %v1375 = vunpack.c.h.b16 %v510
        %v1376 = vunpack.c.l.b16 %v511
        %v1377 = vunpack.c.h.b16 %v511
        %v1378 = vunpack.c.l.b16 %v512
        %v1379 = vunpack.c.h.b16 %v512
        %v1380 = vunpack.c.l.b16 %v513
        %v1381 = vunpack.c.h.b16 %v513
        %v1382 = vunpack.c.l.b16 %v514
        %v1383 = vunpack.c.h.b16 %v514
        %v1384 = vunpack.c.l.b16 %v515
        %v1385 = vunpack.c.h.b16 %v515
        %v1386 = vunpack.c.l.b16 %v516
        %v1387 = vunpack.c.h.b16 %v516
        %v1388 = vunpack.c.l.b16 %v517
        %v1389 = vunpack.c.h.b16 %v517
        %v1390 = vunpack.c.l.b16 %v518
        %v1391 = vunpack.c.h.b16 %v518
        %v1392 = vunpack.c.l.b16 %v519
        %v1393 = vunpack.c.h.b16 %v519
        %v1394 = vunpack.c.l.b16 %v520
        %v1395 = vunpack.c.h.b16 %v520
        %v1396 = vunpack.c.l.b16 %v521
        %v1397 = vunpack.c.h.b16 %v521
        %v1398 = vunpack.c.l.b16 %v522
        %v1399 = vunpack.c.h.b16 %v522
        %v1400 = vunpack.c.l.b16 %v523
        %v1401 = vunpack.c.h.b16 %v523
        %v1402 = vunpack.c.l.b16 %v524
        %v1403 = vunpack.c.h.b16 %v524
        %v1404 = vunpack.c.l.b16 %v525
        %v1405 = vunpack.c.h.b16 %v525
        %v1406 = vunpack.c.l.b16 %v526
        %v1407 = vunpack.c.h.b16 %v526
        %v1408 = vunpack.c.l.b16 %v527
        %v1409 = vunpack.c.h.b16 %v527
        %v1410 = vunpack.c.l.b16 %v528
        %v1411 = vunpack.c.h.b16 %v528
        %v1412 = vunpack.c.l.b16 %v529
        %v1413 = vunpack.c.h.b16 %v529
        %v1414 = vunpack.c.l.b16 %v530
        %v1415 = vunpack.c.h.b16 %v530
        %v1416 = vunpack.c.l.b16 %v531
        %v1417 = vunpack.c.h.b16 %v531
        %v1418 = vunpack.c.l.b16 %v532
        %v1419 = vunpack.c.h.b16 %v532
        %v1420 = vunpack.c.l.b16 %v533
        %v1421 = vunpack.c.h.b16 %v533
        %v1422 = vunpack.c.l.b16 %v534
        %v1423 = vunpack.c.h.b16 %v534
        %v1424 = vunpack.c.l.b16 %v535
        %v1425 = vunpack.c.h.b16 %v535
        %v1426 = vunpack.c.l.b16 %v536
        %v1427 = vunpack.c.h.b16 %v536
        %v1428 = vunpack.c.l.b16 %v537
        %v1429 = vunpack.c.h.b16 %v537
        %v1430 = vunpack.c.l.b16 %v538
        %v1431 = vunpack.c.h.b16 %v538
        %v1432 = vunpack.c.l.b16 %v539
        %v1433 = vunpack.c.h.b16 %v539
        %v1434 = vunpack.c.l.b16 %v540
        %v1435 = vunpack.c.h.b16 %v540
        %v1436 = vunpack.c.l.b16 %v541
        %v1437 = vunpack.c.h.b16 %v541
        %v1438 = vunpack.c.l.b16 %v542
        %v1439 = vunpack.c.h.b16 %v542
        %v1440 = vunpack.c.l.b16 %v543
        %v1441 = vunpack.c.h.b16 %v543
        %v1442 = vunpack.c.l.b16 %v544
        %v1443 = vunpack.c.h.b16 %v544
        %v1444 = vunpack.c.l.b16 %v545
        %v1445 = vunpack.c.h.b16 %v545
        %v1446 = vunpack.c.l.b16 %v546
        %v1447 = vunpack.c.h.b16 %v546
        %v1448 = vunpack.c.l.b16 %v547
        %v1449 = vunpack.c.h.b16 %v547
        %v1450 = vunpack.c.l.b16 %v548
        %v1451 = vunpack.c.h.b16 %v548
        %v1452 = vunpack.c.l.b16 %v549
        %v1453 = vunpack.c.h.b16 %v549
        %v1454 = vunpack.c.l.b16 %v550
        %v1455 = vunpack.c.h.b16 %v550
        %v1456 = vunpack.c.l.b16 %v551
        %v1457 = vunpack.c.h.b16 %v551
        %v1458 = vunpack.c.l.b16 %v552
        %v1459 = vunpack.c.h.b16 %v552
        %v1460 = vunpack.c.l.b16 %v553
        %v1461 = vunpack.c.h.b16 %v553
        %v1462 = vunpack.c.l.b16 %v554
        %v1463 = vunpack.c.h.b16 %v554
        %v1464 = vunpack.c.l.b16 %v555
        %v1465 = vunpack.c.h.b16 %v555
        %v1466 = vunpack.c.l.b16 %v556
        %v1467 = vunpack.c.h.b16 %v556
        %v1468 = vunpack.c.l.b16 %v557
        %v1469 = vunpack.c.h.b16 %v557
        %v1470 = vunpack.c.l.b16 %v558
        %v1471 = vunpack.c.h.b16 %v558
        %v1472 = vunpack.c.l.b16 %v559
        %v1473 = vunpack.c.h.b16 %v559
        %v1474 = vunpack.c.l.b16 %v560
        %v1475 = vunpack.c.h.b16 %v560
        %v1476 = vunpack.c.l.b16 %v561
        %v1477 = vunpack.c.h.b16 %v561
        %v1478 = vunpack.c.l.b16 %v562
        %v1479 = vunpack.c.h.b16 %v562
        %v1480 = vunpack.c.l.b16 %v563
        %v1481 = vunpack.c.h.b16 %v563
        %v1482 = vunpack.c.l.b16 %v564
        %v1483 = vunpack.c.h.b16 %v564
        %v1484 = vunpack.c.l.b16 %v565
        %v1485 = vunpack.c.h.b16 %v565
        %v1486 = vunpack.c.l.b16 %v566
        %v1487 = vunpack.c.h.b16 %v566
        %v1488 = vunpack.c.l.b16 %v567
        %v1489 = vunpack.c.h.b16 %v567
        %v1490 = vunpack.c.l.b16 %v568
        %v1491 = vunpack.c.h.b16 %v568
        %v1492 = vunpack.c.l.b16 %v569
        %v1493 = vunpack.c.h.b16 %v569
        %v1494 = vunpack.c.l.b16 %v570
        %v1495 = vunpack.c.h.b16 %v570
        %v1496 = vunpack.c.l.b16 %v571
        %v1497 = vunpack.c.h.b16 %v571
        %v1498 = vunpack.c.l.b16 %v572
        %v1499 = vunpack.c.h.b16 %v572
        %v1500 = vunpack.c.l.b16 %v573
        %v1501 = vunpack.c.h.b16 %v573
        %v1502 = vunpack.c.l.b16 %v574
        %v1503 = vunpack.c.h.b16 %v574
        %v1504 = vunpack.c.l.b16 %v575
        %v1505 = vunpack.c.h.b16 %v575
        %v1506 = vunpack.c.l.b16 %v576
        %v1507 = vunpack.c.h.b16 %v576
        %v1508 = vunpack.c.l.b16 %v577
        %v1509 = vunpack.c.h.b16 %v577
        %v1510 = vunpack.c.l.b16 %v578
        %v1511 = vunpack.c.h.b16 %v578
        %v1512 = vunpack.c.l.b16 %v579
        %v1513 = vunpack.c.h.b16 %v579
        %v1514 = vunpack.c.l.b16 %v580
        %v1515 = vunpack.c.h.b16 %v580
        %v1516 = vunpack.c.l.b16 %v581
        %v1517 = vunpack.c.h.b16 %v581
        %v1518 = vunpack.c.l.b16 %v582
        %v1519 = vunpack.c.h.b16 %v582
        %v1520 = vunpack.c.l.b16 %v583
        %v1521 = vunpack.c.h.b16 %v583
        %v1522 = vunpack.c.l.b16 %v584
        %v1523 = vunpack.c.h.b16 %v584
        %v1524 = vunpack.c.l.b16 %v585
        %v1525 = vunpack.c.h.b16 %v585
        %v1526 = vunpack.c.l.b16 %v586
        %v1527 = vunpack.c.h.b16 %v586
        %v1528 = vunpack.c.l.b16 %v587
        %v1529 = vunpack.c.h.b16 %v587
        %v1530 = vunpack.c.l.b16 %v588
        %v1531 = vunpack.c.h.b16 %v588
        %v1532 = vunpack.c.l.b16 %v589
        %v1533 = vunpack.c.h.b16 %v589
        %v1534 = vunpack.c.l.b16 %v590
        %v1535 = vunpack.c.h.b16 %v590
        %v1536 = vunpack.c.l.b16 %v591
        %v1537 = vunpack.c.h.b16 %v591
        %v1538 = vunpack.c.l.b16 %v592
        %v1539 = vunpack.c.h.b16 %v592
        %v1540 = vunpack.c.l.b16 %v593
        %v1541 = vunpack.c.h.b16 %v593
        %v1542 = vunpack.c.l.b16 %v594
        %v1543 = vunpack.c.h.b16 %v594
        %v1544 = vunpack.c.l.b16 %v595
        %v1545 = vunpack.c.h.b16 %v595
        %v1546 = vunpack.c.l.b16 %v596
        %v1547 = vunpack.c.h.b16 %v596
        %v1548 = vunpack.c.l.b16 %v597
        %v1549 = vunpack.c.h.b16 %v597
        %v1550 = vunpack.c.l.b16 %v598
        %v1551 = vunpack.c.h.b16 %v598
        %v1552 = vunpack.c.l.b16 %v599
        %v1553 = vunpack.c.h.b16 %v599
        %v1554 = vunpack.c.l.b16 %v600
        %v1555 = vunpack.c.h.b16 %v600
        %v1556 = vunpack.c.l.b16 %v601
        %v1557 = vunpack.c.h.b16 %v601
        %v1558 = vunpack.c.l.b16 %v602
        %v1559 = vunpack.c.h.b16 %v602
        %v1560 = vunpack.c.l.b16 %v603
        %v1561 = vunpack.c.h.b16 %v603
        %v1562 = vunpack.c.l.b16 %v604
        %v1563 = vunpack.c.h.b16 %v604
        %v1564 = vunpack.c.l.b16 %v605
        %v1565 = vunpack.c.h.b16 %v605
        %v1566 = vunpack.c.l.b16 %v606
        %v1567 = vunpack.c.h.b16 %v606
        %v1568 = vunpack.c.l.b16 %v607
        %v1569 = vunpack.c.h.b16 %v607
        %v1570 = vunpack.c.l.b16 %v608
        %v1571 = vunpack.c.h.b16 %v608
        %v1572 = vunpack.c.l.b16 %v609
        %v1573 = vunpack.c.h.b16 %v609
        %v1574 = vunpack.c.l.b16 %v610
        %v1575 = vunpack.c.h.b16 %v610
        %v1576 = vunpack.c.l.b16 %v611
        %v1577 = vunpack.c.h.b16 %v611
        %v1578 = vunpack.c.l.b16 %v612
        %v1579 = vunpack.c.h.b16 %v612
        %v1580 = vunpack.c.l.b16 %v613
        %v1581 = vunpack.c.h.b16 %v613
        %v1582 = vunpack.c.l.b16 %v614
        %v1583 = vunpack.c.h.b16 %v614
        %v1584 = vunpack.c.l.b16 %v615
        %v1585 = vunpack.c.h.b16 %v615
        %v1586 = vunpack.c.l.b16 %v616
        %v1587 = vunpack.c.h.b16 %v616
        %v1588 = vunpack.c.l.b16 %v617
        %v1589 = vunpack.c.h.b16 %v617
        %v1590 = vunpack.c.l.b16 %v618
        %v1591 = vunpack.c.h.b16 %v618
        %v1592 = vunpack.c.l.b16 %v619
        %v1593 = vunpack.c.h.b16 %v619
        %v1594 = vunpack.c.l.b16 %v620
        %v1595 = vunpack.c.h.b16 %v620
        %v1596 = vunpack.c.l.b16 %v621
        %v1597 = vunpack.c.h.b16 %v621
        %v1598 = vunpack.c.l.b16 %v622
        %v1599 = vunpack.c.h.b16 %v622
        %v1600 = vunpack.c.l.b16 %v623
        %v1601 = vunpack.c.h.b16 %v623
        %v1602 = vunpack.c.l.b16 %v624
        %v1603 = vunpack.c.h.b16 %v624
        %v1604 = vunpack.c.l.b16 %v625
        %v1605 = vunpack.c.h.b16 %v625
        %v1606 = vunpack.c.l.b16 %v626
        %v1607 = vunpack.c.h.b16 %v626
        %v1608 = vunpack.c.l.b16 %v627
        %v1609 = vunpack.c.h.b16 %v627
        %v1610 = vunpack.c.l.b16 %v628
        %v1611 = vunpack.c.h.b16 %v628
        %v1612 = vunpack.c.l.b16 %v629
        %v1613 = vunpack.c.h.b16 %v629
        %v1614 = vunpack.c.l.b16 %v630
        %v1615 = vunpack.c.h.b16 %v630
        %v1616 = vunpack.c.l.b16 %v631
        %v1617 = vunpack.c.h.b16 %v631
        %v1618 = vunpack.c.l.b16 %v632
        %v1619 = vunpack.c.h.b16 %v632
        %v1620 = vunpack.c.l.b16 %v633
        %v1621 = vunpack.c.h.b16 %v633
        %v1622 = vunpack.c.l.b16 %v634
        %v1623 = vunpack.c.h.b16 %v634
        %v1624 = vunpack.c.l.b16 %v635
        %v1625 = vunpack.c.h.b16 %v635
        %v1626 = vunpack.c.l.b16 %v636
        %v1627 = vunpack.c.h.b16 %v636
        %v1628 = vunpack.c.l.b16 %v637
        %v1629 = vunpack.c.h.b16 %v637
        %v1630 = vunpack.c.l.b16 %v638
        %v1631 = vunpack.c.h.b16 %v638
        %v1632 = vunpack.c.l.b16 %v639
        %v1633 = vunpack.c.h.b16 %v639
        %v1634 = vunpack.c.l.b16 %v640
        %v1635 = vunpack.c.h.b16 %v640
        %v1636 = vunpack.c.l.b16 %v641
        %v1637 = vunpack.c.h.b16 %v641
        %v1638 = vunpack.c.l.b16 %v642
        %v1639 = vunpack.c.h.b16 %v642
        %v1640 = vunpack.c.l.b16 %v643
        %v1641 = vunpack.c.h.b16 %v643
        %v1642 = vunpack.c.l.b16 %v644
        %v1643 = vunpack.c.h.b16 %v644
        %v1644 = vunpack.c.l.b16 %v645
        %v1645 = vunpack.c.h.b16 %v645
        %v1646 = vunpack.c.l.b16 %v646
        %v1647 = vunpack.c.h.b16 %v646
        %v1648 = vunpack.c.l.b16 %v647
        %v1649 = vunpack.c.h.b16 %v647
        %v1650 = vunpack.c.l.b16 %v648
        %v1651 = vunpack.c.h.b16 %v648
        %v1652 = vunpack.c.l.b16 %v649
        %v1653 = vunpack.c.h.b16 %v649
        %v1654 = vunpack.c.l.b16 %v650
        %v1655 = vunpack.c.h.b16 %v650
        %v1656 = vunpack.c.l.b16 %v651
        %v1657 = vunpack.c.h.b16 %v651
        %v1658 = vunpack.c.l.b16 %v652
        %v1659 = vunpack.c.h.b16 %v652
        %v1660 = vunpack.c.l.b16 %v653
        %v1661 = vunpack.c.h.b16 %v653
        %v1662 = vunpack.c.l.b16 %v654
        %v1663 = vunpack.c.h.b16 %v654
        %v1664 = vunpack.c.l.b16 %v655
        %v1665 = vunpack.c.h.b16 %v655
        %v1666 = vunpack.c.l.b16 %v656
        %v1667 = vunpack.c.h.b16 %v656
        %v1668 = vunpack.c.l.b16 %v657
        %v1669 = vunpack.c.h.b16 %v657
        %v1670 = vunpack.c.l.b16 %v658
        %v1671 = vunpack.c.h.b16 %v658
        %v1672 = vunpack.c.l.b16 %v659
        %v1673 = vunpack.c.h.b16 %v659
        %v1674 = vunpack.c.l.b16 %v660
        %v1675 = vunpack.c.h.b16 %v660
        %v1676 = vunpack.c.l.b16 %v661
        %v1677 = vunpack.c.h.b16 %v661
        %v1678 = vunpack.c.l.b16 %v662
        %v1679 = vunpack.c.h.b16 %v662
        %v1680 = vunpack.c.l.b16 %v663
        %v1681 = vunpack.c.h.b16 %v663
        %v1682 = vunpack.c.l.b16 %v664
        %v1683 = vunpack.c.h.b16 %v664
        %v1684 = vunpack.c.l.b16 %v665
        %v1685 = vunpack.c.h.b16 %v665
        %v1686 = vunpack.c.l.b16 %v666
        %v1687 = vunpack.c.h.b16 %v666
        %v1688 = vunpack.c.l.b16 %v667
        %v1689 = vunpack.c.h.b16 %v667
        %v1690 = vunpack.c.l.b16 %v668
        %v1691 = vunpack.c.h.b16 %v668
        %v1692 = vunpack.c.l.b16 %v669
        %v1693 = vunpack.c.h.b16 %v669
        %v1694 = vunpack.c.l.b16 %v670
        %v1695 = vunpack.c.h.b16 %v670
        %v1696 = vunpack.c.l.b16 %v671
        %v1697 = vunpack.c.h.b16 %v671
        %v1698 = vunpack.c.l.b16 %v672
        %v1699 = vunpack.c.h.b16 %v672
        %v1700 = vunpack.c.l.b16 %v673
        %v1701 = vunpack.c.h.b16 %v673
        %v1702 = vunpack.c.l.b16 %v674
        %v1703 = vunpack.c.h.b16 %v674
        %v1704 = vunpack.c.l.b16 %v675
        %v1705 = vunpack.c.h.b16 %v675
        %v1706 = vunpack.c.l.b16 %v676
        %v1707 = vunpack.c.h.b16 %v676
        %v1708 = vunpack.c.l.b16 %v677
        %v1709 = vunpack.c.h.b16 %v677
        %v1710 = vunpack.c.l.b16 %v678
        %v1711 = vunpack.c.h.b16 %v678
        %v1712 = vunpack.c.l.b16 %v679
        %v1713 = vunpack.c.h.b16 %v679
        %v1714 = vunpack.c.l.b16 %v680
        %v1715 = vunpack.c.h.b16 %v680
        %v1716 = vunpack.c.l.b16 %v681
        %v1717 = vunpack.c.h.b16 %v681
        %v1718 = vunpack.c.l.b16 %v682
        %v1719 = vunpack.c.h.b16 %v682
        %v1720 = vunpack.c.l.b16 %v683
        %v1721 = vunpack.c.h.b16 %v683
        %v1722 = vunpack.c.l.b16 %v684
        %v1723 = vunpack.c.h.b16 %v684
        %v1724 = vunpack.c.l.b16 %v685
        %v1725 = vunpack.c.h.b16 %v685
        %v1726 = vunpack.c.l.b16 %v686
        %v1727 = vunpack.c.h.b16 %v686
        %v1728 = vunpack.c.l.b16 %v687
        %v1729 = vunpack.c.h.b16 %v687
        %v1730 = vunpack.c.l.b16 %v688
        %v1731 = vunpack.c.h.b16 %v688
        %v1732 = vunpack.c.l.b16 %v689
        %v1733 = vunpack.c.h.b16 %v689
        %v1734 = vpack.c.b16 %v1164, %v1158
        %v1735 = vpack.c.b16 %v1165, %v1159
        %v1736 = vpack.c.b16 %v1166, %v1160
        %v1737 = vpack.c.b16 %v1167, %v1161
        %v1738 = vpack.c.b16 %v1168, %v1162
        %v1739 = vpack.c.b16 %v1169, %v1163
        %v1740 = vpack.c.b16 %v1176, %v1170
        %v1741 = vpack.c.b16 %v1177, %v1171
        %v1742 = vpack.c.b16 %v1178, %v1172
        %v1743 = vpack.c.b16 %v1179, %v1173
        %v1744 = vpack.c.b16 %v1180, %v1174
        %v1745 = vpack.c.b16 %v1181, %v1175
        %v1746 = vpack.c.b16 %v1188, %v1182
        %v1747 = vpack.c.b16 %v1189, %v1183
        %v1748 = vpack.c.b16 %v1190, %v1184
        %v1749 = vpack.c.b16 %v1191, %v1185
        %v1750 = vpack.c.b16 %v1192, %v1186
        %v1751 = vpack.c.b16 %v1193, %v1187
        %v1752 = vpack.c.b16 %v1200, %v1194
        %v1753 = vpack.c.b16 %v1201, %v1195
        %v1754 = vpack.c.b16 %v1202, %v1196
        %v1755 = vpack.c.b16 %v1203, %v1197
        %v1756 = vpack.c.b16 %v1204, %v1198
        %v1757 = vpack.c.b16 %v1205, %v1199
        %v1758 = vpack.c.b16 %v1212, %v1206
        %v1759 = vpack.c.b16 %v1213, %v1207
        %v1760 = vpack.c.b16 %v1214, %v1208
        %v1761 = vpack.c.b16 %v1215, %v1209
        %v1762 = vpack.c.b16 %v1216, %v1210
        %v1763 = vpack.c.b16 %v1217, %v1211
        %v1764 = vpack.c.b16 %v1224, %v1218
        %v1765 = vpack.c.b16 %v1225, %v1219
        %v1766 = vpack.c.b16 %v1226, %v1220
        %v1767 = vpack.c.b16 %v1227, %v1221
        %v1768 = vpack.c.b16 %v1228, %v1222
        %v1769 = vpack.c.b16 %v1229, %v1223
        %v1770 = vpack.c.b16 %v1236, %v1230
        %v1771 = vpack.c.b16 %v1237, %v1231
        %v1772 = vpack.c.b16 %v1238, %v1232
        %v1773 = vpack.c.b16 %v1239, %v1233
        %v1774 = vpack.c.b16 %v1240, %v1234
        %v1775 = vpack.c.b16 %v1241, %v1235
        %v1776 = vpack.c.b16 %v1248, %v1242
        %v1777 = vpack.c.b16 %v1249, %v1243
        %v1778 = vpack.c.b16 %v1250, %v1244
        %v1779 = vpack.c.b16 %v1251, %v1245
        %v1780 = vpack.c.b16 %v1252, %v1246
        %v1781 = vpack.c.b16 %v1253, %v1247
        %v1782 = vpack.c.b16 %v1260, %v1254
        %v1783 = vpack.c.b16 %v1261, %v1255
        %v1784 = vpack.c.b16 %v1262, %v1256
        %v1785 = vpack.c.b16 %v1263, %v1257
        %v1786 = vpack.c.b16 %v1264, %v1258
        %v1787 = vpack.c.b16 %v1265, %v1259
        %v1788 = vpack.c.b16 %v1272, %v1266
        %v1789 = vpack.c.b16 %v1273, %v1267
        %v1790 = vpack.c.b16 %v1274, %v1268
        %v1791 = vpack.c.b16 %v1275, %v1269
        %v1792 = vpack.c.b16 %v1276, %v1270
        %v1793 = vpack.c.b16 %v1277, %v1271
        %v1794 = vpack.c.b16 %v1284, %v1278
        %v1795 = vpack.c.b16 %v1285, %v1279
        %v1796 = vpack.c.b16 %v1286, %v1280
        %v1797 = vpack.c.b16 %v1287, %v1281
        %v1798 = vpack.c.b16 %v1288, %v1282
        %v1799 = vpack.c.b16 %v1289, %v1283
        %v1800 = vpack.c.b16 %v1296, %v1290
        %v1801 = vpack.c.b16 %v1297, %v1291
        %v1802 = vpack.c.b16 %v1298, %v1292
        %v1803 = vpack.c.b16 %v1299, %v1293
        %v1804 = vpack.c.b16 %v1300, %v1294
        %v1805 = vpack.c.b16 %v1301, %v1295
        %v1806 = vpack.c.b16 %v1308, %v1302
        %v1807 = vpack.c.b16 %v1309, %v1303
        %v1808 = vpack.c.b16 %v1310, %v1304
        %v1809 = vpack.c.b16 %v1311, %v1305
        %v1810 = vpack.c.b16 %v1312, %v1306
        %v1811 = vpack.c.b16 %v1313, %v1307
        %v1812 = vpack.c.b16 %v1320, %v1314
        %v1813 = vpack.c.b16 %v1321, %v1315
        %v1814 = vpack.c.b16 %v1322, %v1316
        %v1815 = vpack.c.b16 %v1323, %v1317
        %v1816 = vpack.c.b16 %v1324, %v1318
        %v1817 = vpack.c.b16 %v1325, %v1319
        %v1818 = vpack.c.b16 %v1332, %v1326
        %v1819 = vpack.c.b16 %v1333, %v1327
        %v1820 = vpack.c.b16 %v1334, %v1328
        %v1821 = vpack.c.b16 %v1335, %v1329
        %v1822 = vpack.c.b16 %v1336, %v1330
        %v1823 = vpack.c.b16 %v1337, %v1331
        %v1824 = vpack.c.b16 %v1344, %v1338
        %v1825 = vpack.c.b16 %v1345, %v1339
        %v1826 = vpack.c.b16 %v1346, %v1340
        %v1827 = vpack.c.b16 %v1347, %v1341
        %v1828 = vpack.c.b16 %v1348, %v1342
        %v1829 = vpack.c.b16 %v1349, %v1343
        %v1830 = vpack.c.b16 %v1356, %v1350
        %v1831 = vpack.c.b16 %v1357, %v1351
        %v1832 = vpack.c.b16 %v1358, %v1352
        %v1833 = vpack.c.b16 %v1359, %v1353
        %v1834 = vpack.c.b16 %v1360, %v1354
        %v1835 = vpack.c.b16 %v1361, %v1355
        %v1836 = vpack.c.b16 %v1368, %v1362
        %v1837 = vpack.c.b16 %v1369, %v1363
        %v1838 = vpack.c.b16 %v1370, %v1364
        %v1839 = vpack.c.b16 %v1371, %v1365
        %v1840 = vpack.c.b16 %v1372, %v1366
        %v1841 = vpack.c.b16 %v1373, %v1367
        %v1842 = vpack.c.b16 %v1380, %v1374
        %v1843 = vpack.c.b16 %v1381, %v1375
        %v1844 = vpack.c.b16 %v1382, %v1376
        %v1845 = vpack.c.b16 %v1383, %v1377
        %v1846 = vpack.c.b16 %v1384, %v1378
        %v1847 = vpack.c.b16 %v1385, %v1379
        %v1848 = vpack.c.b16 %v1392, %v1386
        %v1849 = vpack.c.b16 %v1393, %v1387
        %v1850 = vpack.c.b16 %v1394, %v1388
        %v1851 = vpack.c.b16 %v1395, %v1389
        %v1852 = vpack.c.b16 %v1396, %v1390
        %v1853 = vpack.c.b16 %v1397, %v1391
        %v1854 = vpack.c.b16 %v1404, %v1398
        %v1855 = vpack.c.b16 %v1405, %v1399
        %v1856 = vpack.c.b16 %v1406, %v1400
        %v1857 = vpack.c.b16 %v1407, %v1401
        %v1858 = vpack.c.b16 %v1408, %v1402
        %v1859 = vpack.c.b16 %v1409, %v1403
        %v1860 = vpack.c.b16 %v1416, %v1410
        %v1861 = vpack.c.b16 %v1417, %v1411
        %v1862 = vpack.c.b16 %v1418, %v1412
        %v1863 = vpack.c.b16 %v1419, %v1413
        %v1864 = vpack.c.b16 %v1420, %v1414
        %v1865 = vpack.c.b16 %v1421, %v1415
        %v1866 = vpack.c.b16 %v1428, %v1422
        %v1867 = vpack.c.b16 %v1429, %v1423
        %v1868 = vpack.c.b16 %v1430, %v1424
        %v1869 = vpack.c.b16 %v1431, %v1425
        %v1870 = vpack.c.b16 %v1432, %v1426
        %v1871 = vpack.c.b16 %v1433, %v1427
        %v1872 = vpack.c.b16 %v1440, %v1434
        %v1873 = vpack.c.b16 %v1441, %v1435
        %v1874 = vpack.c.b16 %v1442, %v1436
        %v1875 = vpack.c.b16 %v1443, %v1437
        %v1876 = vpack.c.b16 %v1444, %v1438
        %v1877 = vpack.c.b16 %v1445, %v1439
        %v1878 = vpack.c.b16 %v1452, %v1446
        %v1879 = vpack.c.b16 %v1453, %v1447
        %v1880 = vpack.c.b16 %v1454, %v1448
        %v1881 = vpack.c.b16 %v1455, %v1449
        %v1882 = vpack.c.b16 %v1456, %v1450
        %v1883 = vpack.c.b16 %v1457, %v1451
        %v1884 = vpack.c.b16 %v1464, %v1458
        %v1885 = vpack.c.b16 %v1465, %v1459
        %v1886 = vpack.c.b16 %v1466, %v1460
        %v1887 = vpack.c.b16 %v1467, %v1461
        %v1888 = vpack.c.b16 %v1468, %v1462
        %v1889 = vpack.c.b16 %v1469, %v1463
        %v1890 = vpack.c.b16 %v1476, %v1470
        %v1891 = vpack.c.b16 %v1477, %v1471
        %v1892 = vpack.c.b16 %v1478, %v1472
        %v1893 = vpack.c.b16 %v1479, %v1473
        %v1894 = vpack.c.b16 %v1480, %v1474
        %v1895 = vpack.c.b16 %v1481, %v1475
        %v1896 = vpack.c.b16 %v1488, %v1482
        %v1897 = vpack.c.b16 %v1489, %v1483
        %v1898 = vpack.c.b16 %v1490, %v1484
        %v1899 = vpack.c.b16 %v1491, %v1485
        %v1900 = vpack.c.b16 %v1492, %v1486
        %v1901 = vpack.c.b16 %v1493, %v1487
        %v1902 = vpack.c.b16 %v1500, %v1494
        %v1903 = vpack.c.b16 %v1501, %v1495
        %v1904 = vpack.c.b16 %v1502, %v1496
        %v1905 = vpack.c.b16 %v1503, %v1497
        %v1906 = vpack.c.b16 %v1504, %v1498
        %v1907 = vpack.c.b16 %v1505, %v1499
        %v1908 = vpack.c.b16 %v1512, %v1506
        %v1909 = vpack.c.b16 %v1513, %v1507
        %v1910 = vpack.c.b16 %v1514, %v1508
        %v1911 = vpack.c.b16 %v1515, %v1509
        %v1912 = vpack.c.b16 %v1516, %v1510
        %v1913 = vpack.c.b16 %v1517, %v1511
        %v1914 = vpack.c.b16 %v1524, %v1518
        %v1915 = vpack.c.b16 %v1525, %v1519
        %v1916 = vpack.c.b16 %v1526, %v1520
        %v1917 = vpack.c.b16 %v1527, %v1521
        %v1918 = vpack.c.b16 %v1528, %v1522
        %v1919 = vpack.c.b16 %v1529, %v1523
        %v1920 = vpack.c.b16 %v1536, %v1530
        %v1921 = vpack.c.b16 %v1537, %v1531
        %v1922 = vpack.c.b16 %v1538, %v1532
        %v1923 = vpack.c.b16 %v1539, %v1533
        %v1924 = vpack.c.b16 %v1540, %v1534
        %v1925 = vpack.c.b16 %v1541, %v1535
        %v1926 = vpack.c.b16 %v1548, %v1542
        %v1927 = vpack.c.b16 %v1549, %v1543
        %v1928 = vpack.c.b16 %v1550, %v1544
        %v1929 = vpack.c.b16 %v1551, %v1545
        %v1930 = vpack.c.b16 %v1552, %v1546
        %v1931 = vpack.c.b16 %v1553, %v1547
        %v1932 = vpack.c.b16 %v1560, %v1554
        %v1933 = vpack.c.b16 %v1561, %v1555
        %v1934 = vpack.c.b16 %v1562, %v1556
        %v1935 = vpack.c.b16 %v1563, %v1557
        %v1936 = vpack.c.b16 %v1564, %v1558
        %v1937 = vpack.c.b16 %v1565, %v1559
        %v1938 = vpack.c.b16 %v1572, %v1566
        %v1939 = vpack.c.b16 %v1573, %v1567
        %v1940 = vpack.c.b16 %v1574, %v1568
        %v1941 = vpack.c.b16 %v1575, %v1569
        %v1942 = vpack.c.b16 %v1576, %v1570
        %v1943 = vpack.c.b16 %v1577, %v1571
        %v1944 = vpack.c.b16 %v1584, %v1578
        %v1945 = vpack.c.b16 %v1585, %v1579
        %v1946 = vpack.c.b16 %v1586, %v1580
        %v1947 = vpack.c.b16 %v1587, %v1581
        %v1948 = vpack.c.b16 %v1588, %v1582
        %v1949 = vpack.c.b16 %v1589, %v1583
        %v1950 = vpack.c.b16 %v1596, %v1590
        %v1951 = vpack.c.b16 %v1597, %v1591
        %v1952 = vpack.c.b16 %v1598, %v1592
        %v1953 = vpack.c.b16 %v1599, %v1593
        %v1954 = vpack.c.b16 %v1600, %v1594
        %v1955 = vpack.c.b16 %v1601, %v1595
        %v1956 = vpack.c.b16 %v1608, %v1602
        %v1957 = vpack.c.b16 %v1609, %v1603
        %v1958 = vpack.c.b16 %v1610, %v1604
        %v1959 = vpack.c.b16 %v1611, %v1605
        %v1960 = vpack.c.b16 %v1612, %v1606
        %v1961 = vpack.c.b16 %v1613, %v1607
        %v1962 = vpack.c.b16 %v1620, %v1614
        %v1963 = vpack.c.b16 %v1621, %v1615
        %v1964 = vpack.c.b16 %v1622, %v1616
        %v1965 = vpack.c.b16 %v1623, %v1617
        %v1966 = vpack.c.b16 %v1624, %v1618
        %v1967 = vpack.c.b16 %v1625, %v1619
        %v1968 = vpack.c.b16 %v1632, %v1626
        %v1969 = vpack.c.b16 %v1633, %v1627
        %v1970 = vpack.c.b16 %v1634, %v1628
        %v1971 = vpack.c.b16 %v1635, %v1629
        %v1972 = vpack.c.b16 %v1636, %v1630
        %v1973 = vpack.c.b16 %v1637, %v1631
        %v1974 = vpack.c.b16 %v1644, %v1638
        %v1975 = vpack.c.b16 %v1645, %v1639
        %v1976 = vpack.c.b16 %v1646, %v1640
        %v1977 = vpack.c.b16 %v1647, %v1641
        %v1978 = vpack.c.b16 %v1648, %v1642
        %v1979 = vpack.c.b16 %v1649, %v1643
        %v1980 = vpack.c.b16 %v1656, %v1650
        %v1981 = vpack.c.b16 %v1657, %v1651
        %v1982 = vpack.c.b16 %v1658, %v1652
        %v1983 = vpack.c.b16 %v1659, %v1653
        %v1984 = vpack.c.b16 %v1660, %v1654
        %v1985 = vpack.c.b16 %v1661, %v1655
        %v1986 = vpack.c.b16 %v1668, %v1662
        %v1987 = vpack.c.b16 %v1669, %v1663
        %v1988 = vpack.c.b16 %v1670, %v1664
        %v1989 = vpack.c.b16 %v1671, %v1665
        %v1990 = vpack.c.b16 %v1672, %v1666
        %v1991 = vpack.c.b16 %v1673, %v1667
        %v1992 = vpack.c.b16 %v1680, %v1674
        %v1993 = vpack.c.b16 %v1681, %v1675
        %v1994 = vpack.c.b16 %v1682, %v1676
        %v1995 = vpack.c.b16 %v1683, %v1677
        %v1996 = vpack.c.b16 %v1684, %v1678
        %v1997 = vpack.c.b16 %v1685, %v1679
        %v1998 = vpack.c.b16 %v1692, %v1686
        %v1999 = vpack.c.b16 %v1693, %v1687
        %v2000 = vpack.c.b16 %v1694, %v1688
        %v2001 = vpack.c.b16 %v1695, %v1689
        %v2002 = vpack.c.b16 %v1696, %v1690
        %v2003 = vpack.c.b16 %v1697, %v1691
        %v2004 = vpack.c.b16 %v1704, %v1698
        %v2005 = vpack.c.b16 %v1705, %v1699
        %v2006 = vpack.c.b16 %v1706, %v1700
        %v2007 = vpack.c.b16 %v1707, %v1701
        %v2008 = vpack.c.b16 %v1708, %v1702
        %v2009 = vpack.c.b16 %v1709, %v1703
        %v2010 = vpack.c.b16 %v1716, %v1710
        %v2011 = vpack.c.b16 %v1717, %v1711
        %v2012 = vpack.c.b16 %v1718, %v1712
        %v2013 = vpack.c.b16 %v1719, %v1713
        %v2014 = vpack.c.b16 %v1720, %v1714
        %v2015 = vpack.c.b16 %v1721, %v1715
        %v2016 = vpack.c.b16 %v1728, %v1722
        %v2017 = vpack.c.b16 %v1729, %v1723
        %v2018 = vpack.c.b16 %v1730, %v1724
        %v2019 = vpack.c.b16 %v1731, %v1725
        %v2020 = vpack.c.b16 %v1732, %v1726
        %v2021 = vpack.c.b16 %v1733, %v1727
        %2310 = vmatprep.subr.bf16.mxu0 %v1735
        %2311 = vmatpush1.bf16.msra.mxu0 %v1734
        %2312 = vmatprep.subr.bf16.mxu0 %v1741
        %2313 = vmatpush1.bf16.msra.mxu0 %v1740
        %2314 = vmatprep.subr.bf16.mxu0 %v1747
        %2315 = vmatpush1.bf16.msra.mxu0 %v1746
        %2316 = vmatprep.subr.bf16.mxu0 %v1753
        %2317 = vmatpush1.bf16.msra.mxu0 %v1752
        %2318 = vmatprep.subr.bf16.mxu0 %v1759
        %2319 = vmatpush1.bf16.msra.mxu0 %v1758
        %2320 = vmatprep.subr.bf16.mxu0 %v1765
        %2321 = vmatpush1.bf16.msra.mxu0 %v1764
        %2322 = vmatprep.subr.bf16.mxu0 %v1771
        %2323 = vmatpush1.bf16.msra.mxu0 %v1770
        %2324 = vmatprep.subr.bf16.mxu0 %v1777
        %2325 = vmatpush1.bf16.msra.mxu0 %v1776
        %2326 = vmatprep.subr.bf16.mxu0 %v1783
        %2327 = vmatpush1.bf16.msra.mxu0 %v1782
        %2328 = vmatprep.subr.bf16.mxu0 %v1789
        %2329 = vmatpush1.bf16.msra.mxu0 %v1788
        %2330 = vmatprep.subr.bf16.mxu0 %v1795
        %2331 = vmatpush1.bf16.msra.mxu0 %v1794
        %2332 = vmatprep.subr.bf16.mxu0 %v1801
        %2333 = vmatpush1.bf16.msra.mxu0 %v1800
        %2334 = vmatprep.subr.bf16.mxu0 %v1807
        %2335 = vmatpush1.bf16.msra.mxu0 %v1806
        %2336 = vmatprep.subr.bf16.mxu0 %v1813
        %2337 = vmatpush1.bf16.msra.mxu0 %v1812
        %2338 = vmatprep.subr.bf16.mxu0 %v1819
        %2339 = vmatpush1.bf16.msra.mxu0 %v1818
        %2340 = vmatprep.subr.bf16.mxu0 %v1825
        %2341 = vmatpush1.bf16.msra.mxu0 %v1824
        %2342 = vmatprep.mubr.bf16.mxu0 %v799
        %2343 = vmatmul.mubr.bf16.gmra.mrb[0].mxu0 %v798
        %v2344 = vpop.f32.mrb[0].mxu0
        %v2345 = vadd.f32 0.0, %v2344
        %v2346 = vpop.f32.mrb[0].mxu0
        %v2347 = vadd.f32 0.0, %v2346
        %v2348 = vpop.f32.mrb[0].mxu0
        %v2349 = vadd.f32 0.0, %v2348
        %v2350 = vpop.f32.mrb[0].mxu0
        %v2351 = vadd.f32 0.0, %v2350
        %2352 = vmatprep.mubr.bf16.mxu0 %v805
        %2353 = vmatmul.mubr.bf16.gmra.mrb[0].mxu0 %v804
        %v2354 = vpop.f32.mrb[0].mxu0
        %v2355 = vadd.f32 0.0, %v2354
        %v2356 = vpop.f32.mrb[0].mxu0
        %v2357 = vadd.f32 0.0, %v2356
        %v2358 = vpop.f32.mrb[0].mxu0
        %v2359 = vadd.f32 0.0, %v2358
        %v2360 = vpop.f32.mrb[0].mxu0
        %v2361 = vadd.f32 0.0, %v2360
        %2362 = vmatprep.mubr.bf16.mxu0 %v811
        %2363 = vmatmul.mubr.bf16.gmra.mrb[0].mxu0 %v810
        %v2364 = vpop.f32.mrb[0].mxu0
        %v2365 = vadd.f32 0.0, %v2364
        %v2366 = vpop.f32.mrb[0].mxu0
        %v2367 = vadd.f32 0.0, %v2366
        %v2368 = vpop.f32.mrb[0].mxu0
        %v2369 = vadd.f32 0.0, %v2368
        %v2370 = vpop.f32.mrb[0].mxu0
        %v2371 = vadd.f32 0.0, %v2370
        %2372 = vmatprep.mubr.bf16.mxu0 %v817
        %2373 = vmatmul.mubr.bf16.gmra.mrb[0].mxu0 %v816
        %v2374 = vpop.f32.mrb[0].mxu0
        %v2375 = vadd.f32 0.0, %v2374
        %v2376 = vpop.f32.mrb[0].mxu0
        %v2377 = vadd.f32 0.0, %v2376
        %v2378 = vpop.f32.mrb[0].mxu0
        %v2379 = vadd.f32 0.0, %v2378
        %v2380 = vpop.f32.mrb[0].mxu0
        %v2381 = vadd.f32 0.0, %v2380
        %2382 = vmatprep.mubr.bf16.mxu0 %v823
        %2383 = vmatmul.mubr.bf16.gmra.mrb[0].mxu0 %v822
        %v2384 = vpop.f32.mrb[0].mxu0
        %v2385 = vadd.f32 0.0, %v2384
        %v2386 = vpop.f32.mrb[0].mxu0
        %v2387 = vadd.f32 0.0, %v2386
        %v2388 = vpop.f32.mrb[0].mxu0
        %v2389 = vpop.f32.mrb[0].mxu0
        %2390 = vmatprep.mubr.bf16.mxu0 %v829
        %2391 = vmatmul.mubr.bf16.gmra.mrb[0].mxu0 %v828
        %v2392 = vpop.f32.mrb[0].mxu0
        %v2393 = vpop.f32.mrb[0].mxu0
        %v2394 = vpop.f32.mrb[0].mxu0
        %v2395 = vpop.f32.mrb[0].mxu0
        %2396 = vdwg.mxu0
        %2397 = vmatprep.subr.bf16.mxu0 %v1831
        %2398 = vmatpush1.bf16.msra.mxu0 %v1830
        %2399 = vmatprep.subr.bf16.mxu0 %v1837
        %2400 = vmatpush1.bf16.msra.mxu0 %v1836
        %2401 = vmatprep.subr.bf16.mxu0 %v1843
        %2402 = vmatpush1.bf16.msra.mxu0 %v1842
        %2403 = vmatprep.subr.bf16.mxu0 %v1849
        %2404 = vmatpush1.bf16.msra.mxu0 %v1848
        %2405 = vmatprep.subr.bf16.mxu0 %v1855
        %2406 = vmatpush1.bf16.msra.mxu0 %v1854
        %2407 = vmatprep.subr.bf16.mxu0 %v1861
        %2408 = vmatpush1.bf16.msra.mxu0 %v1860
        %2409 = vmatprep.subr.bf16.mxu0 %v1867
        %2410 = vmatpush1.bf16.msra.mxu0 %v1866
        %2411 = vmatprep.subr.bf16.mxu0 %v1873
        %2412 = vmatpush1.bf16.msra.mxu0 %v1872
        %2413 = vmatprep.subr.bf16.mxu0 %v1879
        %2414 = vmatpush1.bf16.msra.mxu0 %v1878
        %2415 = vmatprep.subr.bf16.mxu0 %v1885
        %2416 = vmatpush1.bf16.msra.mxu0 %v1884
        %2417 = vmatprep.subr.bf16.mxu0 %v1891
        %2418 = vmatpush1.bf16.msra.mxu0 %v1890
        %2419 = vmatprep.subr.bf16.mxu0 %v1897
        %2420 = vmatpush1.bf16.msra.mxu0 %v1896
        %2421 = vmatprep.subr.bf16.mxu0 %v1903
        %2422 = vmatpush1.bf16.msra.mxu0 %v1902
        %2423 = vmatprep.subr.bf16.mxu0 %v1909
        %2424 = vmatpush1.bf16.msra.mxu0 %v1908
        %2425 = vmatprep.subr.bf16.mxu0 %v1915
        %2426 = vmatpush1.bf16.msra.mxu0 %v1914
        %2427 = vmatprep.subr.bf16.mxu0 %v1921
        %2428 = vmatpush1.bf16.msra.mxu0 %v1920
        %2429 = vmatprep.mubr.bf16.mxu0 %v801
        %2430 = vmatmul.mubr.bf16.gmra.mrb[0].mxu0 %v800
        %v2431 = vpop.f32.mrb[0].mxu0
        %v2432 = vadd.f32 %v2345, %v2431
        %v2433 = vpop.f32.mrb[0].mxu0
        %v2434 = vadd.f32 %v2347, %v2433
        %v2435 = vpop.f32.mrb[0].mxu0
        %v2436 = vadd.f32 %v2349, %v2435
        %v2437 = vpop.f32.mrb[0].mxu0
        %v2438 = vadd.f32 %v2351, %v2437
        %2439 = vmatprep.mubr.bf16.mxu0 %v807
        %2440 = vmatmul.mubr.bf16.gmra.mrb[0].mxu0 %v806
        %v2441 = vpop.f32.mrb[0].mxu0
        %v2442 = vadd.f32 %v2355, %v2441
        %v2443 = vpop.f32.mrb[0].mxu0
        %v2444 = vadd.f32 %v2357, %v2443
        %v2445 = vpop.f32.mrb[0].mxu0
        %v2446 = vadd.f32 %v2359, %v2445
        %v2447 = vpop.f32.mrb[0].mxu0
        %v2448 = vadd.f32 %v2361, %v2447
        %2449 = vmatprep.mubr.bf16.mxu0 %v813
        %2450 = vmatmul.mubr.bf16.gmra.mrb[0].mxu0 %v812
        %v2451 = vpop.f32.mrb[0].mxu0
        %v2452 = vadd.f32 %v2365, %v2451
        %v2453 = vpop.f32.mrb[0].mxu0
        %v2454 = vadd.f32 %v2367, %v2453
        %v2455 = vpop.f32.mrb[0].mxu0
        %v2456 = vadd.f32 %v2369, %v2455
        %v2457 = vpop.f32.mrb[0].mxu0
        %v2458 = vadd.f32 %v2371, %v2457
        %2459 = vmatprep.mubr.bf16.mxu0 %v819
        %2460 = vmatmul.mubr.bf16.gmra.mrb[0].mxu0 %v818
        %v2461 = vpop.f32.mrb[0].mxu0
        %v2462 = vadd.f32 %v2375, %v2461
        %v2463 = vpop.f32.mrb[0].mxu0
        %v2464 = vadd.f32 %v2377, %v2463
        %v2465 = vpop.f32.mrb[0].mxu0
        %v2466 = vadd.f32 %v2379, %v2465
        %v2467 = vpop.f32.mrb[0].mxu0
        %v2468 = vadd.f32 %v2381, %v2467
        %2469 = vmatprep.mubr.bf16.mxu0 %v825
        %2470 = vmatmul.mubr.bf16.gmra.mrb[0].mxu0 %v824
        %v2471 = vpop.f32.mrb[0].mxu0
        %v2472 = vadd.f32 %v2385, %v2471
        %v2473 = vpop.f32.mrb[0].mxu0
        %v2474 = vadd.f32 %v2387, %v2473
        %v2475 = vpop.f32.mrb[0].mxu0
        %v2476 = vpop.f32.mrb[0].mxu0
        %2477 = vmatprep.mubr.bf16.mxu0 %v831
        %2478 = vmatmul.mubr.bf16.gmra.mrb[0].mxu0 %v830
        %v2479 = vpop.f32.mrb[0].mxu0
        %v2480 = vpop.f32.mrb[0].mxu0
        %v2481 = vpop.f32.mrb[0].mxu0
        %v2482 = vpop.f32.mrb[0].mxu0
        %2483 = vdwg.mxu0
        %2484 = vmatprep.subr.bf16.mxu0 %v1927
        %2485 = vmatpush1.bf16.msra.mxu0 %v1926
        %2486 = vmatprep.subr.bf16.mxu0 %v1933
        %2487 = vmatpush1.bf16.msra.mxu0 %v1932
        %2488 = vmatprep.subr.bf16.mxu0 %v1939
        %2489 = vmatpush1.bf16.msra.mxu0 %v1938
        %2490 = vmatprep.subr.bf16.mxu0 %v1945
        %2491 = vmatpush1.bf16.msra.mxu0 %v1944
        %2492 = vmatprep.subr.bf16.mxu0 %v1951
        %2493 = vmatpush1.bf16.msra.mxu0 %v1950
        %2494 = vmatprep.subr.bf16.mxu0 %v1957
        %2495 = vmatpush1.bf16.msra.mxu0 %v1956
        %2496 = vmatprep.subr.bf16.mxu0 %v1963
        %2497 = vmatpush1.bf16.msra.mxu0 %v1962
        %2498 = vmatprep.subr.bf16.mxu0 %v1969
        %2499 = vmatpush1.bf16.msra.mxu0 %v1968
        %2500 = vmatprep.subr.bf16.mxu0 %v1975
        %2501 = vmatpush1.bf16.msra.mxu0 %v1974
        %2502 = vmatprep.subr.bf16.mxu0 %v1981
        %2503 = vmatpush1.bf16.msra.mxu0 %v1980
        %2504 = vmatprep.subr.bf16.mxu0 %v1987
        %2505 = vmatpush1.bf16.msra.mxu0 %v1986
        %2506 = vmatprep.subr.bf16.mxu0 %v1993
        %2507 = vmatpush1.bf16.msra.mxu0 %v1992
        %2508 = vmatprep.subr.bf16.mxu0 %v1999
        %2509 = vmatpush1.bf16.msra.mxu0 %v1998
        %2510 = vmatprep.subr.bf16.mxu0 %v2005
        %2511 = vmatpush1.bf16.msra.mxu0 %v2004
        %2512 = vmatprep.subr.bf16.mxu0 %v2011
        %2513 = vmatpush1.bf16.msra.mxu0 %v2010
        %2514 = vmatprep.subr.bf16.mxu0 %v2017
        %2515 = vmatpush1.bf16.msra.mxu0 %v2016
        %2516 = vmatprep.mubr.bf16.mxu0 %v803
        %2517 = vmatmul.mubr.bf16.gmra.mrb[0].mxu0 %v802
        %v2518 = vpop.f32.mrb[0].mxu0
        %v2519 = vadd.f32 %v2432, %v2518
        %v2520 = vpop.f32.mrb[0].mxu0
        %v2521 = vadd.f32 %v2434, %v2520
        %v2522 = vpop.f32.mrb[0].mxu0
        %v2523 = vadd.f32 %v2436, %v2522
        %v2524 = vpop.f32.mrb[0].mxu0
        %v2525 = vadd.f32 %v2438, %v2524
        %2526 = vmatprep.mubr.bf16.mxu0 %v809
        %2527 = vmatmul.mubr.bf16.gmra.mrb[0].mxu0 %v808
        %v2528 = vpop.f32.mrb[0].mxu0
        %v2529 = vadd.f32 %v2442, %v2528
        %v2530 = vpop.f32.mrb[0].mxu0
        %v2531 = vadd.f32 %v2444, %v2530
        %v2532 = vpop.f32.mrb[0].mxu0
        %v2533 = vadd.f32 %v2446, %v2532
        %v2534 = vpop.f32.mrb[0].mxu0
        %v2535 = vadd.f32 %v2448, %v2534
        %2536 = vmatprep.mubr.bf16.mxu0 %v815
        %2537 = vmatmul.mubr.bf16.gmra.mrb[0].mxu0 %v814
        %v2538 = vpop.f32.mrb[0].mxu0
        %v2539 = vadd.f32 %v2452, %v2538
        %v2540 = vpop.f32.mrb[0].mxu0
        %v2541 = vadd.f32 %v2454, %v2540
        %v2542 = vpop.f32.mrb[0].mxu0
        %v2543 = vadd.f32 %v2456, %v2542
        %v2544 = vpop.f32.mrb[0].mxu0
        %v2545 = vadd.f32 %v2458, %v2544
        %2546 = vmatprep.mubr.bf16.mxu0 %v821
        %2547 = vmatmul.mubr.bf16.gmra.mrb[0].mxu0 %v820
        %v2548 = vpop.f32.mrb[0].mxu0
        %v2549 = vadd.f32 %v2462, %v2548
        %v2550 = vpop.f32.mrb[0].mxu0
        %v2551 = vadd.f32 %v2464, %v2550
        %v2552 = vpop.f32.mrb[0].mxu0
        %v2553 = vadd.f32 %v2466, %v2552
        %v2554 = vpop.f32.mrb[0].mxu0
        %v2555 = vadd.f32 %v2468, %v2554
        %2556 = vmatprep.mubr.bf16.mxu0 %v827
        %2557 = vmatmul.mubr.bf16.gmra.mrb[0].mxu0 %v826
        %v2558 = vpop.f32.mrb[0].mxu0
        %v2559 = vadd.f32 %v2472, %v2558
        %v2560 = vpop.f32.mrb[0].mxu0
        %v2561 = vadd.f32 %v2474, %v2560
        %v2562 = vpop.f32.mrb[0].mxu0
        %v2563 = vpop.f32.mrb[0].mxu0
        %2564 = vmatprep.mubr.bf16.mxu0 %v833
        %2565 = vmatmul.mubr.bf16.gmra.mrb[0].mxu0 %v832
        %v2566 = vpop.f32.mrb[0].mxu0
        %v2567 = vpop.f32.mrb[0].mxu0
        %v2568 = vpop.f32.mrb[0].mxu0
        %v2569 = vpop.f32.mrb[0].mxu0
        %2570 = vdwg.mxu0
        %2571 = vmatprep.subr.bf16.mxu0 %v1737
        %2572 = vmatpush1.bf16.msra.mxu0 %v1736
        %2573 = vmatprep.subr.bf16.mxu0 %v1743
        %2574 = vmatpush1.bf16.msra.mxu0 %v1742
        %2575 = vmatprep.subr.bf16.mxu0 %v1749
        %2576 = vmatpush1.bf16.msra.mxu0 %v1748
        %2577 = vmatprep.subr.bf16.mxu0 %v1755
        %2578 = vmatpush1.bf16.msra.mxu0 %v1754
        %2579 = vmatprep.subr.bf16.mxu0 %v1761
        %2580 = vmatpush1.bf16.msra.mxu0 %v1760
        %2581 = vmatprep.subr.bf16.mxu0 %v1767
        %2582 = vmatpush1.bf16.msra.mxu0 %v1766
        %2583 = vmatprep.subr.bf16.mxu0 %v1773
        %2584 = vmatpush1.bf16.msra.mxu0 %v1772
        %2585 = vmatprep.subr.bf16.mxu0 %v1779
        %2586 = vmatpush1.bf16.msra.mxu0 %v1778
        %2587 = vmatprep.subr.bf16.mxu0 %v1785
        %2588 = vmatpush1.bf16.msra.mxu0 %v1784
        %2589 = vmatprep.subr.bf16.mxu0 %v1791
        %2590 = vmatpush1.bf16.msra.mxu0 %v1790
        %2591 = vmatprep.subr.bf16.mxu0 %v1797
        %2592 = vmatpush1.bf16.msra.mxu0 %v1796
        %2593 = vmatprep.subr.bf16.mxu0 %v1803
        %2594 = vmatpush1.bf16.msra.mxu0 %v1802
        %2595 = vmatprep.subr.bf16.mxu0 %v1809
        %2596 = vmatpush1.bf16.msra.mxu0 %v1808
        %2597 = vmatprep.subr.bf16.mxu0 %v1815
        %2598 = vmatpush1.bf16.msra.mxu0 %v1814
        %2599 = vmatprep.subr.bf16.mxu0 %v1821
        %2600 = vmatpush1.bf16.msra.mxu0 %v1820
        %2601 = vmatprep.subr.bf16.mxu0 %v1827
        %2602 = vmatpush1.bf16.msra.mxu0 %v1826
        %2603 = vmatprep.mubr.bf16.mxu0 %v799
        %2604 = vmatmul.mubr.bf16.gmra.mrb[0].mxu0 %v798
        %v2605 = vpop.f32.mrb[0].mxu0
        %v2606 = vpop.f32.mrb[0].mxu0
        %v2607 = vpop.f32.mrb[0].mxu0
        %v2608 = vpop.f32.mrb[0].mxu0
        %2609 = vmatprep.mubr.bf16.mxu0 %v805
        %2610 = vmatmul.mubr.bf16.gmra.mrb[0].mxu0 %v804
        %v2611 = vpop.f32.mrb[0].mxu0
        %v2612 = vpop.f32.mrb[0].mxu0
        %v2613 = vpop.f32.mrb[0].mxu0
        %v2614 = vpop.f32.mrb[0].mxu0
        %2615 = vmatprep.mubr.bf16.mxu0 %v811
        %2616 = vmatmul.mubr.bf16.gmra.mrb[0].mxu0 %v810
        %v2617 = vpop.f32.mrb[0].mxu0
        %v2618 = vpop.f32.mrb[0].mxu0
        %v2619 = vpop.f32.mrb[0].mxu0
        %v2620 = vpop.f32.mrb[0].mxu0
        %2621 = vmatprep.mubr.bf16.mxu0 %v817
        %2622 = vmatmul.mubr.bf16.gmra.mrb[0].mxu0 %v816
        %v2623 = vpop.f32.mrb[0].mxu0
        %v2624 = vpop.f32.mrb[0].mxu0
        %v2625 = vpop.f32.mrb[0].mxu0
        %v2626 = vpop.f32.mrb[0].mxu0
        %2627 = vmatprep.mubr.bf16.mxu0 %v823
        %2628 = vmatmul.mubr.bf16.gmra.mrb[0].mxu0 %v822
        %v2629 = vpop.f32.mrb[0].mxu0
        %v2630 = vpop.f32.mrb[0].mxu0
        %v2631 = vpop.f32.mrb[0].mxu0
        %v2632 = vadd.f32 0.0, %v2631
        %v2633 = vpop.f32.mrb[0].mxu0
        %v2634 = vadd.f32 0.0, %v2633
        %2635 = vmatprep.mubr.bf16.mxu0 %v829
        %2636 = vmatmul.mubr.bf16.gmra.mrb[0].mxu0 %v828
        %v2637 = vpop.f32.mrb[0].mxu0
        %v2638 = vpop.f32.mrb[0].mxu0
        %v2639 = vpop.f32.mrb[0].mxu0
        %v2640 = vpop.f32.mrb[0].mxu0
        %2641 = vdwg.mxu0
        %2642 = vmatprep.subr.bf16.mxu0 %v1833
        %2643 = vmatpush1.bf16.msra.mxu0 %v1832
        %2644 = vmatprep.subr.bf16.mxu0 %v1839
        %2645 = vmatpush1.bf16.msra.mxu0 %v1838
        %2646 = vmatprep.subr.bf16.mxu0 %v1845
        %2647 = vmatpush1.bf16.msra.mxu0 %v1844
        %2648 = vmatprep.subr.bf16.mxu0 %v1851
        %2649 = vmatpush1.bf16.msra.mxu0 %v1850
        %2650 = vmatprep.subr.bf16.mxu0 %v1857
        %2651 = vmatpush1.bf16.msra.mxu0 %v1856
        %2652 = vmatprep.subr.bf16.mxu0 %v1863
        %2653 = vmatpush1.bf16.msra.mxu0 %v1862
        %2654 = vmatprep.subr.bf16.mxu0 %v1869
        %2655 = vmatpush1.bf16.msra.mxu0 %v1868
        %2656 = vmatprep.subr.bf16.mxu0 %v1875
        %2657 = vmatpush1.bf16.msra.mxu0 %v1874
        %2658 = vmatprep.subr.bf16.mxu0 %v1881
        %2659 = vmatpush1.bf16.msra.mxu0 %v1880
        %2660 = vmatprep.subr.bf16.mxu0 %v1887
        %2661 = vmatpush1.bf16.msra.mxu0 %v1886
        %2662 = vmatprep.subr.bf16.mxu0 %v1893
        %2663 = vmatpush1.bf16.msra.mxu0 %v1892
        %2664 = vmatprep.subr.bf16.mxu0 %v1899
        %2665 = vmatpush1.bf16.msra.mxu0 %v1898
        %2666 = vmatprep.subr.bf16.mxu0 %v1905
        %2667 = vmatpush1.bf16.msra.mxu0 %v1904
        %2668 = vmatprep.subr.bf16.mxu0 %v1911
        %2669 = vmatpush1.bf16.msra.mxu0 %v1910
        %2670 = vmatprep.subr.bf16.mxu0 %v1917
        %2671 = vmatpush1.bf16.msra.mxu0 %v1916
        %2672 = vmatprep.subr.bf16.mxu0 %v1923
        %2673 = vmatpush1.bf16.msra.mxu0 %v1922
        %2674 = vmatprep.mubr.bf16.mxu0 %v801
        %2675 = vmatmul.mubr.bf16.gmra.mrb[0].mxu0 %v800
        %v2676 = vpop.f32.mrb[0].mxu0
        %v2677 = vpop.f32.mrb[0].mxu0
        %v2678 = vpop.f32.mrb[0].mxu0
        %v2679 = vpop.f32.mrb[0].mxu0
        %2680 = vmatprep.mubr.bf16.mxu0 %v807
        %2681 = vmatmul.mubr.bf16.gmra.mrb[0].mxu0 %v806
        %v2682 = vpop.f32.mrb[0].mxu0
        %v2683 = vpop.f32.mrb[0].mxu0
        %v2684 = vpop.f32.mrb[0].mxu0
        %v2685 = vpop.f32.mrb[0].mxu0
        %2686 = vmatprep.mubr.bf16.mxu0 %v813
        %2687 = vmatmul.mubr.bf16.gmra.mrb[0].mxu0 %v812
        %v2688 = vpop.f32.mrb[0].mxu0
        %v2689 = vpop.f32.mrb[0].mxu0
        %v2690 = vpop.f32.mrb[0].mxu0
        %v2691 = vpop.f32.mrb[0].mxu0
        %2692 = vmatprep.mubr.bf16.mxu0 %v819
        %2693 = vmatmul.mubr.bf16.gmra.mrb[0].mxu0 %v818
        %v2694 = vpop.f32.mrb[0].mxu0
        %v2695 = vpop.f32.mrb[0].mxu0
        %v2696 = vpop.f32.mrb[0].mxu0
        %v2697 = vpop.f32.mrb[0].mxu0
        %2698 = vmatprep.mubr.bf16.mxu0 %v825
        %2699 = vmatmul.mubr.bf16.gmra.mrb[0].mxu0 %v824
        %v2700 = vpop.f32.mrb[0].mxu0
        %v2701 = vpop.f32.mrb[0].mxu0
        %v2702 = vpop.f32.mrb[0].mxu0
        %v2703 = vadd.f32 %v2632, %v2702
        %v2704 = vpop.f32.mrb[0].mxu0
        %v2705 = vadd.f32 %v2634, %v2704
        %2706 = vmatprep.mubr.bf16.mxu0 %v831
        %2707 = vmatmul.mubr.bf16.gmra.mrb[0].mxu0 %v830
        %v2708 = vpop.f32.mrb[0].mxu0
        %v2709 = vpop.f32.mrb[0].mxu0
        %v2710 = vpop.f32.mrb[0].mxu0
        %v2711 = vpop.f32.mrb[0].mxu0
        %2712 = vdwg.mxu0
        %2713 = vmatprep.subr.bf16.mxu0 %v1929
        %2714 = vmatpush1.bf16.msra.mxu0 %v1928
        %2715 = vmatprep.subr.bf16.mxu0 %v1935
        %2716 = vmatpush1.bf16.msra.mxu0 %v1934
        %2717 = vmatprep.subr.bf16.mxu0 %v1941
        %2718 = vmatpush1.bf16.msra.mxu0 %v1940
        %2719 = vmatprep.subr.bf16.mxu0 %v1947
        %2720 = vmatpush1.bf16.msra.mxu0 %v1946
        %2721 = vmatprep.subr.bf16.mxu0 %v1953
        %2722 = vmatpush1.bf16.msra.mxu0 %v1952
        %2723 = vmatprep.subr.bf16.mxu0 %v1959
        %2724 = vmatpush1.bf16.msra.mxu0 %v1958
        %2725 = vmatprep.subr.bf16.mxu0 %v1965
        %2726 = vmatpush1.bf16.msra.mxu0 %v1964
        %2727 = vmatprep.subr.bf16.mxu0 %v1971
        %2728 = vmatpush1.bf16.msra.mxu0 %v1970
        %2729 = vmatprep.subr.bf16.mxu0 %v1977
        %2730 = vmatpush1.bf16.msra.mxu0 %v1976
        %2731 = vmatprep.subr.bf16.mxu0 %v1983
        %2732 = vmatpush1.bf16.msra.mxu0 %v1982
        %2733 = vmatprep.subr.bf16.mxu0 %v1989
        %2734 = vmatpush1.bf16.msra.mxu0 %v1988
        %2735 = vmatprep.subr.bf16.mxu0 %v1995
        %2736 = vmatpush1.bf16.msra.mxu0 %v1994
        %2737 = vmatprep.subr.bf16.mxu0 %v2001
        %2738 = vmatpush1.bf16.msra.mxu0 %v2000
        %2739 = vmatprep.subr.bf16.mxu0 %v2007
        %2740 = vmatpush1.bf16.msra.mxu0 %v2006
        %2741 = vmatprep.subr.bf16.mxu0 %v2013
        %2742 = vmatpush1.bf16.msra.mxu0 %v2012
        %2743 = vmatprep.subr.bf16.mxu0 %v2019
        %2744 = vmatpush1.bf16.msra.mxu0 %v2018
        %2745 = vmatprep.mubr.bf16.mxu0 %v803
        %2746 = vmatmul.mubr.bf16.gmra.mrb[0].mxu0 %v802
        %v2747 = vpop.f32.mrb[0].mxu0
        %v2748 = vpop.f32.mrb[0].mxu0
        %v2749 = vpop.f32.mrb[0].mxu0
        %v2750 = vpop.f32.mrb[0].mxu0
        %2751 = vmatprep.mubr.bf16.mxu0 %v809
        %2752 = vmatmul.mubr.bf16.gmra.mrb[0].mxu0 %v808
        %v2753 = vpop.f32.mrb[0].mxu0
        %v2754 = vpop.f32.mrb[0].mxu0
        %v2755 = vpop.f32.mrb[0].mxu0
        %v2756 = vpop.f32.mrb[0].mxu0
        %2757 = vmatprep.mubr.bf16.mxu0 %v815
        %2758 = vmatmul.mubr.bf16.gmra.mrb[0].mxu0 %v814
        %v2759 = vpop.f32.mrb[0].mxu0
        %v2760 = vpop.f32.mrb[0].mxu0
        %v2761 = vpop.f32.mrb[0].mxu0
        %v2762 = vpop.f32.mrb[0].mxu0
        %2763 = vmatprep.mubr.bf16.mxu0 %v821
        %2764 = vmatmul.mubr.bf16.gmra.mrb[0].mxu0 %v820
        %v2765 = vpop.f32.mrb[0].mxu0
        %v2766 = vpop.f32.mrb[0].mxu0
        %v2767 = vpop.f32.mrb[0].mxu0
        %v2768 = vpop.f32.mrb[0].mxu0
        %2769 = vmatprep.mubr.bf16.mxu0 %v827
        %2770 = vmatmul.mubr.bf16.gmra.mrb[0].mxu0 %v826
        %v2771 = vpop.f32.mrb[0].mxu0
        %v2772 = vpop.f32.mrb[0].mxu0
        %v2773 = vpop.f32.mrb[0].mxu0
        %v2774 = vadd.f32 %v2703, %v2773
        %v2775 = vpop.f32.mrb[0].mxu0
        %v2776 = vadd.f32 %v2705, %v2775
        %2777 = vmatprep.mubr.bf16.mxu0 %v833
        %2778 = vmatmul.mubr.bf16.gmra.mrb[0].mxu0 %v832
        %v2779 = vpop.f32.mrb[0].mxu0
        %v2780 = vpop.f32.mrb[0].mxu0
        %v2781 = vpop.f32.mrb[0].mxu0
        %v2782 = vpop.f32.mrb[0].mxu0
        %2783 = vdwg.mxu0
        %2784 = vmatprep.subr.bf16.mxu0 %v1739
        %2785 = vmatpush1.bf16.msra.mxu0 %v1738
        %2786 = vmatprep.subr.bf16.mxu0 %v1745
        %2787 = vmatpush1.bf16.msra.mxu0 %v1744
        %2788 = vmatprep.subr.bf16.mxu0 %v1751
        %2789 = vmatpush1.bf16.msra.mxu0 %v1750
        %2790 = vmatprep.subr.bf16.mxu0 %v1757
        %2791 = vmatpush1.bf16.msra.mxu0 %v1756
        %2792 = vmatprep.subr.bf16.mxu0 %v1763
        %2793 = vmatpush1.bf16.msra.mxu0 %v1762
        %2794 = vmatprep.subr.bf16.mxu0 %v1769
        %2795 = vmatpush1.bf16.msra.mxu0 %v1768
        %2796 = vmatprep.subr.bf16.mxu0 %v1775
        %2797 = vmatpush1.bf16.msra.mxu0 %v1774
        %2798 = vmatprep.subr.bf16.mxu0 %v1781
        %2799 = vmatpush1.bf16.msra.mxu0 %v1780
        %2800 = vmatprep.subr.bf16.mxu0 %v1787
        %2801 = vmatpush1.bf16.msra.mxu0 %v1786
        %2802 = vmatprep.subr.bf16.mxu0 %v1793
        %2803 = vmatpush1.bf16.msra.mxu0 %v1792
        %2804 = vmatprep.subr.bf16.mxu0 %v1799
        %2805 = vmatpush1.bf16.msra.mxu0 %v1798
        %2806 = vmatprep.subr.bf16.mxu0 %v1805
        %2807 = vmatpush1.bf16.msra.mxu0 %v1804
        %2808 = vmatprep.subr.bf16.mxu0 %v1811
        %2809 = vmatpush1.bf16.msra.mxu0 %v1810
        %2810 = vmatprep.subr.bf16.mxu0 %v1817
        %2811 = vmatpush1.bf16.msra.mxu0 %v1816
        %2812 = vmatprep.subr.bf16.mxu0 %v1823
        %2813 = vmatpush1.bf16.msra.mxu0 %v1822
        %2814 = vmatprep.subr.bf16.mxu0 %v1829
        %2815 = vmatpush1.bf16.msra.mxu0 %v1828
        %2816 = vmatprep.mubr.bf16.mxu0 %v799
        %2817 = vmatmul.mubr.bf16.gmra.mrb[0].mxu0 %v798
        %v2818 = vpop.f32.mrb[0].mxu0
        %v2819 = vpop.f32.mrb[0].mxu0
        %v2820 = vpop.f32.mrb[0].mxu0
        %v2821 = vpop.f32.mrb[0].mxu0
        %2822 = vmatprep.mubr.bf16.mxu0 %v805
        %2823 = vmatmul.mubr.bf16.gmra.mrb[0].mxu0 %v804
        %v2824 = vpop.f32.mrb[0].mxu0
        %v2825 = vpop.f32.mrb[0].mxu0
        %v2826 = vpop.f32.mrb[0].mxu0
        %v2827 = vpop.f32.mrb[0].mxu0
        %2828 = vmatprep.mubr.bf16.mxu0 %v811
        %2829 = vmatmul.mubr.bf16.gmra.mrb[0].mxu0 %v810
        %v2830 = vpop.f32.mrb[0].mxu0
        %v2831 = vpop.f32.mrb[0].mxu0
        %v2832 = vpop.f32.mrb[0].mxu0
        %v2833 = vpop.f32.mrb[0].mxu0
        %2834 = vmatprep.mubr.bf16.mxu0 %v817
        %2835 = vmatmul.mubr.bf16.gmra.mrb[0].mxu0 %v816
        %v2836 = vpop.f32.mrb[0].mxu0
        %v2837 = vpop.f32.mrb[0].mxu0
        %v2838 = vpop.f32.mrb[0].mxu0
        %v2839 = vpop.f32.mrb[0].mxu0
        %2840 = vmatprep.mubr.bf16.mxu0 %v823
        %2841 = vmatmul.mubr.bf16.gmra.mrb[0].mxu0 %v822
        %v2842 = vpop.f32.mrb[0].mxu0
        %v2843 = vpop.f32.mrb[0].mxu0
        %v2844 = vpop.f32.mrb[0].mxu0
        %v2845 = vpop.f32.mrb[0].mxu0
        %2846 = vmatprep.mubr.bf16.mxu0 %v829
        %2847 = vmatmul.mubr.bf16.gmra.mrb[0].mxu0 %v828
        %v2848 = vpop.f32.mrb[0].mxu0
        %v2849 = vadd.f32 0.0, %v2848
        %v2850 = vpop.f32.mrb[0].mxu0
        %v2851 = vadd.f32 0.0, %v2850
        %v2852 = vpop.f32.mrb[0].mxu0
        %v2853 = vpop.f32.mrb[0].mxu0
        %2854 = vdwg.mxu0
        %2855 = vmatprep.subr.bf16.mxu0 %v1835
        %2856 = vmatpush1.bf16.msra.mxu0 %v1834
        %2857 = vmatprep.subr.bf16.mxu0 %v1841
        %2858 = vmatpush1.bf16.msra.mxu0 %v1840
        %2859 = vmatprep.subr.bf16.mxu0 %v1847
        %2860 = vmatpush1.bf16.msra.mxu0 %v1846
        %2861 = vmatprep.subr.bf16.mxu0 %v1853
        %2862 = vmatpush1.bf16.msra.mxu0 %v1852
        %2863 = vmatprep.subr.bf16.mxu0 %v1859
        %2864 = vmatpush1.bf16.msra.mxu0 %v1858
        %2865 = vmatprep.subr.bf16.mxu0 %v1865
        %2866 = vmatpush1.bf16.msra.mxu0 %v1864
        %2867 = vmatprep.subr.bf16.mxu0 %v1871
        %2868 = vmatpush1.bf16.msra.mxu0 %v1870
        %2869 = vmatprep.subr.bf16.mxu0 %v1877
        %2870 = vmatpush1.bf16.msra.mxu0 %v1876
        %2871 = vmatprep.subr.bf16.mxu0 %v1883
        %2872 = vmatpush1.bf16.msra.mxu0 %v1882
        %2873 = vmatprep.subr.bf16.mxu0 %v1889
        %2874 = vmatpush1.bf16.msra.mxu0 %v1888
        %2875 = vmatprep.subr.bf16.mxu0 %v1895
        %2876 = vmatpush1.bf16.msra.mxu0 %v1894
        %2877 = vmatprep.subr.bf16.mxu0 %v1901
        %2878 = vmatpush1.bf16.msra.mxu0 %v1900
        %2879 = vmatprep.subr.bf16.mxu0 %v1907
        %2880 = vmatpush1.bf16.msra.mxu0 %v1906
        %2881 = vmatprep.subr.bf16.mxu0 %v1913
        %2882 = vmatpush1.bf16.msra.mxu0 %v1912
        %2883 = vmatprep.subr.bf16.mxu0 %v1919
        %2884 = vmatpush1.bf16.msra.mxu0 %v1918
        %2885 = vmatprep.subr.bf16.mxu0 %v1925
        %2886 = vmatpush1.bf16.msra.mxu0 %v1924
        %2887 = vmatprep.mubr.bf16.mxu0 %v801
        %2888 = vmatmul.mubr.bf16.gmra.mrb[0].mxu0 %v800
        %v2889 = vpop.f32.mrb[0].mxu0
        %v2890 = vpop.f32.mrb[0].mxu0
        %v2891 = vpop.f32.mrb[0].mxu0
        %v2892 = vpop.f32.mrb[0].mxu0
        %2893 = vmatprep.mubr.bf16.mxu0 %v807
        %2894 = vmatmul.mubr.bf16.gmra.mrb[0].mxu0 %v806
        %v2895 = vpop.f32.mrb[0].mxu0
        %v2896 = vpop.f32.mrb[0].mxu0
        %v2897 = vpop.f32.mrb[0].mxu0
        %v2898 = vpop.f32.mrb[0].mxu0
        %2899 = vmatprep.mubr.bf16.mxu0 %v813
        %2900 = vmatmul.mubr.bf16.gmra.mrb[0].mxu0 %v812
        %v2901 = vpop.f32.mrb[0].mxu0
        %v2902 = vpop.f32.mrb[0].mxu0
        %v2903 = vpop.f32.mrb[0].mxu0
        %v2904 = vpop.f32.mrb[0].mxu0
        %2905 = vmatprep.mubr.bf16.mxu0 %v819
        %2906 = vmatmul.mubr.bf16.gmra.mrb[0].mxu0 %v818
        %v2907 = vpop.f32.mrb[0].mxu0
        %v2908 = vpop.f32.mrb[0].mxu0
        %v2909 = vpop.f32.mrb[0].mxu0
        %v2910 = vpop.f32.mrb[0].mxu0
        %2911 = vmatprep.mubr.bf16.mxu0 %v825
        %2912 = vmatmul.mubr.bf16.gmra.mrb[0].mxu0 %v824
        %v2913 = vpop.f32.mrb[0].mxu0
        %v2914 = vpop.f32.mrb[0].mxu0
        %v2915 = vpop.f32.mrb[0].mxu0
        %v2916 = vpop.f32.mrb[0].mxu0
        %2917 = vmatprep.mubr.bf16.mxu0 %v831
        %2918 = vmatmul.mubr.bf16.gmra.mrb[0].mxu0 %v830
        %v2919 = vpop.f32.mrb[0].mxu0
        %v2920 = vadd.f32 %v2849, %v2919
        %v2921 = vpop.f32.mrb[0].mxu0
        %v2922 = vadd.f32 %v2851, %v2921
        %v2923 = vpop.f32.mrb[0].mxu0
        %v2924 = vpop.f32.mrb[0].mxu0
        %2925 = vdwg.mxu0
        %2926 = vmatprep.subr.bf16.mxu0 %v1931
        %2927 = vmatpush1.bf16.msra.mxu0 %v1930
        %2928 = vmatprep.subr.bf16.mxu0 %v1937
        %2929 = vmatpush1.bf16.msra.mxu0 %v1936
        %2930 = vmatprep.subr.bf16.mxu0 %v1943
        %2931 = vmatpush1.bf16.msra.mxu0 %v1942
        %2932 = vmatprep.subr.bf16.mxu0 %v1949
        %2933 = vmatpush1.bf16.msra.mxu0 %v1948
        %2934 = vmatprep.subr.bf16.mxu0 %v1955
        %2935 = vmatpush1.bf16.msra.mxu0 %v1954
        %2936 = vmatprep.subr.bf16.mxu0 %v1961
        %2937 = vmatpush1.bf16.msra.mxu0 %v1960
        %2938 = vmatprep.subr.bf16.mxu0 %v1967
        %2939 = vmatpush1.bf16.msra.mxu0 %v1966
        %2940 = vmatprep.subr.bf16.mxu0 %v1973
        %2941 = vmatpush1.bf16.msra.mxu0 %v1972
        %2942 = vmatprep.subr.bf16.mxu0 %v1979
        %2943 = vmatpush1.bf16.msra.mxu0 %v1978
        %2944 = vmatprep.subr.bf16.mxu0 %v1985
        %2945 = vmatpush1.bf16.msra.mxu0 %v1984
        %2946 = vmatprep.subr.bf16.mxu0 %v1991
        %2947 = vmatpush1.bf16.msra.mxu0 %v1990
        %2948 = vmatprep.subr.bf16.mxu0 %v1997
        %2949 = vmatpush1.bf16.msra.mxu0 %v1996
        %2950 = vmatprep.subr.bf16.mxu0 %v2003
        %2951 = vmatpush1.bf16.msra.mxu0 %v2002
        %2952 = vmatprep.subr.bf16.mxu0 %v2009
        %2953 = vmatpush1.bf16.msra.mxu0 %v2008
        %2954 = vmatprep.subr.bf16.mxu0 %v2015
        %2955 = vmatpush1.bf16.msra.mxu0 %v2014
        %2956 = vmatprep.subr.bf16.mxu0 %v2021
        %2957 = vmatpush1.bf16.msra.mxu0 %v2020
        %2958 = vmatprep.mubr.bf16.mxu0 %v803
        %2959 = vmatmul.mubr.bf16.gmra.mrb[0].mxu0 %v802
        %v2960 = vpop.f32.mrb[0].mxu0
        %v2961 = vpop.f32.mrb[0].mxu0
        %v2962 = vpop.f32.mrb[0].mxu0
        %v2963 = vpop.f32.mrb[0].mxu0
        %2964 = vmatprep.mubr.bf16.mxu0 %v809
        %2965 = vmatmul.mubr.bf16.gmra.mrb[0].mxu0 %v808
        %v2966 = vpop.f32.mrb[0].mxu0
        %v2967 = vpop.f32.mrb[0].mxu0
        %v2968 = vpop.f32.mrb[0].mxu0
        %v2969 = vpop.f32.mrb[0].mxu0
        %2970 = vmatprep.mubr.bf16.mxu0 %v815
        %2971 = vmatmul.mubr.bf16.gmra.mrb[0].mxu0 %v814
        %v2972 = vpop.f32.mrb[0].mxu0
        %v2973 = vpop.f32.mrb[0].mxu0
        %v2974 = vpop.f32.mrb[0].mxu0
        %v2975 = vpop.f32.mrb[0].mxu0
        %2976 = vmatprep.mubr.bf16.mxu0 %v821
        %2977 = vmatmul.mubr.bf16.gmra.mrb[0].mxu0 %v820
        %v2978 = vpop.f32.mrb[0].mxu0
        %v2979 = vpop.f32.mrb[0].mxu0
        %v2980 = vpop.f32.mrb[0].mxu0
        %v2981 = vpop.f32.mrb[0].mxu0
        %2982 = vmatprep.mubr.bf16.mxu0 %v827
        %2983 = vmatmul.mubr.bf16.gmra.mrb[0].mxu0 %v826
        %v2984 = vpop.f32.mrb[0].mxu0
        %v2985 = vpop.f32.mrb[0].mxu0
        %v2986 = vpop.f32.mrb[0].mxu0
        %v2987 = vpop.f32.mrb[0].mxu0
        %2988 = vmatprep.mubr.bf16.mxu0 %v833
        %2989 = vmatmul.mubr.bf16.gmra.mrb[0].mxu0 %v832
        %v2990 = vpop.f32.mrb[0].mxu0
        %v2991 = vadd.f32 %v2920, %v2990
        %v2992 = vpop.f32.mrb[0].mxu0
        %v2993 = vadd.f32 %v2922, %v2992
        %v2994 = vpop.f32.mrb[0].mxu0
        %v2995 = vpop.f32.mrb[0].mxu0
        %2996 = vdwg.mxu0
        %v2997 = vld [vmem:[#allocation8] sm:$0xff]
        %v2998 = vld [vmem:[#allocation8 + $0x8] sm:$0xff]
        %v2999 = vld [vmem:[#allocation8 + $0x10] sm:$0xff]
        %v3000 = vld [vmem:[#allocation8 + $0x18] sm:$0xff]
        %v3001 = vld [vmem:[#allocation8 + $0x20] sm:$0xff]
        %v3002 = vld [vmem:[#allocation8 + $0x28] sm:$0xff]
        %v3003 = vld [vmem:[#allocation8 + $0x30] sm:$0xff]
        %v3004 = vld [vmem:[#allocation8 + $0x38] sm:$0xff]
        %v3005 = vld [vmem:[#allocation8 + $0x40] sm:$0xff]
        %v3006 = vld [vmem:[#allocation8 + $0x48] sm:$0xff]
        %v3007 = vld [vmem:[#allocation8 + $0x50] sm:$0xff]
        %v3008 = vld [vmem:[#allocation8 + $0x58] sm:$0xff]
        %v3009 = vld [vmem:[#allocation8 + $0x60] sm:$0xff]
        %v3010 = vld [vmem:[#allocation8 + $0x68] sm:$0xff]
        %v3011 = vld [vmem:[#allocation8 + $0x70] sm:$0xff]
        %v3012 = vld [vmem:[#allocation8 + $0x78] sm:$0xff]
        %v3013 = vld [vmem:[#allocation8 + $0x80] sm:$0xff]
        %v3014 = vld [vmem:[#allocation8 + $0x88] sm:$0xff]
        %v3015 = vld [vmem:[#allocation8 + $0x90] sm:$0xff]
        %v3016 = vld [vmem:[#allocation8 + $0x98] sm:$0xff]
        %v3017 = vld [vmem:[#allocation8 + $0xa0] sm:$0xff]
        %v3018 = vld [vmem:[#allocation8 + $0xa8] sm:$0xff]
        %v3019 = vld [vmem:[#allocation8 + $0xb0] sm:$0xff]
        %v3020 = vld [vmem:[#allocation8 + $0xb8] sm:$0xff]
        %v3021 = vld [vmem:[#allocation8 + $0xc0] sm:$0xff]
        %v3022 = vld [vmem:[#allocation8 + $0xc8] sm:$0xff]
        %v3023 = vld [vmem:[#allocation8 + $0xd0] sm:$0xff]
        %v3024 = vld [vmem:[#allocation8 + $0xd8] sm:$0xff]
        %v3025 = vld [vmem:[#allocation8 + $0xe0] sm:$0xff]
        %v3026 = vld [vmem:[#allocation8 + $0xe8] sm:$0xff]
        %v3027 = vld [vmem:[#allocation8 + $0xf0] sm:$0xff]
        %v3028 = vld [vmem:[#allocation8 + $0xf8] sm:$0xff]
        %v3029 = vld [vmem:[#allocation8 + $0x100] sm:$0xff]
        %v3030 = vld [vmem:[#allocation8 + $0x108] sm:$0xff]
        %v3031 = vld [vmem:[#allocation8 + $0x110] sm:$0xff]
        %v3032 = vld [vmem:[#allocation8 + $0x118] sm:$0xff]
        %v3033 = vld [vmem:[#allocation8 + $0x120] sm:$0xff]
        %v3034 = vld [vmem:[#allocation8 + $0x128] sm:$0xff]
        %v3035 = vld [vmem:[#allocation8 + $0x130] sm:$0xff]
        %v3036 = vld [vmem:[#allocation8 + $0x138] sm:$0xff]
        %v3037 = vld [vmem:[#allocation8 + $0x140] sm:$0xff]
        %v3038 = vld [vmem:[#allocation8 + $0x148] sm:$0xff]
        %v3039 = vld [vmem:[#allocation8 + $0x150] sm:$0xff]
        %v3040 = vld [vmem:[#allocation8 + $0x158] sm:$0xff]
        %v3041 = vld [vmem:[#allocation8 + $0x160] sm:$0xff]
        %v3042 = vld [vmem:[#allocation8 + $0x168] sm:$0xff]
        %v3043 = vld [vmem:[#allocation8 + $0x170] sm:$0xff]
        %v3044 = vld [vmem:[#allocation8 + $0x178] sm:$0xff]
        %v3045 = vld [vmem:[#allocation8 + $0x180] sm:$0xff]
        %v3046 = vld [vmem:[#allocation8 + $0x188] sm:$0xff]
        %v3047 = vld [vmem:[#allocation8 + $0x190] sm:$0xff]
        %v3048 = vld [vmem:[#allocation8 + $0x198] sm:$0xff]
        %v3049 = vld [vmem:[#allocation8 + $0x1a0] sm:$0xff]
        %v3050 = vld [vmem:[#allocation8 + $0x1a8] sm:$0xff]
        %v3051 = vld [vmem:[#allocation8 + $0x1b0] sm:$0xff]
        %v3052 = vld [vmem:[#allocation8 + $0x1b8] sm:$0xff]
        %v3053 = vld [vmem:[#allocation8 + $0x1c0] sm:$0xff]
        %v3054 = vld [vmem:[#allocation8 + $0x1c8] sm:$0xff]
        %v3055 = vld [vmem:[#allocation8 + $0x1d0] sm:$0xff]
        %v3056 = vld [vmem:[#allocation8 + $0x1d8] sm:$0xff]
        %v3057 = vld [vmem:[#allocation8 + $0x1e0] sm:$0xff]
        %v3058 = vld [vmem:[#allocation8 + $0x1e8] sm:$0xff]
        %v3059 = vld [vmem:[#allocation8 + $0x1f0] sm:$0xff]
        %v3060 = vld [vmem:[#allocation8 + $0x1f8] sm:$0xff]
        %v3061 = vld [vmem:[#allocation8 + $0x200] sm:$0xff]
        %v3062 = vld [vmem:[#allocation8 + $0x208] sm:$0xff]
        %v3063 = vld [vmem:[#allocation8 + $0x210] sm:$0xff]
        %v3064 = vld [vmem:[#allocation8 + $0x218] sm:$0xff]
        %v3065 = vld [vmem:[#allocation8 + $0x220] sm:$0xff]
        %v3066 = vld [vmem:[#allocation8 + $0x228] sm:$0xff]
        %v3067 = vld [vmem:[#allocation8 + $0x230] sm:$0xff]
        %v3068 = vld [vmem:[#allocation8 + $0x238] sm:$0xff]
        %v3069 = vld [vmem:[#allocation8 + $0x240] sm:$0xff]
        %v3070 = vld [vmem:[#allocation8 + $0x248] sm:$0xff]
        %v3071 = vld [vmem:[#allocation8 + $0x250] sm:$0xff]
        %v3072 = vld [vmem:[#allocation8 + $0x258] sm:$0xff]
        %v3073 = vld [vmem:[#allocation8 + $0x260] sm:$0xff]
        %v3074 = vld [vmem:[#allocation8 + $0x268] sm:$0xff]
        %v3075 = vld [vmem:[#allocation8 + $0x270] sm:$0xff]
        %v3076 = vld [vmem:[#allocation8 + $0x278] sm:$0xff]
        %v3077 = vld [vmem:[#allocation8 + $0x280] sm:$0xff]
        %v3078 = vld [vmem:[#allocation8 + $0x288] sm:$0xff]
        %v3079 = vld [vmem:[#allocation8 + $0x290] sm:$0xff]
        %v3080 = vld [vmem:[#allocation8 + $0x298] sm:$0xff]
        %v3081 = vld [vmem:[#allocation8 + $0x2a0] sm:$0xff]
        %v3082 = vld [vmem:[#allocation8 + $0x2a8] sm:$0xff]
        %v3083 = vld [vmem:[#allocation8 + $0x2b0] sm:$0xff]
        %v3084 = vld [vmem:[#allocation8 + $0x2b8] sm:$0xff]
        %v3085 = vld [vmem:[#allocation8 + $0x2c0] sm:$0xff]
        %v3086 = vld [vmem:[#allocation8 + $0x2c8] sm:$0xff]
        %v3087 = vld [vmem:[#allocation8 + $0x2d0] sm:$0xff]
        %v3088 = vld [vmem:[#allocation8 + $0x2d8] sm:$0xff]
        %v3089 = vld [vmem:[#allocation8 + $0x2e0] sm:$0xff]
        %v3090 = vld [vmem:[#allocation8 + $0x2e8] sm:$0xff]
        %v3091 = vld [vmem:[#allocation8 + $0x2f0] sm:$0xff]
        %v3092 = vld [vmem:[#allocation8 + $0x2f8] sm:$0xff]
        %v3093 = vld [vmem:[#allocation8 + $0x300] sm:$0xff]
        %v3094 = vld [vmem:[#allocation8 + $0x308] sm:$0xff]
        %v3095 = vld [vmem:[#allocation8 + $0x310] sm:$0xff]
        %v3096 = vld [vmem:[#allocation8 + $0x318] sm:$0xff]
        %v3097 = vld [vmem:[#allocation8 + $0x320] sm:$0xff]
        %v3098 = vld [vmem:[#allocation8 + $0x328] sm:$0xff]
        %v3099 = vld [vmem:[#allocation8 + $0x330] sm:$0xff]
        %v3100 = vld [vmem:[#allocation8 + $0x338] sm:$0xff]
        %v3101 = vld [vmem:[#allocation8 + $0x340] sm:$0xff]
        %v3102 = vld [vmem:[#allocation8 + $0x348] sm:$0xff]
        %v3103 = vld [vmem:[#allocation8 + $0x350] sm:$0xff]
        %v3104 = vld [vmem:[#allocation8 + $0x358] sm:$0xff]
        %v3105 = vld [vmem:[#allocation8 + $0x360] sm:$0xff]
        %v3106 = vld [vmem:[#allocation8 + $0x368] sm:$0xff]
        %v3107 = vld [vmem:[#allocation8 + $0x370] sm:$0xff]
        %v3108 = vld [vmem:[#allocation8 + $0x378] sm:$0xff]
        %v3109 = vld [vmem:[#allocation8 + $0x380] sm:$0xff]
        %v3110 = vld [vmem:[#allocation8 + $0x388] sm:$0xff]
        %v3111 = vld [vmem:[#allocation8 + $0x390] sm:$0xff]
        %v3112 = vld [vmem:[#allocation8 + $0x398] sm:$0xff]
        %v3113 = vld [vmem:[#allocation8 + $0x3a0] sm:$0xff]
        %v3114 = vld [vmem:[#allocation8 + $0x3a8] sm:$0xff]
        %v3115 = vld [vmem:[#allocation8 + $0x3b0] sm:$0xff]
        %v3116 = vld [vmem:[#allocation8 + $0x3b8] sm:$0xff]
        %v3117 = vld [vmem:[#allocation8 + $0x3c0] sm:$0xff]
        %v3118 = vld [vmem:[#allocation8 + $0x3c8] sm:$0xff]
        %v3119 = vld [vmem:[#allocation8 + $0x3d0] sm:$0xff]
        %v3120 = vld [vmem:[#allocation8 + $0x3d8] sm:$0xff]
        %v3121 = vld [vmem:[#allocation8 + $0x3e0] sm:$0xff]
        %v3122 = vld [vmem:[#allocation8 + $0x3e8] sm:$0xff]
        %v3123 = vld [vmem:[#allocation8 + $0x3f0] sm:$0xff]
        %v3124 = vld [vmem:[#allocation8 + $0x3f8] sm:$0xff]
        %v3125 = vld [vmem:[#allocation8 + $0x400] sm:$0xff]
        %v3126 = vld [vmem:[#allocation8 + $0x408] sm:$0xff]
        %v3127 = vld [vmem:[#allocation8 + $0x410] sm:$0xff]
        %v3128 = vld [vmem:[#allocation8 + $0x418] sm:$0xff]
        %v3129 = vld [vmem:[#allocation8 + $0x420] sm:$0xff]
        %v3130 = vld [vmem:[#allocation8 + $0x428] sm:$0xff]
        %v3131 = vld [vmem:[#allocation8 + $0x430] sm:$0xff]
        %v3132 = vld [vmem:[#allocation8 + $0x438] sm:$0xff]
        %v3133 = vld [vmem:[#allocation8 + $0x440] sm:$0xff]
        %v3134 = vld [vmem:[#allocation8 + $0x448] sm:$0xff]
        %v3135 = vld [vmem:[#allocation8 + $0x450] sm:$0xff]
        %v3136 = vld [vmem:[#allocation8 + $0x458] sm:$0xff]
        %v3137 = vld [vmem:[#allocation8 + $0x460] sm:$0xff]
        %v3138 = vld [vmem:[#allocation8 + $0x468] sm:$0xff]
        %v3139 = vld [vmem:[#allocation8 + $0x470] sm:$0xff]
        %v3140 = vld [vmem:[#allocation8 + $0x478] sm:$0xff]
        %v3141 = vld [vmem:[#allocation8 + $0x480] sm:$0xff]
        %v3142 = vld [vmem:[#allocation8 + $0x488] sm:$0xff]
        %v3143 = vld [vmem:[#allocation8 + $0x490] sm:$0xff]
        %v3144 = vld [vmem:[#allocation8 + $0x498] sm:$0xff]
        %v3145 = vld [vmem:[#allocation8 + $0x4a0] sm:$0xff]
        %v3146 = vld [vmem:[#allocation8 + $0x4a8] sm:$0xff]
        %v3147 = vld [vmem:[#allocation8 + $0x4b0] sm:$0xff]
        %v3148 = vld [vmem:[#allocation8 + $0x4b8] sm:$0xff]
        %v3149 = vld [vmem:[#allocation8 + $0x4c0] sm:$0xff]
        %v3150 = vld [vmem:[#allocation8 + $0x4c8] sm:$0xff]
        %v3151 = vld [vmem:[#allocation8 + $0x4d0] sm:$0xff]
        %v3152 = vld [vmem:[#allocation8 + $0x4d8] sm:$0xff]
        %v3153 = vld [vmem:[#allocation8 + $0x4e0] sm:$0xff]
        %v3154 = vld [vmem:[#allocation8 + $0x4e8] sm:$0xff]
        %v3155 = vld [vmem:[#allocation8 + $0x4f0] sm:$0xff]
        %v3156 = vld [vmem:[#allocation8 + $0x4f8] sm:$0xff]
        %v3157 = vld [vmem:[#allocation8 + $0x500] sm:$0xff]
        %v3158 = vld [vmem:[#allocation8 + $0x508] sm:$0xff]
        %v3159 = vld [vmem:[#allocation8 + $0x510] sm:$0xff]
        %v3160 = vld [vmem:[#allocation8 + $0x518] sm:$0xff]
        %v3161 = vld [vmem:[#allocation8 + $0x520] sm:$0xff]
        %v3162 = vld [vmem:[#allocation8 + $0x528] sm:$0xff]
        %v3163 = vld [vmem:[#allocation8 + $0x530] sm:$0xff]
        %v3164 = vld [vmem:[#allocation8 + $0x538] sm:$0xff]
        %v3165 = vld [vmem:[#allocation8 + $0x540] sm:$0xff]
        %v3166 = vld [vmem:[#allocation8 + $0x548] sm:$0xff]
        %v3167 = vld [vmem:[#allocation8 + $0x550] sm:$0xff]
        %v3168 = vld [vmem:[#allocation8 + $0x558] sm:$0xff]
        %v3169 = vld [vmem:[#allocation8 + $0x560] sm:$0xff]
        %v3170 = vld [vmem:[#allocation8 + $0x568] sm:$0xff]
        %v3171 = vld [vmem:[#allocation8 + $0x570] sm:$0xff]
        %v3172 = vld [vmem:[#allocation8 + $0x578] sm:$0xff]
        %v3173 = vld [vmem:[#allocation8 + $0x580] sm:$0xff]
        %v3174 = vld [vmem:[#allocation8 + $0x588] sm:$0xff]
        %v3175 = vld [vmem:[#allocation8 + $0x590] sm:$0xff]
        %v3176 = vld [vmem:[#allocation8 + $0x598] sm:$0xff]
        %v3177 = vld [vmem:[#allocation8 + $0x5a0] sm:$0xff]
        %v3178 = vld [vmem:[#allocation8 + $0x5a8] sm:$0xff]
        %v3179 = vld [vmem:[#allocation8 + $0x5b0] sm:$0xff]
        %v3180 = vld [vmem:[#allocation8 + $0x5b8] sm:$0xff]
        %v3181 = vld [vmem:[#allocation8 + $0x5c0] sm:$0xff]
        %v3182 = vld [vmem:[#allocation8 + $0x5c8] sm:$0xff]
        %v3183 = vld [vmem:[#allocation8 + $0x5d0] sm:$0xff]
        %v3184 = vld [vmem:[#allocation8 + $0x5d8] sm:$0xff]
        %v3185 = vld [vmem:[#allocation8 + $0x5e0] sm:$0xff]
        %v3186 = vld [vmem:[#allocation8 + $0x5e8] sm:$0xff]
        %v3187 = vld [vmem:[#allocation8 + $0x5f0] sm:$0xff]
        %v3188 = vld [vmem:[#allocation8 + $0x5f8] sm:$0xff]
        %v3189 = vld [vmem:[#allocation8 + $0x600] sm:$0xff]
        %v3190 = vld [vmem:[#allocation8 + $0x608] sm:$0xff]
        %v3191 = vld [vmem:[#allocation8 + $0x610] sm:$0xff]
        %v3192 = vld [vmem:[#allocation8 + $0x618] sm:$0xff]
        %v3193 = vld [vmem:[#allocation8 + $0x620] sm:$0xff]
        %v3194 = vld [vmem:[#allocation8 + $0x628] sm:$0xff]
        %v3195 = vld [vmem:[#allocation8 + $0x630] sm:$0xff]
        %v3196 = vld [vmem:[#allocation8 + $0x638] sm:$0xff]
        %v3197 = vld [vmem:[#allocation8 + $0x640] sm:$0xff]
        %v3198 = vld [vmem:[#allocation8 + $0x648] sm:$0xff]
        %v3199 = vld [vmem:[#allocation8 + $0x650] sm:$0xff]
        %v3200 = vld [vmem:[#allocation8 + $0x658] sm:$0xff]
        %v3201 = vld [vmem:[#allocation8 + $0x660] sm:$0xff]
        %v3202 = vld [vmem:[#allocation8 + $0x668] sm:$0xff]
        %v3203 = vld [vmem:[#allocation8 + $0x670] sm:$0xff]
        %v3204 = vld [vmem:[#allocation8 + $0x678] sm:$0xff]
        %v3205 = vld [vmem:[#allocation8 + $0x680] sm:$0xff]
        %v3206 = vld [vmem:[#allocation8 + $0x688] sm:$0xff]
        %v3207 = vld [vmem:[#allocation8 + $0x690] sm:$0xff]
        %v3208 = vld [vmem:[#allocation8 + $0x698] sm:$0xff]
        %v3209 = vld [vmem:[#allocation8 + $0x6a0] sm:$0xff]
        %v3210 = vld [vmem:[#allocation8 + $0x6a8] sm:$0xff]
        %v3211 = vld [vmem:[#allocation8 + $0x6b0] sm:$0xff]
        %v3212 = vld [vmem:[#allocation8 + $0x6b8] sm:$0xff]
        %v3213 = vld [vmem:[#allocation8 + $0x6c0] sm:$0xff]
        %v3214 = vld [vmem:[#allocation8 + $0x6c8] sm:$0xff]
        %v3215 = vld [vmem:[#allocation8 + $0x6d0] sm:$0xff]
        %v3216 = vld [vmem:[#allocation8 + $0x6d8] sm:$0xff]
        %v3217 = vld [vmem:[#allocation8 + $0x6e0] sm:$0xff]
        %v3218 = vld [vmem:[#allocation8 + $0x6e8] sm:$0xff]
        %v3219 = vld [vmem:[#allocation8 + $0x6f0] sm:$0xff]
        %v3220 = vld [vmem:[#allocation8 + $0x6f8] sm:$0xff]
        %v3221 = vld [vmem:[#allocation8 + $0x700] sm:$0xff]
        %v3222 = vld [vmem:[#allocation8 + $0x708] sm:$0xff]
        %v3223 = vld [vmem:[#allocation8 + $0x710] sm:$0xff]
        %v3224 = vld [vmem:[#allocation8 + $0x718] sm:$0xff]
        %v3225 = vld [vmem:[#allocation8 + $0x720] sm:$0xff]
        %v3226 = vld [vmem:[#allocation8 + $0x728] sm:$0xff]
        %v3227 = vld [vmem:[#allocation8 + $0x730] sm:$0xff]
        %v3228 = vld [vmem:[#allocation8 + $0x738] sm:$0xff]
        %v3229 = vld [vmem:[#allocation8 + $0x740] sm:$0xff]
        %v3230 = vld [vmem:[#allocation8 + $0x748] sm:$0xff]
        %v3231 = vld [vmem:[#allocation8 + $0x750] sm:$0xff]
        %v3232 = vld [vmem:[#allocation8 + $0x758] sm:$0xff]
        %v3233 = vld [vmem:[#allocation8 + $0x760] sm:$0xff]
        %v3234 = vld [vmem:[#allocation8 + $0x768] sm:$0xff]
        %v3235 = vld [vmem:[#allocation8 + $0x770] sm:$0xff]
        %v3236 = vld [vmem:[#allocation8 + $0x778] sm:$0xff]
        %v3237 = vld [vmem:[#allocation8 + $0x780] sm:$0xff]
        %v3238 = vld [vmem:[#allocation8 + $0x788] sm:$0xff]
        %v3239 = vld [vmem:[#allocation8 + $0x790] sm:$0xff]
        %v3240 = vld [vmem:[#allocation8 + $0x798] sm:$0xff]
        %v3241 = vld [vmem:[#allocation8 + $0x7a0] sm:$0xff]
        %v3242 = vld [vmem:[#allocation8 + $0x7a8] sm:$0xff]
        %v3243 = vld [vmem:[#allocation8 + $0x7b0] sm:$0xff]
        %v3244 = vld [vmem:[#allocation8 + $0x7b8] sm:$0xff]
        %v3245 = vld [vmem:[#allocation8 + $0x7c0] sm:$0xff]
        %v3246 = vld [vmem:[#allocation8 + $0x7c8] sm:$0xff]
        %v3247 = vld [vmem:[#allocation8 + $0x7d0] sm:$0xff]
        %v3248 = vld [vmem:[#allocation8 + $0x7d8] sm:$0xff]
        %v3249 = vld [vmem:[#allocation8 + $0x7e0] sm:$0xff]
        %v3250 = vld [vmem:[#allocation8 + $0x7e8] sm:$0xff]
        %v3251 = vld [vmem:[#allocation8 + $0x7f0] sm:$0xff]
        %v3252 = vld [vmem:[#allocation8 + $0x7f8] sm:$0xff]
        %v3253 = vld [vmem:[#allocation8 + $0x800] sm:$0xff]
        %v3254 = vld [vmem:[#allocation8 + $0x808] sm:$0xff]
        %v3255 = vld [vmem:[#allocation8 + $0x810] sm:$0xff]
        %v3256 = vld [vmem:[#allocation8 + $0x818] sm:$0xff]
        %v3257 = vld [vmem:[#allocation8 + $0x820] sm:$0xff]
        %v3258 = vld [vmem:[#allocation8 + $0x828] sm:$0xff]
        %v3259 = vld [vmem:[#allocation8 + $0x830] sm:$0xff]
        %v3260 = vld [vmem:[#allocation8 + $0x838] sm:$0xff]
        %v3261 = vld [vmem:[#allocation8 + $0x840] sm:$0xff]
        %v3262 = vld [vmem:[#allocation8 + $0x848] sm:$0xff]
        %v3263 = vld [vmem:[#allocation8 + $0x850] sm:$0xff]
        %v3264 = vld [vmem:[#allocation8 + $0x858] sm:$0xff]
        %v3265 = vld [vmem:[#allocation8 + $0x860] sm:$0xff]
        %v3266 = vld [vmem:[#allocation8 + $0x868] sm:$0xff]
        %v3267 = vld [vmem:[#allocation8 + $0x870] sm:$0xff]
        %v3268 = vld [vmem:[#allocation8 + $0x878] sm:$0xff]
        %v3269 = vld [vmem:[#allocation8 + $0x880] sm:$0xff]
        %v3270 = vld [vmem:[#allocation8 + $0x888] sm:$0xff]
        %v3271 = vld [vmem:[#allocation8 + $0x890] sm:$0xff]
        %v3272 = vld [vmem:[#allocation8 + $0x898] sm:$0xff]
        %v3273 = vld [vmem:[#allocation8 + $0x8a0] sm:$0xff]
        %v3274 = vld [vmem:[#allocation8 + $0x8a8] sm:$0xff]
        %v3275 = vld [vmem:[#allocation8 + $0x8b0] sm:$0xff]
        %v3276 = vld [vmem:[#allocation8 + $0x8b8] sm:$0xff]
        %v3277 = vld [vmem:[#allocation8 + $0x8c0] sm:$0xff]
        %v3278 = vld [vmem:[#allocation8 + $0x8c8] sm:$0xff]
        %v3279 = vld [vmem:[#allocation8 + $0x8d0] sm:$0xff]
        %v3280 = vld [vmem:[#allocation8 + $0x8d8] sm:$0xff]
        %v3281 = vld [vmem:[#allocation8 + $0x8e0] sm:$0xff]
        %v3282 = vld [vmem:[#allocation8 + $0x8e8] sm:$0xff]
        %v3283 = vld [vmem:[#allocation8 + $0x8f0] sm:$0xff]
        %v3284 = vld [vmem:[#allocation8 + $0x8f8] sm:$0xff]
        %v3285 = vld [vmem:[#allocation8 + $0x900] sm:$0xf]
        %v3286 = vld [vmem:[#allocation8 + $0x908] sm:$0xf]
        %v3287 = vld [vmem:[#allocation8 + $0x910] sm:$0xf]
        %v3288 = vld [vmem:[#allocation8 + $0x918] sm:$0xf]
        %v3289 = vld [vmem:[#allocation8 + $0x920] sm:$0xf]
        %v3290 = vld [vmem:[#allocation8 + $0x928] sm:$0xf]
        %v3291 = vld [vmem:[#allocation8 + $0x930] sm:$0xf]
        %v3292 = vld [vmem:[#allocation8 + $0x938] sm:$0xf]
        %v3293 = vld [vmem:[#allocation8 + $0x940] sm:$0xf]
        %v3294 = vld [vmem:[#allocation8 + $0x948] sm:$0xf]
        %v3295 = vld [vmem:[#allocation8 + $0x950] sm:$0xf]
        %v3296 = vld [vmem:[#allocation8 + $0x958] sm:$0xf]
        %v3297 = vld [vmem:[#allocation8 + $0x960] sm:$0xf]
        %v3298 = vld [vmem:[#allocation8 + $0x968] sm:$0xf]
        %v3299 = vld [vmem:[#allocation8 + $0x970] sm:$0xf]
        %v3300 = vld [vmem:[#allocation8 + $0x978] sm:$0xf]
        %v3301 = vld [vmem:[#allocation8 + $0x980] sm:$0xf]
        %v3302 = vld [vmem:[#allocation8 + $0x988] sm:$0xf]
        %v3303 = vld [vmem:[#allocation8 + $0x990] sm:$0xf]
        %v3304 = vld [vmem:[#allocation8 + $0x998] sm:$0xf]
        %v3305 = vld [vmem:[#allocation8 + $0x9a0] sm:$0xf]
        %v3306 = vld [vmem:[#allocation8 + $0x9a8] sm:$0xf]
        %v3307 = vld [vmem:[#allocation8 + $0x9b0] sm:$0xf]
        %v3308 = vld [vmem:[#allocation8 + $0x9b8] sm:$0xf]
        %v3309 = vld [vmem:[#allocation8 + $0x9c0] sm:$0xf]
        %v3310 = vld [vmem:[#allocation8 + $0x9c8] sm:$0xf]
        %v3311 = vld [vmem:[#allocation8 + $0x9d0] sm:$0xf]
        %v3312 = vld [vmem:[#allocation8 + $0x9d8] sm:$0xf]
        %v3313 = vld [vmem:[#allocation8 + $0x9e0] sm:$0xf]
        %v3314 = vld [vmem:[#allocation8 + $0x9e8] sm:$0xf]
        %v3315 = vld [vmem:[#allocation8 + $0x9f0] sm:$0xf]
        %v3316 = vld [vmem:[#allocation8 + $0x9f8] sm:$0xf]
        %v3317 = vld [vmem:[%s309] sm:$0xf]
        %v3318 = vld [vmem:[%s309 + $0x4] sm:$0xf]
        %v3319 = vld [vmem:[%s309 + $0x8] sm:$0xf]
        %v3320 = vld [vmem:[%s309 + $0xc] sm:$0xf]
        %v3321 = vld [vmem:[%s309 + $0x10] sm:$0xf]
        %v3322 = vld [vmem:[%s309 + $0x14] sm:$0xf]
        %v3323 = vld [vmem:[%s309 + $0x18] sm:$0xf]
        %v3324 = vld [vmem:[%s309 + $0x1c] sm:$0xf]
        %v3325 = vld [vmem:[%s309 + $0x20] sm:$0xf]
        %v3326 = vld [vmem:[%s309 + $0x24] sm:$0xf]
        %v3327 = vld [vmem:[%s309 + $0x28] sm:$0xf]
        %v3328 = vunpack.c.l.bf16 %v3327
        %v3329 = vpack.c.bf16 %v2523, %v2519
        %v3330 = vpack.c.bf16 %v2525, %v2521
        %v3331 = vpack.c.bf16 %v2533, %v2529
        %v3332 = vpack.c.bf16 %v2535, %v2531
        %v3365 = vunpack.c.l.b16 %v2997
        %v3366 = vunpack.c.h.b16 %v2997
        %v3367 = vunpack.c.l.b16 %v2998
        %v3368 = vunpack.c.h.b16 %v2998
        %v3369 = vunpack.c.l.b16 %v2999
        %v3370 = vunpack.c.h.b16 %v2999
        %v3371 = vunpack.c.l.b16 %v3000
        %v3372 = vunpack.c.h.b16 %v3000
        %v3373 = vunpack.c.l.b16 %v3001
        %v3374 = vunpack.c.h.b16 %v3001
        %v3375 = vunpack.c.l.b16 %v3002
        %v3376 = vunpack.c.h.b16 %v3002
        %v3377 = vunpack.c.l.b16 %v3003
        %v3378 = vunpack.c.h.b16 %v3003
        %v3379 = vunpack.c.l.b16 %v3004
        %v3380 = vunpack.c.h.b16 %v3004
        %v3381 = vunpack.c.l.b16 %v3005
        %v3382 = vunpack.c.h.b16 %v3005
        %v3383 = vunpack.c.l.b16 %v3006
        %v3384 = vunpack.c.h.b16 %v3006
        %v3385 = vunpack.c.l.b16 %v3007
        %v3386 = vunpack.c.h.b16 %v3007
        %v3387 = vunpack.c.l.b16 %v3008
        %v3388 = vunpack.c.h.b16 %v3008
        %v3389 = vunpack.c.l.b16 %v3009
        %v3390 = vunpack.c.h.b16 %v3009
        %v3391 = vunpack.c.l.b16 %v3010
        %v3392 = vunpack.c.h.b16 %v3010
        %v3393 = vunpack.c.l.b16 %v3011
        %v3394 = vunpack.c.h.b16 %v3011
        %v3395 = vunpack.c.l.b16 %v3012
        %v3396 = vunpack.c.h.b16 %v3012
        %v3397 = vunpack.c.l.b16 %v3013
        %v3398 = vunpack.c.h.b16 %v3013
        %v3399 = vunpack.c.l.b16 %v3014
        %v3400 = vunpack.c.h.b16 %v3014
        %v3401 = vunpack.c.l.b16 %v3015
        %v3402 = vunpack.c.h.b16 %v3015
        %v3403 = vunpack.c.l.b16 %v3016
        %v3404 = vunpack.c.h.b16 %v3016
        %v3405 = vunpack.c.l.b16 %v3017
        %v3406 = vunpack.c.h.b16 %v3017
        %v3407 = vunpack.c.l.b16 %v3018
        %v3408 = vunpack.c.h.b16 %v3018
        %v3409 = vunpack.c.l.b16 %v3019
        %v3410 = vunpack.c.h.b16 %v3019
        %v3411 = vunpack.c.l.b16 %v3020
        %v3412 = vunpack.c.h.b16 %v3020
        %v3413 = vunpack.c.l.b16 %v3021
        %v3414 = vunpack.c.h.b16 %v3021
        %v3415 = vunpack.c.l.b16 %v3022
        %v3416 = vunpack.c.h.b16 %v3022
        %v3417 = vunpack.c.l.b16 %v3023
        %v3418 = vunpack.c.h.b16 %v3023
        %v3419 = vunpack.c.l.b16 %v3024
        %v3420 = vunpack.c.h.b16 %v3024
        %v3421 = vunpack.c.l.b16 %v3025
        %v3422 = vunpack.c.h.b16 %v3025
        %v3423 = vunpack.c.l.b16 %v3026
        %v3424 = vunpack.c.h.b16 %v3026
        %v3425 = vunpack.c.l.b16 %v3027
        %v3426 = vunpack.c.h.b16 %v3027
        %v3427 = vunpack.c.l.b16 %v3028
        %v3428 = vunpack.c.h.b16 %v3028
        %v3429 = vpack.c.b16 %v3367, %v3365
        %v3430 = vpack.c.b16 %v3368, %v3366
        %v3431 = vpack.c.b16 %v3371, %v3369
        %v3432 = vpack.c.b16 %v3372, %v3370
        %v3433 = vpack.c.b16 %v3375, %v3373
        %v3434 = vpack.c.b16 %v3376, %v3374
        %v3435 = vpack.c.b16 %v3379, %v3377
        %v3436 = vpack.c.b16 %v3380, %v3378
        %v3437 = vpack.c.b16 %v3383, %v3381
        %v3438 = vpack.c.b16 %v3384, %v3382
        %v3439 = vpack.c.b16 %v3387, %v3385
        %v3440 = vpack.c.b16 %v3388, %v3386
        %v3441 = vpack.c.b16 %v3391, %v3389
        %v3442 = vpack.c.b16 %v3392, %v3390
        %v3443 = vpack.c.b16 %v3395, %v3393
        %v3444 = vpack.c.b16 %v3396, %v3394
        %v3445 = vpack.c.b16 %v3399, %v3397
        %v3446 = vpack.c.b16 %v3400, %v3398
        %v3447 = vpack.c.b16 %v3403, %v3401
        %v3448 = vpack.c.b16 %v3404, %v3402
        %v3449 = vpack.c.b16 %v3407, %v3405
        %v3450 = vpack.c.b16 %v3408, %v3406
        %v3451 = vpack.c.b16 %v3411, %v3409
        %v3452 = vpack.c.b16 %v3412, %v3410
        %v3453 = vpack.c.b16 %v3415, %v3413
        %v3454 = vpack.c.b16 %v3416, %v3414
        %v3455 = vpack.c.b16 %v3419, %v3417
        %v3456 = vpack.c.b16 %v3420, %v3418
        %v3457 = vpack.c.b16 %v3423, %v3421
        %v3458 = vpack.c.b16 %v3424, %v3422
        %v3459 = vpack.c.b16 %v3427, %v3425
        %v3460 = vpack.c.b16 %v3428, %v3426
        %3493 = vmatprep.subr.bf16.mxu0 %v3430
        %3494 = vmatpush1.bf16.msra.mxu0 %v3429
        %3495 = vmatprep.subr.bf16.mxu0 %v3432
        %3496 = vmatpush1.bf16.msra.mxu0 %v3431
        %3497 = vmatprep.subr.bf16.mxu0 %v3434
        %3498 = vmatpush1.bf16.msra.mxu0 %v3433
        %3499 = vmatprep.subr.bf16.mxu0 %v3436
        %3500 = vmatpush1.bf16.msra.mxu0 %v3435
        %3501 = vmatprep.subr.bf16.mxu0 %v3438
        %3502 = vmatpush1.bf16.msra.mxu0 %v3437
        %3503 = vmatprep.subr.bf16.mxu0 %v3440
        %3504 = vmatpush1.bf16.msra.mxu0 %v3439
        %3505 = vmatprep.subr.bf16.mxu0 %v3442
        %3506 = vmatpush1.bf16.msra.mxu0 %v3441
        %3507 = vmatprep.subr.bf16.mxu0 %v3444
        %3508 = vmatpush1.bf16.msra.mxu0 %v3443
        %3509 = vmatprep.subr.bf16.mxu0 %v3446
        %3510 = vmatpush1.bf16.msra.mxu0 %v3445
        %3511 = vmatprep.subr.bf16.mxu0 %v3448
        %3512 = vmatpush1.bf16.msra.mxu0 %v3447
        %3513 = vmatprep.subr.bf16.mxu0 %v3450
        %3514 = vmatpush1.bf16.msra.mxu0 %v3449
        %3515 = vmatprep.subr.bf16.mxu0 %v3452
        %3516 = vmatpush1.bf16.msra.mxu0 %v3451
        %3517 = vmatprep.subr.bf16.mxu0 %v3454
        %3518 = vmatpush1.bf16.msra.mxu0 %v3453
        %3519 = vmatprep.subr.bf16.mxu0 %v3456
        %3520 = vmatpush1.bf16.msra.mxu0 %v3455
        %3521 = vmatprep.subr.bf16.mxu0 %v3458
        %3522 = vmatpush1.bf16.msra.mxu0 %v3457
        %3523 = vmatprep.subr.bf16.mxu0 %v3460
        %3524 = vmatpush1.bf16.msra.mxu0 %v3459
        %3525 = vmatprep.mubr.bf16.mxu0 %v3330
        %3526 = vmatmul.mubr.bf16.gmra.mrb[0].mxu0 %v3329
        %v3527 = vpop.f32.mrb[0].mxu0
        %v3528 = vadd.f32 0.0, %v3527
        %v3529 = vpop.f32.mrb[0].mxu0
        %v3530 = vadd.f32 0.0, %v3529
        %v3531 = vpop.f32.mrb[0].mxu0
        %v3532 = vadd.f32 0.0, %v3531
        %v3533 = vpop.f32.mrb[0].mxu0
        %v3534 = vadd.f32 0.0, %v3533
        %3535 = vmatprep.mubr.bf16.mxu0 %v3332
        %3536 = vmatmul.mubr.bf16.gmra.mrb[0].mxu0 %v3331
        %v3537 = vpop.f32.mrb[0].mxu0
        %v3538 = vadd.f32 0.0, %v3537
        %v3539 = vpop.f32.mrb[0].mxu0
        %v3540 = vadd.f32 0.0, %v3539
        %v3541 = vpop.f32.mrb[0].mxu0
        %v3542 = vadd.f32 0.0, %v3541
        %v3543 = vpop.f32.mrb[0].mxu0
        %v3544 = vadd.f32 0.0, %v3543
        %3545 = vdwg.mxu0
        %v3546 = vpack.c.bf16 %v2543, %v2539
        %v3547 = vpack.c.bf16 %v2545, %v2541
        %v3548 = vpack.c.bf16 %v2553, %v2549
        %v3549 = vpack.c.bf16 %v2555, %v2551
        %v3582 = vunpack.c.l.b16 %v3061
        %v3583 = vunpack.c.h.b16 %v3061
        %v3584 = vunpack.c.l.b16 %v3062
        %v3585 = vunpack.c.h.b16 %v3062
        %v3586 = vunpack.c.l.b16 %v3063
        %v3587 = vunpack.c.h.b16 %v3063
        %v3588 = vunpack.c.l.b16 %v3064
        %v3589 = vunpack.c.h.b16 %v3064
        %v3590 = vunpack.c.l.b16 %v3065
        %v3591 = vunpack.c.h.b16 %v3065
        %v3592 = vunpack.c.l.b16 %v3066
        %v3593 = vunpack.c.h.b16 %v3066
        %v3594 = vunpack.c.l.b16 %v3067
        %v3595 = vunpack.c.h.b16 %v3067
        %v3596 = vunpack.c.l.b16 %v3068
        %v3597 = vunpack.c.h.b16 %v3068
        %v3598 = vunpack.c.l.b16 %v3069
        %v3599 = vunpack.c.h.b16 %v3069
        %v3600 = vunpack.c.l.b16 %v3070
        %v3601 = vunpack.c.h.b16 %v3070
        %v3602 = vunpack.c.l.b16 %v3071
        %v3603 = vunpack.c.h.b16 %v3071
        %v3604 = vunpack.c.l.b16 %v3072
        %v3605 = vunpack.c.h.b16 %v3072
        %v3606 = vunpack.c.l.b16 %v3073
        %v3607 = vunpack.c.h.b16 %v3073
        %v3608 = vunpack.c.l.b16 %v3074
        %v3609 = vunpack.c.h.b16 %v3074
        %v3610 = vunpack.c.l.b16 %v3075
        %v3611 = vunpack.c.h.b16 %v3075
        %v3612 = vunpack.c.l.b16 %v3076
        %v3613 = vunpack.c.h.b16 %v3076
        %v3614 = vunpack.c.l.b16 %v3077
        %v3615 = vunpack.c.h.b16 %v3077
        %v3616 = vunpack.c.l.b16 %v3078
        %v3617 = vunpack.c.h.b16 %v3078
        %v3618 = vunpack.c.l.b16 %v3079
        %v3619 = vunpack.c.h.b16 %v3079
        %v3620 = vunpack.c.l.b16 %v3080
        %v3621 = vunpack.c.h.b16 %v3080
        %v3622 = vunpack.c.l.b16 %v3081
        %v3623 = vunpack.c.h.b16 %v3081
        %v3624 = vunpack.c.l.b16 %v3082
        %v3625 = vunpack.c.h.b16 %v3082
        %v3626 = vunpack.c.l.b16 %v3083
        %v3627 = vunpack.c.h.b16 %v3083
        %v3628 = vunpack.c.l.b16 %v3084
        %v3629 = vunpack.c.h.b16 %v3084
        %v3630 = vunpack.c.l.b16 %v3085
        %v3631 = vunpack.c.h.b16 %v3085
        %v3632 = vunpack.c.l.b16 %v3086
        %v3633 = vunpack.c.h.b16 %v3086
        %v3634 = vunpack.c.l.b16 %v3087
        %v3635 = vunpack.c.h.b16 %v3087
        %v3636 = vunpack.c.l.b16 %v3088
        %v3637 = vunpack.c.h.b16 %v3088
        %v3638 = vunpack.c.l.b16 %v3089
        %v3639 = vunpack.c.h.b16 %v3089
        %v3640 = vunpack.c.l.b16 %v3090
        %v3641 = vunpack.c.h.b16 %v3090
        %v3642 = vunpack.c.l.b16 %v3091
        %v3643 = vunpack.c.h.b16 %v3091
        %v3644 = vunpack.c.l.b16 %v3092
        %v3645 = vunpack.c.h.b16 %v3092
        %v3646 = vpack.c.b16 %v3584, %v3582
        %v3647 = vpack.c.b16 %v3585, %v3583
        %v3648 = vpack.c.b16 %v3588, %v3586
        %v3649 = vpack.c.b16 %v3589, %v3587
        %v3650 = vpack.c.b16 %v3592, %v3590
        %v3651 = vpack.c.b16 %v3593, %v3591
        %v3652 = vpack.c.b16 %v3596, %v3594
        %v3653 = vpack.c.b16 %v3597, %v3595
        %v3654 = vpack.c.b16 %v3600, %v3598
        %v3655 = vpack.c.b16 %v3601, %v3599
        %v3656 = vpack.c.b16 %v3604, %v3602
        %v3657 = vpack.c.b16 %v3605, %v3603
        %v3658 = vpack.c.b16 %v3608, %v3606
        %v3659 = vpack.c.b16 %v3609, %v3607
        %v3660 = vpack.c.b16 %v3612, %v3610
        %v3661 = vpack.c.b16 %v3613, %v3611
        %v3662 = vpack.c.b16 %v3616, %v3614
        %v3663 = vpack.c.b16 %v3617, %v3615
        %v3664 = vpack.c.b16 %v3620, %v3618
        %v3665 = vpack.c.b16 %v3621, %v3619
        %v3666 = vpack.c.b16 %v3624, %v3622
        %v3667 = vpack.c.b16 %v3625, %v3623
        %v3668 = vpack.c.b16 %v3628, %v3626
        %v3669 = vpack.c.b16 %v3629, %v3627
        %v3670 = vpack.c.b16 %v3632, %v3630
        %v3671 = vpack.c.b16 %v3633, %v3631
        %v3672 = vpack.c.b16 %v3636, %v3634
        %v3673 = vpack.c.b16 %v3637, %v3635
        %v3674 = vpack.c.b16 %v3640, %v3638
        %v3675 = vpack.c.b16 %v3641, %v3639
        %v3676 = vpack.c.b16 %v3644, %v3642
        %v3677 = vpack.c.b16 %v3645, %v3643
        %3710 = vmatprep.subr.bf16.mxu0 %v3647
        %3711 = vmatpush1.bf16.msra.mxu0 %v3646
        %3712 = vmatprep.subr.bf16.mxu0 %v3649
        %3713 = vmatpush1.bf16.msra.mxu0 %v3648
        %3714 = vmatprep.subr.bf16.mxu0 %v3651
        %3715 = vmatpush1.bf16.msra.mxu0 %v3650
        %3716 = vmatprep.subr.bf16.mxu0 %v3653
        %3717 = vmatpush1.bf16.msra.mxu0 %v3652
        %3718 = vmatprep.subr.bf16.mxu0 %v3655
        %3719 = vmatpush1.bf16.msra.mxu0 %v3654
        %3720 = vmatprep.subr.bf16.mxu0 %v3657
        %3721 = vmatpush1.bf16.msra.mxu0 %v3656
        %3722 = vmatprep.subr.bf16.mxu0 %v3659
        %3723 = vmatpush1.bf16.msra.mxu0 %v3658
        %3724 = vmatprep.subr.bf16.mxu0 %v3661
        %3725 = vmatpush1.bf16.msra.mxu0 %v3660
        %3726 = vmatprep.subr.bf16.mxu0 %v3663
        %3727 = vmatpush1.bf16.msra.mxu0 %v3662
        %3728 = vmatprep.subr.bf16.mxu0 %v3665
        %3729 = vmatpush1.bf16.msra.mxu0 %v3664
        %3730 = vmatprep.subr.bf16.mxu0 %v3667
        %3731 = vmatpush1.bf16.msra.mxu0 %v3666
        %3732 = vmatprep.subr.bf16.mxu0 %v3669
        %3733 = vmatpush1.bf16.msra.mxu0 %v3668
        %3734 = vmatprep.subr.bf16.mxu0 %v3671
        %3735 = vmatpush1.bf16.msra.mxu0 %v3670
        %3736 = vmatprep.subr.bf16.mxu0 %v3673
        %3737 = vmatpush1.bf16.msra.mxu0 %v3672
        %3738 = vmatprep.subr.bf16.mxu0 %v3675
        %3739 = vmatpush1.bf16.msra.mxu0 %v3674
        %3740 = vmatprep.subr.bf16.mxu0 %v3677
        %3741 = vmatpush1.bf16.msra.mxu0 %v3676
        %3742 = vmatprep.mubr.bf16.mxu0 %v3547
        %3743 = vmatmul.mubr.bf16.gmra.mrb[0].mxu0 %v3546
        %v3744 = vpop.f32.mrb[0].mxu0
        %v3745 = vadd.f32 0.0, %v3744
        %v3746 = vpop.f32.mrb[0].mxu0
        %v3747 = vadd.f32 0.0, %v3746
        %v3748 = vpop.f32.mrb[0].mxu0
        %v3749 = vadd.f32 0.0, %v3748
        %v3750 = vpop.f32.mrb[0].mxu0
        %v3751 = vadd.f32 0.0, %v3750
        %3752 = vmatprep.mubr.bf16.mxu0 %v3549
        %3753 = vmatmul.mubr.bf16.gmra.mrb[0].mxu0 %v3548
        %v3754 = vpop.f32.mrb[0].mxu0
        %v3755 = vadd.f32 0.0, %v3754
        %v3756 = vpop.f32.mrb[0].mxu0
        %v3757 = vadd.f32 0.0, %v3756
        %v3758 = vpop.f32.mrb[0].mxu0
        %v3759 = vadd.f32 0.0, %v3758
        %v3760 = vpop.f32.mrb[0].mxu0
        %v3761 = vadd.f32 0.0, %v3760
        %3762 = vdwg.mxu0
        %v3763 = vpack.c.bf16 %v3532, %v3528
        %v3764 = vpack.c.bf16 %v3534, %v3530
        %v3765 = vpack.c.bf16 %v3542, %v3538
        %v3766 = vpack.c.bf16 %v3544, %v3540
        %v3767 = vpack.c.bf16 %v3749, %v3745
        %v3768 = vpack.c.bf16 %v3751, %v3747
        %v3769 = vpack.c.bf16 %v3759, %v3755
        %v3770 = vpack.c.bf16 %v3761, %v3757
        %v3779 = vunpack.c.l.b16 %v3317
        %v3780 = vunpack.c.l.b16 %v3318
        %v3781 = vunpack.c.l.b16 %v3319
        %v3782 = vunpack.c.l.b16 %v3320
        %v3783 = vunpack.c.l.b16 %v3321
        %v3784 = vunpack.c.l.b16 %v3322
        %v3785 = vunpack.c.l.b16 %v3323
        %v3786 = vunpack.c.l.b16 %v3324
        %v3787 = vpack.c.b16 %v3780, %v3779
        %v3788 = vpack.c.b16 %v3782, %v3781
        %v3789 = vpack.c.b16 %v3784, %v3783
        %v3790 = vpack.c.b16 %v3786, %v3785
        %vm3791 = vcmask 523264
        %v3793 = vsel %vm3791, %v3787, 0
        %v3796 = vsel %vm3791, %v3788, 0
        %v3799 = vsel %vm3791, %v3789, 0
        %v3802 = vsel %vm3791, %v3790, 0
        %3804 = vmatprep.subr.bf16.mxu0 %v3764
        %3805 = vmatpush1.bf16.msra.mxu0 %v3763
        %3806 = vmatprep.subr.bf16.mxu0 %v3766
        %3807 = vmatpush1.bf16.msra.mxu0 %v3765
        %3808 = vmatprep.subr.bf16.mxu0 %v3768
        %3809 = vmatpush1.bf16.msra.mxu0 %v3767
        %3810 = vmatprep.subr.bf16.mxu0 %v3770
        %3811 = vmatpush1.bf16.msra.mxu0 %v3769
        %3812 = vmatprep.subr.bf16.mxu0 0
        %3813 = vmatpush1.bf16.msra.mxu0 0
        %3814 = vmatprep.subr.bf16.mxu0 0
        %3815 = vmatpush1.bf16.msra.mxu0 0
        %3816 = vmatprep.subr.bf16.mxu0 0
        %3817 = vmatpush1.bf16.msra.mxu0 0
        %3818 = vmatprep.subr.bf16.mxu0 0
        %3819 = vmatpush1.bf16.msra.mxu0 0
        %3820 = vmatprep.subr.bf16.mxu0 0
        %3821 = vmatpush1.bf16.msra.mxu0 0
        %3822 = vmatprep.subr.bf16.mxu0 0
        %3823 = vmatpush1.bf16.msra.mxu0 0
        %3824 = vmatprep.subr.bf16.mxu0 0
        %3825 = vmatpush1.bf16.msra.mxu0 0
        %3826 = vmatprep.subr.bf16.mxu0 0
        %3827 = vmatpush1.bf16.msra.mxu0 0
        %3828 = vmatprep.subr.bf16.mxu0 0
        %3829 = vmatpush1.bf16.msra.mxu0 0
        %3830 = vmatprep.subr.bf16.mxu0 0
        %3831 = vmatpush1.bf16.msra.mxu0 0
        %3832 = vmatprep.subr.bf16.mxu0 0
        %3833 = vmatpush1.bf16.msra.mxu0 0
        %3834 = vmatprep.subr.bf16.mxu0 0
        %3835 = vmatpush1.bf16.msra.mxu0 0
        %3836 = vmatprep.mubr.bf16.mxu0 0
        %3837 = vmatmul.mubr.bf16.gmra.mrb[0].mxu0 %v3793
        %v3838 = vpop.f32.mrb[0].mxu0
        %v3839 = vadd.f32 0.0, %v3838
        %v3840 = vpop.f32.mrb[0].mxu0
        %v3841 = vadd.f32 0.0, %v3840
        %v3842 = vpop.f32.mrb[0].mxu0
        %v3843 = vadd.f32 0.0, %v3842
        %v3844 = vpop.f32.mrb[0].mxu0
        %v3845 = vadd.f32 0.0, %v3844
        %3846 = vmatprep.mubr.bf16.mxu0 0
        %3847 = vmatmul.mubr.bf16.gmra.mrb[0].mxu0 %v3796
        %v3848 = vpop.f32.mrb[0].mxu0
        %v3849 = vadd.f32 0.0, %v3848
        %v3850 = vpop.f32.mrb[0].mxu0
        %v3851 = vadd.f32 0.0, %v3850
        %v3852 = vpop.f32.mrb[0].mxu0
        %v3853 = vadd.f32 0.0, %v3852
        %v3854 = vpop.f32.mrb[0].mxu0
        %v3855 = vadd.f32 0.0, %v3854
        %3856 = vmatprep.mubr.bf16.mxu0 0
        %3857 = vmatmul.mubr.bf16.gmra.mrb[0].mxu0 %v3799
        %v3858 = vpop.f32.mrb[0].mxu0
        %v3859 = vadd.f32 0.0, %v3858
        %v3860 = vpop.f32.mrb[0].mxu0
        %v3861 = vadd.f32 0.0, %v3860
        %v3862 = vpop.f32.mrb[0].mxu0
        %v3863 = vadd.f32 0.0, %v3862
        %v3864 = vpop.f32.mrb[0].mxu0
        %v3865 = vadd.f32 0.0, %v3864
        %3866 = vmatprep.mubr.bf16.mxu0 0
        %3867 = vmatmul.mubr.bf16.gmra.mrb[0].mxu0 %v3802
        %v3868 = vpop.f32.mrb[0].mxu0
        %v3869 = vadd.f32 0.0, %v3868
        %v3870 = vpop.f32.mrb[0].mxu0
        %v3871 = vadd.f32 0.0, %v3870
        %v3872 = vpop.f32.mrb[0].mxu0
        %v3873 = vadd.f32 0.0, %v3872
        %v3874 = vpop.f32.mrb[0].mxu0
        %v3875 = vadd.f32 0.0, %v3874
        %3876 = vdwg.mxu0
        %v3877 = vmax.f32 %v3839, 0.0
        %v3878 = vmax.f32 %v3841, 0.0
        %v3879 = vmax.f32 %v3843, 0.0
        %v3880 = vmax.f32 %v3845, 0.0
        %v3881 = vmax.f32 %v3849, 0.0
        %v3882 = vmax.f32 %v3851, 0.0
        %v3883 = vmax.f32 %v3853, 0.0
        %v3884 = vmax.f32 %v3855, 0.0
        %v3885 = vmax.f32 %v3859, 0.0
        %v3886 = vmax.f32 %v3861, 0.0
        %v3887 = vmax.f32 %v3863, 0.0
        %v3888 = vmax.f32 %v3865, 0.0
        %v3889 = vmax.f32 %v3869, 0.0
        %v3890 = vmax.f32 %v3871, 0.0
        %v3891 = vmax.f32 %v3873, 0.0
        %v3892 = vmax.f32 %v3875, 0.0
        %v3893 = vpack.c.bf16 %v3879, %v3877
        %v3894 = vpack.c.bf16 %v3880, %v3878
        %v3895 = vpack.c.bf16 %v3883, %v3881
        %v3896 = vpack.c.bf16 %v3884, %v3882
        %v3929 = vunpack.c.l.b16 %v3029
        %v3930 = vunpack.c.h.b16 %v3029
        %v3931 = vunpack.c.l.b16 %v3030
        %v3932 = vunpack.c.h.b16 %v3030
        %v3933 = vunpack.c.l.b16 %v3031
        %v3934 = vunpack.c.h.b16 %v3031
        %v3935 = vunpack.c.l.b16 %v3032
        %v3936 = vunpack.c.h.b16 %v3032
        %v3937 = vunpack.c.l.b16 %v3033
        %v3938 = vunpack.c.h.b16 %v3033
        %v3939 = vunpack.c.l.b16 %v3034
        %v3940 = vunpack.c.h.b16 %v3034
        %v3941 = vunpack.c.l.b16 %v3035
        %v3942 = vunpack.c.h.b16 %v3035
        %v3943 = vunpack.c.l.b16 %v3036
        %v3944 = vunpack.c.h.b16 %v3036
        %v3945 = vunpack.c.l.b16 %v3037
        %v3946 = vunpack.c.h.b16 %v3037
        %v3947 = vunpack.c.l.b16 %v3038
        %v3948 = vunpack.c.h.b16 %v3038
        %v3949 = vunpack.c.l.b16 %v3039
        %v3950 = vunpack.c.h.b16 %v3039
        %v3951 = vunpack.c.l.b16 %v3040
        %v3952 = vunpack.c.h.b16 %v3040
        %v3953 = vunpack.c.l.b16 %v3041
        %v3954 = vunpack.c.h.b16 %v3041
        %v3955 = vunpack.c.l.b16 %v3042
        %v3956 = vunpack.c.h.b16 %v3042
        %v3957 = vunpack.c.l.b16 %v3043
        %v3958 = vunpack.c.h.b16 %v3043
        %v3959 = vunpack.c.l.b16 %v3044
        %v3960 = vunpack.c.h.b16 %v3044
        %v3961 = vunpack.c.l.b16 %v3045
        %v3962 = vunpack.c.h.b16 %v3045
        %v3963 = vunpack.c.l.b16 %v3046
        %v3964 = vunpack.c.h.b16 %v3046
        %v3965 = vunpack.c.l.b16 %v3047
        %v3966 = vunpack.c.h.b16 %v3047
        %v3967 = vunpack.c.l.b16 %v3048
        %v3968 = vunpack.c.h.b16 %v3048
        %v3969 = vunpack.c.l.b16 %v3049
        %v3970 = vunpack.c.h.b16 %v3049
        %v3971 = vunpack.c.l.b16 %v3050
        %v3972 = vunpack.c.h.b16 %v3050
        %v3973 = vunpack.c.l.b16 %v3051
        %v3974 = vunpack.c.h.b16 %v3051
        %v3975 = vunpack.c.l.b16 %v3052
        %v3976 = vunpack.c.h.b16 %v3052
        %v3977 = vunpack.c.l.b16 %v3053
        %v3978 = vunpack.c.h.b16 %v3053
        %v3979 = vunpack.c.l.b16 %v3054
        %v3980 = vunpack.c.h.b16 %v3054
        %v3981 = vunpack.c.l.b16 %v3055
        %v3982 = vunpack.c.h.b16 %v3055
        %v3983 = vunpack.c.l.b16 %v3056
        %v3984 = vunpack.c.h.b16 %v3056
        %v3985 = vunpack.c.l.b16 %v3057
        %v3986 = vunpack.c.h.b16 %v3057
        %v3987 = vunpack.c.l.b16 %v3058
        %v3988 = vunpack.c.h.b16 %v3058
        %v3989 = vunpack.c.l.b16 %v3059
        %v3990 = vunpack.c.h.b16 %v3059
        %v3991 = vunpack.c.l.b16 %v3060
        %v3992 = vunpack.c.h.b16 %v3060
        %v3993 = vpack.c.b16 %v3931, %v3929
        %v3994 = vpack.c.b16 %v3932, %v3930
        %v3995 = vpack.c.b16 %v3935, %v3933
        %v3996 = vpack.c.b16 %v3936, %v3934
        %v3997 = vpack.c.b16 %v3939, %v3937
        %v3998 = vpack.c.b16 %v3940, %v3938
        %v3999 = vpack.c.b16 %v3943, %v3941
        %v4000 = vpack.c.b16 %v3944, %v3942
        %v4001 = vpack.c.b16 %v3947, %v3945
        %v4002 = vpack.c.b16 %v3948, %v3946
        %v4003 = vpack.c.b16 %v3951, %v3949
        %v4004 = vpack.c.b16 %v3952, %v3950
        %v4005 = vpack.c.b16 %v3955, %v3953
        %v4006 = vpack.c.b16 %v3956, %v3954
        %v4007 = vpack.c.b16 %v3959, %v3957
        %v4008 = vpack.c.b16 %v3960, %v3958
        %v4009 = vpack.c.b16 %v3963, %v3961
        %v4010 = vpack.c.b16 %v3964, %v3962
        %v4011 = vpack.c.b16 %v3967, %v3965
        %v4012 = vpack.c.b16 %v3968, %v3966
        %v4013 = vpack.c.b16 %v3971, %v3969
        %v4014 = vpack.c.b16 %v3972, %v3970
        %v4015 = vpack.c.b16 %v3975, %v3973
        %v4016 = vpack.c.b16 %v3976, %v3974
        %v4017 = vpack.c.b16 %v3979, %v3977
        %v4018 = vpack.c.b16 %v3980, %v3978
        %v4019 = vpack.c.b16 %v3983, %v3981
        %v4020 = vpack.c.b16 %v3984, %v3982
        %v4021 = vpack.c.b16 %v3987, %v3985
        %v4022 = vpack.c.b16 %v3988, %v3986
        %v4023 = vpack.c.b16 %v3991, %v3989
        %v4024 = vpack.c.b16 %v3992, %v3990
        %4057 = vmatprep.subr.bf16.mxu0 %v3994
        %4058 = vmatpush1.bf16.msra.mxu0 %v3993
        %4059 = vmatprep.subr.bf16.mxu0 %v3996
        %4060 = vmatpush1.bf16.msra.mxu0 %v3995
        %4061 = vmatprep.subr.bf16.mxu0 %v3998
        %4062 = vmatpush1.bf16.msra.mxu0 %v3997
        %4063 = vmatprep.subr.bf16.mxu0 %v4000
        %4064 = vmatpush1.bf16.msra.mxu0 %v3999
        %4065 = vmatprep.subr.bf16.mxu0 %v4002
        %4066 = vmatpush1.bf16.msra.mxu0 %v4001
        %4067 = vmatprep.subr.bf16.mxu0 %v4004
        %4068 = vmatpush1.bf16.msra.mxu0 %v4003
        %4069 = vmatprep.subr.bf16.mxu0 %v4006
        %4070 = vmatpush1.bf16.msra.mxu0 %v4005
        %4071 = vmatprep.subr.bf16.mxu0 %v4008
        %4072 = vmatpush1.bf16.msra.mxu0 %v4007
        %4073 = vmatprep.subr.bf16.mxu0 %v4010
        %4074 = vmatpush1.bf16.msra.mxu0 %v4009
        %4075 = vmatprep.subr.bf16.mxu0 %v4012
        %4076 = vmatpush1.bf16.msra.mxu0 %v4011
        %4077 = vmatprep.subr.bf16.mxu0 %v4014
        %4078 = vmatpush1.bf16.msra.mxu0 %v4013
        %4079 = vmatprep.subr.bf16.mxu0 %v4016
        %4080 = vmatpush1.bf16.msra.mxu0 %v4015
        %4081 = vmatprep.subr.bf16.mxu0 %v4018
        %4082 = vmatpush1.bf16.msra.mxu0 %v4017
        %4083 = vmatprep.subr.bf16.mxu0 %v4020
        %4084 = vmatpush1.bf16.msra.mxu0 %v4019
        %4085 = vmatprep.subr.bf16.mxu0 %v4022
        %4086 = vmatpush1.bf16.msra.mxu0 %v4021
        %4087 = vmatprep.subr.bf16.mxu0 %v4024
        %4088 = vmatpush1.bf16.msra.mxu0 %v4023
        %4089 = vmatprep.mubr.bf16.mxu0 %v3894
        %4090 = vmatmul.mubr.bf16.gmra.mrb[0].mxu0 %v3893
        %v4091 = vpop.f32.mrb[0].mxu0
        %v4092 = vadd.f32 0.0, %v4091
        %v4093 = vpop.f32.mrb[0].mxu0
        %v4094 = vadd.f32 0.0, %v4093
        %v4095 = vpop.f32.mrb[0].mxu0
        %v4096 = vadd.f32 0.0, %v4095
        %v4097 = vpop.f32.mrb[0].mxu0
        %v4098 = vadd.f32 0.0, %v4097
        %4099 = vmatprep.mubr.bf16.mxu0 %v3896
        %4100 = vmatmul.mubr.bf16.gmra.mrb[0].mxu0 %v3895
        %v4101 = vpop.f32.mrb[0].mxu0
        %v4102 = vadd.f32 0.0, %v4101
        %v4103 = vpop.f32.mrb[0].mxu0
        %v4104 = vadd.f32 0.0, %v4103
        %v4105 = vpop.f32.mrb[0].mxu0
        %v4106 = vadd.f32 0.0, %v4105
        %v4107 = vpop.f32.mrb[0].mxu0
        %v4108 = vadd.f32 0.0, %v4107
        %4109 = vdwg.mxu0
        %v4110 = vpack.c.bf16 %v3887, %v3885
        %v4111 = vpack.c.bf16 %v3888, %v3886
        %v4112 = vpack.c.bf16 %v3891, %v3889
        %v4113 = vpack.c.bf16 %v3892, %v3890
        %v4146 = vunpack.c.l.b16 %v3093
        %v4147 = vunpack.c.h.b16 %v3093
        %v4148 = vunpack.c.l.b16 %v3094
        %v4149 = vunpack.c.h.b16 %v3094
        %v4150 = vunpack.c.l.b16 %v3095
        %v4151 = vunpack.c.h.b16 %v3095
        %v4152 = vunpack.c.l.b16 %v3096
        %v4153 = vunpack.c.h.b16 %v3096
        %v4154 = vunpack.c.l.b16 %v3097
        %v4155 = vunpack.c.h.b16 %v3097
        %v4156 = vunpack.c.l.b16 %v3098
        %v4157 = vunpack.c.h.b16 %v3098
        %v4158 = vunpack.c.l.b16 %v3099
        %v4159 = vunpack.c.h.b16 %v3099
        %v4160 = vunpack.c.l.b16 %v3100
        %v4161 = vunpack.c.h.b16 %v3100
        %v4162 = vunpack.c.l.b16 %v3101
        %v4163 = vunpack.c.h.b16 %v3101
        %v4164 = vunpack.c.l.b16 %v3102
        %v4165 = vunpack.c.h.b16 %v3102
        %v4166 = vunpack.c.l.b16 %v3103
        %v4167 = vunpack.c.h.b16 %v3103
        %v4168 = vunpack.c.l.b16 %v3104
        %v4169 = vunpack.c.h.b16 %v3104
        %v4170 = vunpack.c.l.b16 %v3105
        %v4171 = vunpack.c.h.b16 %v3105
        %v4172 = vunpack.c.l.b16 %v3106
        %v4173 = vunpack.c.h.b16 %v3106
        %v4174 = vunpack.c.l.b16 %v3107
        %v4175 = vunpack.c.h.b16 %v3107
        %v4176 = vunpack.c.l.b16 %v3108
        %v4177 = vunpack.c.h.b16 %v3108
        %v4178 = vunpack.c.l.b16 %v3109
        %v4179 = vunpack.c.h.b16 %v3109
        %v4180 = vunpack.c.l.b16 %v3110
        %v4181 = vunpack.c.h.b16 %v3110
        %v4182 = vunpack.c.l.b16 %v3111
        %v4183 = vunpack.c.h.b16 %v3111
        %v4184 = vunpack.c.l.b16 %v3112
        %v4185 = vunpack.c.h.b16 %v3112
        %v4186 = vunpack.c.l.b16 %v3113
        %v4187 = vunpack.c.h.b16 %v3113
        %v4188 = vunpack.c.l.b16 %v3114
        %v4189 = vunpack.c.h.b16 %v3114
        %v4190 = vunpack.c.l.b16 %v3115
        %v4191 = vunpack.c.h.b16 %v3115
        %v4192 = vunpack.c.l.b16 %v3116
        %v4193 = vunpack.c.h.b16 %v3116
        %v4194 = vunpack.c.l.b16 %v3117
        %v4195 = vunpack.c.h.b16 %v3117
        %v4196 = vunpack.c.l.b16 %v3118
        %v4197 = vunpack.c.h.b16 %v3118
        %v4198 = vunpack.c.l.b16 %v3119
        %v4199 = vunpack.c.h.b16 %v3119
        %v4200 = vunpack.c.l.b16 %v3120
        %v4201 = vunpack.c.h.b16 %v3120
        %v4202 = vunpack.c.l.b16 %v3121
        %v4203 = vunpack.c.h.b16 %v3121
        %v4204 = vunpack.c.l.b16 %v3122
        %v4205 = vunpack.c.h.b16 %v3122
        %v4206 = vunpack.c.l.b16 %v3123
        %v4207 = vunpack.c.h.b16 %v3123
        %v4208 = vunpack.c.l.b16 %v3124
        %v4209 = vunpack.c.h.b16 %v3124
        %v4210 = vpack.c.b16 %v4148, %v4146
        %v4211 = vpack.c.b16 %v4149, %v4147
        %v4212 = vpack.c.b16 %v4152, %v4150
        %v4213 = vpack.c.b16 %v4153, %v4151
        %v4214 = vpack.c.b16 %v4156, %v4154
        %v4215 = vpack.c.b16 %v4157, %v4155
        %v4216 = vpack.c.b16 %v4160, %v4158
        %v4217 = vpack.c.b16 %v4161, %v4159
        %v4218 = vpack.c.b16 %v4164, %v4162
        %v4219 = vpack.c.b16 %v4165, %v4163
        %v4220 = vpack.c.b16 %v4168, %v4166
        %v4221 = vpack.c.b16 %v4169, %v4167
        %v4222 = vpack.c.b16 %v4172, %v4170
        %v4223 = vpack.c.b16 %v4173, %v4171
        %v4224 = vpack.c.b16 %v4176, %v4174
        %v4225 = vpack.c.b16 %v4177, %v4175
        %v4226 = vpack.c.b16 %v4180, %v4178
        %v4227 = vpack.c.b16 %v4181, %v4179
        %v4228 = vpack.c.b16 %v4184, %v4182
        %v4229 = vpack.c.b16 %v4185, %v4183
        %v4230 = vpack.c.b16 %v4188, %v4186
        %v4231 = vpack.c.b16 %v4189, %v4187
        %v4232 = vpack.c.b16 %v4192, %v4190
        %v4233 = vpack.c.b16 %v4193, %v4191
        %v4234 = vpack.c.b16 %v4196, %v4194
        %v4235 = vpack.c.b16 %v4197, %v4195
        %v4236 = vpack.c.b16 %v4200, %v4198
        %v4237 = vpack.c.b16 %v4201, %v4199
        %v4238 = vpack.c.b16 %v4204, %v4202
        %v4239 = vpack.c.b16 %v4205, %v4203
        %v4240 = vpack.c.b16 %v4208, %v4206
        %v4241 = vpack.c.b16 %v4209, %v4207
        %4274 = vmatprep.subr.bf16.mxu0 %v4211
        %4275 = vmatpush1.bf16.msra.mxu0 %v4210
        %4276 = vmatprep.subr.bf16.mxu0 %v4213
        %4277 = vmatpush1.bf16.msra.mxu0 %v4212
        %4278 = vmatprep.subr.bf16.mxu0 %v4215
        %4279 = vmatpush1.bf16.msra.mxu0 %v4214
        %4280 = vmatprep.subr.bf16.mxu0 %v4217
        %4281 = vmatpush1.bf16.msra.mxu0 %v4216
        %4282 = vmatprep.subr.bf16.mxu0 %v4219
        %4283 = vmatpush1.bf16.msra.mxu0 %v4218
        %4284 = vmatprep.subr.bf16.mxu0 %v4221
        %4285 = vmatpush1.bf16.msra.mxu0 %v4220
        %4286 = vmatprep.subr.bf16.mxu0 %v4223
        %4287 = vmatpush1.bf16.msra.mxu0 %v4222
        %4288 = vmatprep.subr.bf16.mxu0 %v4225
        %4289 = vmatpush1.bf16.msra.mxu0 %v4224
        %4290 = vmatprep.subr.bf16.mxu0 %v4227
        %4291 = vmatpush1.bf16.msra.mxu0 %v4226
        %4292 = vmatprep.subr.bf16.mxu0 %v4229
        %4293 = vmatpush1.bf16.msra.mxu0 %v4228
        %4294 = vmatprep.subr.bf16.mxu0 %v4231
        %4295 = vmatpush1.bf16.msra.mxu0 %v4230
        %4296 = vmatprep.subr.bf16.mxu0 %v4233
        %4297 = vmatpush1.bf16.msra.mxu0 %v4232
        %4298 = vmatprep.subr.bf16.mxu0 %v4235
        %4299 = vmatpush1.bf16.msra.mxu0 %v4234
        %4300 = vmatprep.subr.bf16.mxu0 %v4237
        %4301 = vmatpush1.bf16.msra.mxu0 %v4236
        %4302 = vmatprep.subr.bf16.mxu0 %v4239
        %4303 = vmatpush1.bf16.msra.mxu0 %v4238
        %4304 = vmatprep.subr.bf16.mxu0 %v4241
        %4305 = vmatpush1.bf16.msra.mxu0 %v4240
        %4306 = vmatprep.mubr.bf16.mxu0 %v4111
        %4307 = vmatmul.mubr.bf16.gmra.mrb[0].mxu0 %v4110
        %v4308 = vpop.f32.mrb[0].mxu0
        %v4309 = vadd.f32 0.0, %v4308
        %v4310 = vpop.f32.mrb[0].mxu0
        %v4311 = vadd.f32 0.0, %v4310
        %v4312 = vpop.f32.mrb[0].mxu0
        %v4313 = vadd.f32 0.0, %v4312
        %v4314 = vpop.f32.mrb[0].mxu0
        %v4315 = vadd.f32 0.0, %v4314
        %4316 = vmatprep.mubr.bf16.mxu0 %v4113
        %4317 = vmatmul.mubr.bf16.gmra.mrb[0].mxu0 %v4112
        %v4318 = vpop.f32.mrb[0].mxu0
        %v4319 = vadd.f32 0.0, %v4318
        %v4320 = vpop.f32.mrb[0].mxu0
        %v4321 = vadd.f32 0.0, %v4320
        %v4322 = vpop.f32.mrb[0].mxu0
        %v4323 = vadd.f32 0.0, %v4322
        %v4324 = vpop.f32.mrb[0].mxu0
        %v4325 = vadd.f32 0.0, %v4324
        %4326 = vdwg.mxu0
        %v4327 = vpack.c.bf16 %v4096, %v4092
        %v4328 = vpack.c.bf16 %v4098, %v4094
        %v4329 = vpack.c.bf16 %v4106, %v4102
        %v4330 = vpack.c.bf16 %v4108, %v4104
        %v4331 = vpack.c.bf16 %v4313, %v4309
        %v4332 = vpack.c.bf16 %v4315, %v4311
        %v4333 = vpack.c.bf16 %v4323, %v4319
        %v4334 = vpack.c.bf16 %v4325, %v4321
        %v4337 = vunpack.c.l.b16 %v3325
        %v4338 = vunpack.c.l.b16 %v3326
        %v4339 = vpack.c.b16 %v4338, %v4337
        %v4341 = vsel %vm3791, %v4339, 0
        %4343 = vmatprep.subr.bf16.mxu0 %v4328
        %4344 = vmatpush1.bf16.msra.mxu0 %v4327
        %4345 = vmatprep.subr.bf16.mxu0 %v4330
        %4346 = vmatpush1.bf16.msra.mxu0 %v4329
        %4347 = vmatprep.subr.bf16.mxu0 %v4332
        %4348 = vmatpush1.bf16.msra.mxu0 %v4331
        %4349 = vmatprep.subr.bf16.mxu0 %v4334
        %4350 = vmatpush1.bf16.msra.mxu0 %v4333
        %4351 = vmatprep.subr.bf16.mxu0 0
        %4352 = vmatpush1.bf16.msra.mxu0 0
        %4353 = vmatprep.subr.bf16.mxu0 0
        %4354 = vmatpush1.bf16.msra.mxu0 0
        %4355 = vmatprep.subr.bf16.mxu0 0
        %4356 = vmatpush1.bf16.msra.mxu0 0
        %4357 = vmatprep.subr.bf16.mxu0 0
        %4358 = vmatpush1.bf16.msra.mxu0 0
        %4359 = vmatprep.subr.bf16.mxu0 0
        %4360 = vmatpush1.bf16.msra.mxu0 0
        %4361 = vmatprep.subr.bf16.mxu0 0
        %4362 = vmatpush1.bf16.msra.mxu0 0
        %4363 = vmatprep.subr.bf16.mxu0 0
        %4364 = vmatpush1.bf16.msra.mxu0 0
        %4365 = vmatprep.subr.bf16.mxu0 0
        %4366 = vmatpush1.bf16.msra.mxu0 0
        %4367 = vmatprep.subr.bf16.mxu0 0
        %4368 = vmatpush1.bf16.msra.mxu0 0
        %4369 = vmatprep.subr.bf16.mxu0 0
        %4370 = vmatpush1.bf16.msra.mxu0 0
        %4371 = vmatprep.subr.bf16.mxu0 0
        %4372 = vmatpush1.bf16.msra.mxu0 0
        %4373 = vmatprep.subr.bf16.mxu0 0
        %4374 = vmatpush1.bf16.msra.mxu0 0
        %4375 = vmatprep.mubr.bf16.mxu0 0
        %4376 = vmatmul.mubr.bf16.gmra.mrb[0].mxu0 %v4341
        %v4377 = vpop.f32.mrb[0].mxu0
        %v4378 = vadd.f32 0.0, %v4377
        %v4379 = vpop.f32.mrb[0].mxu0
        %v4380 = vadd.f32 0.0, %v4379
        %v4381 = vpop.f32.mrb[0].mxu0
        %v4382 = vadd.f32 0.0, %v4381
        %v4383 = vpop.f32.mrb[0].mxu0
        %v4384 = vadd.f32 0.0, %v4383
        %4385 = vdwg.mxu0
        %v4386 = vpack.c.bf16 %v2559, %v2559
        %v4387 = vpack.c.bf16 %v2561, %v2561
        %v4388 = vpack.c.bf16 %v4378, %v4378
        %v4389 = vpack.c.bf16 %v4380, %v4380
        %v4390 = vpack.c.bf16 %v4382, %v4382
        %v4391 = vpack.c.bf16 %v4384, %v4384
        %v4392 = vpack.c.bf16 %v2774, %v2774
        %v4393 = vpack.c.bf16 %v2776, %v2776
        %v4394 = vpack.c.bf16 %v2991, %v2991
        %v4395 = vpack.c.bf16 %v2993, %v2993
        %v4396 = vld [vmem:[#allocation10] ss:$8 sm:$0x3]
        %v4398 = vlaneseq
        %v4399 = vshrl.u32 %v4398, 7
        %v4400 = vsub.s32 0, %v4399
        %v4401 = vrot.slane %v4396, %v4400
        %v4402 = vlaneseq
        %v4403 = vshrl.u32 %v4402, 7
        %v4404 = vsub.s32 1, %v4403
        %v4405 = vrot.slane %v4396, %v4404
        %v4568 = vunpack.c.l.b16 %v3125
        %v4569 = vunpack.c.h.b16 %v3125
        %v4570 = vunpack.c.l.b16 %v3126
        %v4571 = vunpack.c.h.b16 %v3126
        %v4572 = vunpack.c.l.b16 %v3127
        %v4573 = vunpack.c.h.b16 %v3127
        %v4574 = vunpack.c.l.b16 %v3128
        %v4575 = vunpack.c.h.b16 %v3128
        %v4576 = vunpack.c.l.b16 %v3129
        %v4577 = vunpack.c.h.b16 %v3129
        %v4578 = vunpack.c.l.b16 %v3130
        %v4579 = vunpack.c.h.b16 %v3130
        %v4580 = vunpack.c.l.b16 %v3131
        %v4581 = vunpack.c.h.b16 %v3131
        %v4582 = vunpack.c.l.b16 %v3132
        %v4583 = vunpack.c.h.b16 %v3132
        %v4584 = vunpack.c.l.b16 %v3133
        %v4585 = vunpack.c.h.b16 %v3133
        %v4586 = vunpack.c.l.b16 %v3134
        %v4587 = vunpack.c.h.b16 %v3134
        %v4588 = vunpack.c.l.b16 %v3135
        %v4589 = vunpack.c.h.b16 %v3135
        %v4590 = vunpack.c.l.b16 %v3136
        %v4591 = vunpack.c.h.b16 %v3136
        %v4592 = vunpack.c.l.b16 %v3137
        %v4593 = vunpack.c.h.b16 %v3137
        %v4594 = vunpack.c.l.b16 %v3138
        %v4595 = vunpack.c.h.b16 %v3138
        %v4596 = vunpack.c.l.b16 %v3139
        %v4597 = vunpack.c.h.b16 %v3139
        %v4598 = vunpack.c.l.b16 %v3140
        %v4599 = vunpack.c.h.b16 %v3140
        %v4600 = vunpack.c.l.b16 %v3141
        %v4601 = vunpack.c.h.b16 %v3141
        %v4602 = vunpack.c.l.b16 %v3142
        %v4603 = vunpack.c.h.b16 %v3142
        %v4604 = vunpack.c.l.b16 %v3143
        %v4605 = vunpack.c.h.b16 %v3143
        %v4606 = vunpack.c.l.b16 %v3144
        %v4607 = vunpack.c.h.b16 %v3144
        %v4608 = vunpack.c.l.b16 %v3145
        %v4609 = vunpack.c.h.b16 %v3145
        %v4610 = vunpack.c.l.b16 %v3146
        %v4611 = vunpack.c.h.b16 %v3146
        %v4612 = vunpack.c.l.b16 %v3147
        %v4613 = vunpack.c.h.b16 %v3147
        %v4614 = vunpack.c.l.b16 %v3148
        %v4615 = vunpack.c.h.b16 %v3148
        %v4616 = vunpack.c.l.b16 %v3149
        %v4617 = vunpack.c.h.b16 %v3149
        %v4618 = vunpack.c.l.b16 %v3150
        %v4619 = vunpack.c.h.b16 %v3150
        %v4620 = vunpack.c.l.b16 %v3151
        %v4621 = vunpack.c.h.b16 %v3151
        %v4622 = vunpack.c.l.b16 %v3152
        %v4623 = vunpack.c.h.b16 %v3152
        %v4624 = vunpack.c.l.b16 %v3153
        %v4625 = vunpack.c.h.b16 %v3153
        %v4626 = vunpack.c.l.b16 %v3154
        %v4627 = vunpack.c.h.b16 %v3154
        %v4628 = vunpack.c.l.b16 %v3155
        %v4629 = vunpack.c.h.b16 %v3155
        %v4630 = vunpack.c.l.b16 %v3156
        %v4631 = vunpack.c.h.b16 %v3156
        %v4632 = vunpack.c.l.b16 %v3157
        %v4633 = vunpack.c.h.b16 %v3157
        %v4634 = vunpack.c.l.b16 %v3158
        %v4635 = vunpack.c.h.b16 %v3158
        %v4636 = vunpack.c.l.b16 %v3159
        %v4637 = vunpack.c.h.b16 %v3159
        %v4638 = vunpack.c.l.b16 %v3160
        %v4639 = vunpack.c.h.b16 %v3160
        %v4640 = vunpack.c.l.b16 %v3161
        %v4641 = vunpack.c.h.b16 %v3161
        %v4642 = vunpack.c.l.b16 %v3162
        %v4643 = vunpack.c.h.b16 %v3162
        %v4644 = vunpack.c.l.b16 %v3163
        %v4645 = vunpack.c.h.b16 %v3163
        %v4646 = vunpack.c.l.b16 %v3164
        %v4647 = vunpack.c.h.b16 %v3164
        %v4648 = vunpack.c.l.b16 %v3165
        %v4649 = vunpack.c.h.b16 %v3165
        %v4650 = vunpack.c.l.b16 %v3166
        %v4651 = vunpack.c.h.b16 %v3166
        %v4652 = vunpack.c.l.b16 %v3167
        %v4653 = vunpack.c.h.b16 %v3167
        %v4654 = vunpack.c.l.b16 %v3168
        %v4655 = vunpack.c.h.b16 %v3168
        %v4656 = vunpack.c.l.b16 %v3169
        %v4657 = vunpack.c.h.b16 %v3169
        %v4658 = vunpack.c.l.b16 %v3170
        %v4659 = vunpack.c.h.b16 %v3170
        %v4660 = vunpack.c.l.b16 %v3171
        %v4661 = vunpack.c.h.b16 %v3171
        %v4662 = vunpack.c.l.b16 %v3172
        %v4663 = vunpack.c.h.b16 %v3172
        %v4664 = vunpack.c.l.b16 %v3173
        %v4665 = vunpack.c.h.b16 %v3173
        %v4666 = vunpack.c.l.b16 %v3174
        %v4667 = vunpack.c.h.b16 %v3174
        %v4668 = vunpack.c.l.b16 %v3175
        %v4669 = vunpack.c.h.b16 %v3175
        %v4670 = vunpack.c.l.b16 %v3176
        %v4671 = vunpack.c.h.b16 %v3176
        %v4672 = vunpack.c.l.b16 %v3177
        %v4673 = vunpack.c.h.b16 %v3177
        %v4674 = vunpack.c.l.b16 %v3178
        %v4675 = vunpack.c.h.b16 %v3178
        %v4676 = vunpack.c.l.b16 %v3179
        %v4677 = vunpack.c.h.b16 %v3179
        %v4678 = vunpack.c.l.b16 %v3180
        %v4679 = vunpack.c.h.b16 %v3180
        %v4680 = vunpack.c.l.b16 %v3181
        %v4681 = vunpack.c.h.b16 %v3181
        %v4682 = vunpack.c.l.b16 %v3182
        %v4683 = vunpack.c.h.b16 %v3182
        %v4684 = vunpack.c.l.b16 %v3183
        %v4685 = vunpack.c.h.b16 %v3183
        %v4686 = vunpack.c.l.b16 %v3184
        %v4687 = vunpack.c.h.b16 %v3184
        %v4688 = vunpack.c.l.b16 %v3185
        %v4689 = vunpack.c.h.b16 %v3185
        %v4690 = vunpack.c.l.b16 %v3186
        %v4691 = vunpack.c.h.b16 %v3186
        %v4692 = vunpack.c.l.b16 %v3187
        %v4693 = vunpack.c.h.b16 %v3187
        %v4694 = vunpack.c.l.b16 %v3188
        %v4695 = vunpack.c.h.b16 %v3188
        %v4696 = vunpack.c.l.b16 %v3189
        %v4697 = vunpack.c.h.b16 %v3189
        %v4698 = vunpack.c.l.b16 %v3190
        %v4699 = vunpack.c.h.b16 %v3190
        %v4700 = vunpack.c.l.b16 %v3191
        %v4701 = vunpack.c.h.b16 %v3191
        %v4702 = vunpack.c.l.b16 %v3192
        %v4703 = vunpack.c.h.b16 %v3192
        %v4704 = vunpack.c.l.b16 %v3193
        %v4705 = vunpack.c.h.b16 %v3193
        %v4706 = vunpack.c.l.b16 %v3194
        %v4707 = vunpack.c.h.b16 %v3194
        %v4708 = vunpack.c.l.b16 %v3195
        %v4709 = vunpack.c.h.b16 %v3195
        %v4710 = vunpack.c.l.b16 %v3196
        %v4711 = vunpack.c.h.b16 %v3196
        %v4712 = vunpack.c.l.b16 %v3197
        %v4713 = vunpack.c.h.b16 %v3197
        %v4714 = vunpack.c.l.b16 %v3198
        %v4715 = vunpack.c.h.b16 %v3198
        %v4716 = vunpack.c.l.b16 %v3199
        %v4717 = vunpack.c.h.b16 %v3199
        %v4718 = vunpack.c.l.b16 %v3200
        %v4719 = vunpack.c.h.b16 %v3200
        %v4720 = vunpack.c.l.b16 %v3201
        %v4721 = vunpack.c.h.b16 %v3201
        %v4722 = vunpack.c.l.b16 %v3202
        %v4723 = vunpack.c.h.b16 %v3202
        %v4724 = vunpack.c.l.b16 %v3203
        %v4725 = vunpack.c.h.b16 %v3203
        %v4726 = vunpack.c.l.b16 %v3204
        %v4727 = vunpack.c.h.b16 %v3204
        %v4728 = vunpack.c.l.b16 %v3205
        %v4729 = vunpack.c.h.b16 %v3205
        %v4730 = vunpack.c.l.b16 %v3206
        %v4731 = vunpack.c.h.b16 %v3206
        %v4732 = vunpack.c.l.b16 %v3207
        %v4733 = vunpack.c.h.b16 %v3207
        %v4734 = vunpack.c.l.b16 %v3208
        %v4735 = vunpack.c.h.b16 %v3208
        %v4736 = vunpack.c.l.b16 %v3209
        %v4737 = vunpack.c.h.b16 %v3209
        %v4738 = vunpack.c.l.b16 %v3210
        %v4739 = vunpack.c.h.b16 %v3210
        %v4740 = vunpack.c.l.b16 %v3211
        %v4741 = vunpack.c.h.b16 %v3211
        %v4742 = vunpack.c.l.b16 %v3212
        %v4743 = vunpack.c.h.b16 %v3212
        %v4744 = vunpack.c.l.b16 %v3213
        %v4745 = vunpack.c.h.b16 %v3213
        %v4746 = vunpack.c.l.b16 %v3214
        %v4747 = vunpack.c.h.b16 %v3214
        %v4748 = vunpack.c.l.b16 %v3215
        %v4749 = vunpack.c.h.b16 %v3215
        %v4750 = vunpack.c.l.b16 %v3216
        %v4751 = vunpack.c.h.b16 %v3216
        %v4752 = vunpack.c.l.b16 %v3217
        %v4753 = vunpack.c.h.b16 %v3217
        %v4754 = vunpack.c.l.b16 %v3218
        %v4755 = vunpack.c.h.b16 %v3218
        %v4756 = vunpack.c.l.b16 %v3219
        %v4757 = vunpack.c.h.b16 %v3219
        %v4758 = vunpack.c.l.b16 %v3220
        %v4759 = vunpack.c.h.b16 %v3220
        %v4760 = vunpack.c.l.b16 %v3221
        %v4761 = vunpack.c.h.b16 %v3221
        %v4762 = vunpack.c.l.b16 %v3222
        %v4763 = vunpack.c.h.b16 %v3222
        %v4764 = vunpack.c.l.b16 %v3223
        %v4765 = vunpack.c.h.b16 %v3223
        %v4766 = vunpack.c.l.b16 %v3224
        %v4767 = vunpack.c.h.b16 %v3224
        %v4768 = vunpack.c.l.b16 %v3225
        %v4769 = vunpack.c.h.b16 %v3225
        %v4770 = vunpack.c.l.b16 %v3226
        %v4771 = vunpack.c.h.b16 %v3226
        %v4772 = vunpack.c.l.b16 %v3227
        %v4773 = vunpack.c.h.b16 %v3227
        %v4774 = vunpack.c.l.b16 %v3228
        %v4775 = vunpack.c.h.b16 %v3228
        %v4776 = vunpack.c.l.b16 %v3229
        %v4777 = vunpack.c.h.b16 %v3229
        %v4778 = vunpack.c.l.b16 %v3230
        %v4779 = vunpack.c.h.b16 %v3230
        %v4780 = vunpack.c.l.b16 %v3231
        %v4781 = vunpack.c.h.b16 %v3231
        %v4782 = vunpack.c.l.b16 %v3232
        %v4783 = vunpack.c.h.b16 %v3232
        %v4784 = vunpack.c.l.b16 %v3233
        %v4785 = vunpack.c.h.b16 %v3233
        %v4786 = vunpack.c.l.b16 %v3234
        %v4787 = vunpack.c.h.b16 %v3234
        %v4788 = vunpack.c.l.b16 %v3235
        %v4789 = vunpack.c.h.b16 %v3235
        %v4790 = vunpack.c.l.b16 %v3236
        %v4791 = vunpack.c.h.b16 %v3236
        %v4792 = vunpack.c.l.b16 %v3237
        %v4793 = vunpack.c.h.b16 %v3237
        %v4794 = vunpack.c.l.b16 %v3238
        %v4795 = vunpack.c.h.b16 %v3238
        %v4796 = vunpack.c.l.b16 %v3239
        %v4797 = vunpack.c.h.b16 %v3239
        %v4798 = vunpack.c.l.b16 %v3240
        %v4799 = vunpack.c.h.b16 %v3240
        %v4800 = vunpack.c.l.b16 %v3241
        %v4801 = vunpack.c.h.b16 %v3241
        %v4802 = vunpack.c.l.b16 %v3242
        %v4803 = vunpack.c.h.b16 %v3242
        %v4804 = vunpack.c.l.b16 %v3243
        %v4805 = vunpack.c.h.b16 %v3243
        %v4806 = vunpack.c.l.b16 %v3244
        %v4807 = vunpack.c.h.b16 %v3244
        %v4808 = vunpack.c.l.b16 %v3245
        %v4809 = vunpack.c.h.b16 %v3245
        %v4810 = vunpack.c.l.b16 %v3246
        %v4811 = vunpack.c.h.b16 %v3246
        %v4812 = vunpack.c.l.b16 %v3247
        %v4813 = vunpack.c.h.b16 %v3247
        %v4814 = vunpack.c.l.b16 %v3248
        %v4815 = vunpack.c.h.b16 %v3248
        %v4816 = vunpack.c.l.b16 %v3249
        %v4817 = vunpack.c.h.b16 %v3249
        %v4818 = vunpack.c.l.b16 %v3250
        %v4819 = vunpack.c.h.b16 %v3250
        %v4820 = vunpack.c.l.b16 %v3251
        %v4821 = vunpack.c.h.b16 %v3251
        %v4822 = vunpack.c.l.b16 %v3252
        %v4823 = vunpack.c.h.b16 %v3252
        %v4824 = vunpack.c.l.b16 %v3253
        %v4825 = vunpack.c.h.b16 %v3253
        %v4826 = vunpack.c.l.b16 %v3254
        %v4827 = vunpack.c.h.b16 %v3254
        %v4828 = vunpack.c.l.b16 %v3255
        %v4829 = vunpack.c.h.b16 %v3255
        %v4830 = vunpack.c.l.b16 %v3256
        %v4831 = vunpack.c.h.b16 %v3256
        %v4832 = vunpack.c.l.b16 %v3257
        %v4833 = vunpack.c.h.b16 %v3257
        %v4834 = vunpack.c.l.b16 %v3258
        %v4835 = vunpack.c.h.b16 %v3258
        %v4836 = vunpack.c.l.b16 %v3259
        %v4837 = vunpack.c.h.b16 %v3259
        %v4838 = vunpack.c.l.b16 %v3260
        %v4839 = vunpack.c.h.b16 %v3260
        %v4840 = vunpack.c.l.b16 %v3261
        %v4841 = vunpack.c.h.b16 %v3261
        %v4842 = vunpack.c.l.b16 %v3262
        %v4843 = vunpack.c.h.b16 %v3262
        %v4844 = vunpack.c.l.b16 %v3263
        %v4845 = vunpack.c.h.b16 %v3263
        %v4846 = vunpack.c.l.b16 %v3264
        %v4847 = vunpack.c.h.b16 %v3264
        %v4848 = vunpack.c.l.b16 %v3265
        %v4849 = vunpack.c.h.b16 %v3265
        %v4850 = vunpack.c.l.b16 %v3266
        %v4851 = vunpack.c.h.b16 %v3266
        %v4852 = vunpack.c.l.b16 %v3267
        %v4853 = vunpack.c.h.b16 %v3267
        %v4854 = vunpack.c.l.b16 %v3268
        %v4855 = vunpack.c.h.b16 %v3268
        %v4856 = vunpack.c.l.b16 %v3269
        %v4857 = vunpack.c.h.b16 %v3269
        %v4858 = vunpack.c.l.b16 %v3270
        %v4859 = vunpack.c.h.b16 %v3270
        %v4860 = vunpack.c.l.b16 %v3271
        %v4861 = vunpack.c.h.b16 %v3271
        %v4862 = vunpack.c.l.b16 %v3272
        %v4863 = vunpack.c.h.b16 %v3272
        %v4864 = vunpack.c.l.b16 %v3273
        %v4865 = vunpack.c.h.b16 %v3273
        %v4866 = vunpack.c.l.b16 %v3274
        %v4867 = vunpack.c.h.b16 %v3274
        %v4868 = vunpack.c.l.b16 %v3275
        %v4869 = vunpack.c.h.b16 %v3275
        %v4870 = vunpack.c.l.b16 %v3276
        %v4871 = vunpack.c.h.b16 %v3276
        %v4872 = vunpack.c.l.b16 %v3277
        %v4873 = vunpack.c.h.b16 %v3277
        %v4874 = vunpack.c.l.b16 %v3278
        %v4875 = vunpack.c.h.b16 %v3278
        %v4876 = vunpack.c.l.b16 %v3279
        %v4877 = vunpack.c.h.b16 %v3279
        %v4878 = vunpack.c.l.b16 %v3280
        %v4879 = vunpack.c.h.b16 %v3280
        %v4880 = vunpack.c.l.b16 %v3281
        %v4881 = vunpack.c.h.b16 %v3281
        %v4882 = vunpack.c.l.b16 %v3282
        %v4883 = vunpack.c.h.b16 %v3282
        %v4884 = vunpack.c.l.b16 %v3283
        %v4885 = vunpack.c.h.b16 %v3283
        %v4886 = vunpack.c.l.b16 %v3284
        %v4887 = vunpack.c.h.b16 %v3284
        %v4888 = vpack.c.b16 %v4570, %v4568
        %v4889 = vpack.c.b16 %v4571, %v4569
        %v4890 = vpack.c.b16 %v4574, %v4572
        %v4891 = vpack.c.b16 %v4575, %v4573
        %v4892 = vpack.c.b16 %v4578, %v4576
        %v4893 = vpack.c.b16 %v4579, %v4577
        %v4894 = vpack.c.b16 %v4582, %v4580
        %v4895 = vpack.c.b16 %v4583, %v4581
        %v4896 = vpack.c.b16 %v4586, %v4584
        %v4897 = vpack.c.b16 %v4587, %v4585
        %v4898 = vpack.c.b16 %v4590, %v4588
        %v4899 = vpack.c.b16 %v4591, %v4589
        %v4900 = vpack.c.b16 %v4594, %v4592
        %v4901 = vpack.c.b16 %v4595, %v4593
        %v4902 = vpack.c.b16 %v4598, %v4596
        %v4903 = vpack.c.b16 %v4599, %v4597
        %v4904 = vpack.c.b16 %v4602, %v4600
        %v4905 = vpack.c.b16 %v4603, %v4601
        %v4906 = vpack.c.b16 %v4606, %v4604
        %v4907 = vpack.c.b16 %v4607, %v4605
        %v4908 = vpack.c.b16 %v4610, %v4608
        %v4909 = vpack.c.b16 %v4611, %v4609
        %v4910 = vpack.c.b16 %v4614, %v4612
        %v4911 = vpack.c.b16 %v4615, %v4613
        %v4912 = vpack.c.b16 %v4618, %v4616
        %v4913 = vpack.c.b16 %v4619, %v4617
        %v4914 = vpack.c.b16 %v4622, %v4620
        %v4915 = vpack.c.b16 %v4623, %v4621
        %v4916 = vpack.c.b16 %v4626, %v4624
        %v4917 = vpack.c.b16 %v4627, %v4625
        %v4918 = vpack.c.b16 %v4630, %v4628
        %v4919 = vpack.c.b16 %v4631, %v4629
        %v4920 = vpack.c.b16 %v4634, %v4632
        %v4921 = vpack.c.b16 %v4635, %v4633
        %v4922 = vpack.c.b16 %v4638, %v4636
        %v4923 = vpack.c.b16 %v4639, %v4637
        %v4924 = vpack.c.b16 %v4642, %v4640
        %v4925 = vpack.c.b16 %v4643, %v4641
        %v4926 = vpack.c.b16 %v4646, %v4644
        %v4927 = vpack.c.b16 %v4647, %v4645
        %v4928 = vpack.c.b16 %v4650, %v4648
        %v4929 = vpack.c.b16 %v4651, %v4649
        %v4930 = vpack.c.b16 %v4654, %v4652
        %v4931 = vpack.c.b16 %v4655, %v4653
        %v4932 = vpack.c.b16 %v4658, %v4656
        %v4933 = vpack.c.b16 %v4659, %v4657
        %v4934 = vpack.c.b16 %v4662, %v4660
        %v4935 = vpack.c.b16 %v4663, %v4661
        %v4936 = vpack.c.b16 %v4666, %v4664
        %v4937 = vpack.c.b16 %v4667, %v4665
        %v4938 = vpack.c.b16 %v4670, %v4668
        %v4939 = vpack.c.b16 %v4671, %v4669
        %v4940 = vpack.c.b16 %v4674, %v4672
        %v4941 = vpack.c.b16 %v4675, %v4673
        %v4942 = vpack.c.b16 %v4678, %v4676
        %v4943 = vpack.c.b16 %v4679, %v4677
        %v4944 = vpack.c.b16 %v4682, %v4680
        %v4945 = vpack.c.b16 %v4683, %v4681
        %v4946 = vpack.c.b16 %v4686, %v4684
        %v4947 = vpack.c.b16 %v4687, %v4685
        %v4948 = vpack.c.b16 %v4690, %v4688
        %v4949 = vpack.c.b16 %v4691, %v4689
        %v4950 = vpack.c.b16 %v4694, %v4692
        %v4951 = vpack.c.b16 %v4695, %v4693
        %v4952 = vpack.c.b16 %v4698, %v4696
        %v4953 = vpack.c.b16 %v4699, %v4697
        %v4954 = vpack.c.b16 %v4702, %v4700
        %v4955 = vpack.c.b16 %v4703, %v4701
        %v4956 = vpack.c.b16 %v4706, %v4704
        %v4957 = vpack.c.b16 %v4707, %v4705
        %v4958 = vpack.c.b16 %v4710, %v4708
        %v4959 = vpack.c.b16 %v4711, %v4709
        %v4960 = vpack.c.b16 %v4714, %v4712
        %v4961 = vpack.c.b16 %v4715, %v4713
        %v4962 = vpack.c.b16 %v4718, %v4716
        %v4963 = vpack.c.b16 %v4719, %v4717
        %v4964 = vpack.c.b16 %v4722, %v4720
        %v4965 = vpack.c.b16 %v4723, %v4721
        %v4966 = vpack.c.b16 %v4726, %v4724
        %v4967 = vpack.c.b16 %v4727, %v4725
        %v4968 = vpack.c.b16 %v4730, %v4728
        %v4969 = vpack.c.b16 %v4731, %v4729
        %v4970 = vpack.c.b16 %v4734, %v4732
        %v4971 = vpack.c.b16 %v4735, %v4733
        %v4972 = vpack.c.b16 %v4738, %v4736
        %v4973 = vpack.c.b16 %v4739, %v4737
        %v4974 = vpack.c.b16 %v4742, %v4740
        %v4975 = vpack.c.b16 %v4743, %v4741
        %v4976 = vpack.c.b16 %v4746, %v4744
        %v4977 = vpack.c.b16 %v4747, %v4745
        %v4978 = vpack.c.b16 %v4750, %v4748
        %v4979 = vpack.c.b16 %v4751, %v4749
        %v4980 = vpack.c.b16 %v4754, %v4752
        %v4981 = vpack.c.b16 %v4755, %v4753
        %v4982 = vpack.c.b16 %v4758, %v4756
        %v4983 = vpack.c.b16 %v4759, %v4757
        %v4984 = vpack.c.b16 %v4762, %v4760
        %v4985 = vpack.c.b16 %v4763, %v4761
        %v4986 = vpack.c.b16 %v4766, %v4764
        %v4987 = vpack.c.b16 %v4767, %v4765
        %v4988 = vpack.c.b16 %v4770, %v4768
        %v4989 = vpack.c.b16 %v4771, %v4769
        %v4990 = vpack.c.b16 %v4774, %v4772
        %v4991 = vpack.c.b16 %v4775, %v4773
        %v4992 = vpack.c.b16 %v4778, %v4776
        %v4993 = vpack.c.b16 %v4779, %v4777
        %v4994 = vpack.c.b16 %v4782, %v4780
        %v4995 = vpack.c.b16 %v4783, %v4781
        %v4996 = vpack.c.b16 %v4786, %v4784
        %v4997 = vpack.c.b16 %v4787, %v4785
        %v4998 = vpack.c.b16 %v4790, %v4788
        %v4999 = vpack.c.b16 %v4791, %v4789
        %v5000 = vpack.c.b16 %v4794, %v4792
        %v5001 = vpack.c.b16 %v4795, %v4793
        %v5002 = vpack.c.b16 %v4798, %v4796
        %v5003 = vpack.c.b16 %v4799, %v4797
        %v5004 = vpack.c.b16 %v4802, %v4800
        %v5005 = vpack.c.b16 %v4803, %v4801
        %v5006 = vpack.c.b16 %v4806, %v4804
        %v5007 = vpack.c.b16 %v4807, %v4805
        %v5008 = vpack.c.b16 %v4810, %v4808
        %v5009 = vpack.c.b16 %v4811, %v4809
        %v5010 = vpack.c.b16 %v4814, %v4812
        %v5011 = vpack.c.b16 %v4815, %v4813
        %v5012 = vpack.c.b16 %v4818, %v4816
        %v5013 = vpack.c.b16 %v4819, %v4817
        %v5014 = vpack.c.b16 %v4822, %v4820
        %v5015 = vpack.c.b16 %v4823, %v4821
        %v5016 = vpack.c.b16 %v4826, %v4824
        %v5017 = vpack.c.b16 %v4827, %v4825
        %v5018 = vpack.c.b16 %v4830, %v4828
        %v5019 = vpack.c.b16 %v4831, %v4829
        %v5020 = vpack.c.b16 %v4834, %v4832
        %v5021 = vpack.c.b16 %v4835, %v4833
        %v5022 = vpack.c.b16 %v4838, %v4836
        %v5023 = vpack.c.b16 %v4839, %v4837
        %v5024 = vpack.c.b16 %v4842, %v4840
        %v5025 = vpack.c.b16 %v4843, %v4841
        %v5026 = vpack.c.b16 %v4846, %v4844
        %v5027 = vpack.c.b16 %v4847, %v4845
        %v5028 = vpack.c.b16 %v4850, %v4848
        %v5029 = vpack.c.b16 %v4851, %v4849
        %v5030 = vpack.c.b16 %v4854, %v4852
        %v5031 = vpack.c.b16 %v4855, %v4853
        %v5032 = vpack.c.b16 %v4858, %v4856
        %v5033 = vpack.c.b16 %v4859, %v4857
        %v5034 = vpack.c.b16 %v4862, %v4860
        %v5035 = vpack.c.b16 %v4863, %v4861
        %v5036 = vpack.c.b16 %v4866, %v4864
        %v5037 = vpack.c.b16 %v4867, %v4865
        %v5038 = vpack.c.b16 %v4870, %v4868
        %v5039 = vpack.c.b16 %v4871, %v4869
        %v5040 = vpack.c.b16 %v4874, %v4872
        %v5041 = vpack.c.b16 %v4875, %v4873
        %v5042 = vpack.c.b16 %v4878, %v4876
        %v5043 = vpack.c.b16 %v4879, %v4877
        %v5044 = vpack.c.b16 %v4882, %v4880
        %v5045 = vpack.c.b16 %v4883, %v4881
        %v5046 = vpack.c.b16 %v4886, %v4884
        %v5047 = vpack.c.b16 %v4887, %v4885
        %5208 = vmatprep.subr.bf16.mxu0 %v4889
        %5209 = vmatpush1.bf16.msra.mxu0 %v4888
        %5210 = vmatprep.subr.bf16.mxu0 %v4891
        %5211 = vmatpush1.bf16.msra.mxu0 %v4890
        %5212 = vmatprep.subr.bf16.mxu0 %v4893
        %5213 = vmatpush1.bf16.msra.mxu0 %v4892
        %5214 = vmatprep.subr.bf16.mxu0 %v4895
        %5215 = vmatpush1.bf16.msra.mxu0 %v4894
        %5216 = vmatprep.subr.bf16.mxu0 %v4897
        %5217 = vmatpush1.bf16.msra.mxu0 %v4896
        %5218 = vmatprep.subr.bf16.mxu0 %v4899
        %5219 = vmatpush1.bf16.msra.mxu0 %v4898
        %5220 = vmatprep.subr.bf16.mxu0 %v4901
        %5221 = vmatpush1.bf16.msra.mxu0 %v4900
        %5222 = vmatprep.subr.bf16.mxu0 %v4903
        %5223 = vmatpush1.bf16.msra.mxu0 %v4902
        %5224 = vmatprep.subr.bf16.mxu0 %v4905
        %5225 = vmatpush1.bf16.msra.mxu0 %v4904
        %5226 = vmatprep.subr.bf16.mxu0 %v4907
        %5227 = vmatpush1.bf16.msra.mxu0 %v4906
        %5228 = vmatprep.subr.bf16.mxu0 %v4909
        %5229 = vmatpush1.bf16.msra.mxu0 %v4908
        %5230 = vmatprep.subr.bf16.mxu0 %v4911
        %5231 = vmatpush1.bf16.msra.mxu0 %v4910
        %5232 = vmatprep.subr.bf16.mxu0 %v4913
        %5233 = vmatpush1.bf16.msra.mxu0 %v4912
        %5234 = vmatprep.subr.bf16.mxu0 %v4915
        %5235 = vmatpush1.bf16.msra.mxu0 %v4914
        %5236 = vmatprep.subr.bf16.mxu0 %v4917
        %5237 = vmatpush1.bf16.msra.mxu0 %v4916
        %5238 = vmatprep.subr.bf16.mxu0 %v4919
        %5239 = vmatpush1.bf16.msra.mxu0 %v4918
        %5240 = vmatprep.mubr.bf16.mxu0 %v4387
        %5241 = vmatmul.mubr.bf16.gmra.mrb[0].mxu0 %v4386
        %v5242 = vpop.f32.mrb[0].mxu0
        %v5243 = vadd.f32 %v4401, %v5242
        %v5244 = vpop.f32.mrb[0].mxu0
        %v5245 = vadd.f32 %v4405, %v5244
        %v5246 = vpop.f32.mrb[0].mxu0
        %v5247 = vpop.f32.mrb[0].mxu0
        %5248 = vdwg.mxu0
        %5249 = vmatprep.subr.bf16.mxu0 %v4921
        %5250 = vmatpush1.bf16.msra.mxu0 %v4920
        %5251 = vmatprep.subr.bf16.mxu0 %v4923
        %5252 = vmatpush1.bf16.msra.mxu0 %v4922
        %5253 = vmatprep.subr.bf16.mxu0 %v4925
        %5254 = vmatpush1.bf16.msra.mxu0 %v4924
        %5255 = vmatprep.subr.bf16.mxu0 %v4927
        %5256 = vmatpush1.bf16.msra.mxu0 %v4926
        %5257 = vmatprep.subr.bf16.mxu0 %v4929
        %5258 = vmatpush1.bf16.msra.mxu0 %v4928
        %5259 = vmatprep.subr.bf16.mxu0 %v4931
        %5260 = vmatpush1.bf16.msra.mxu0 %v4930
        %5261 = vmatprep.subr.bf16.mxu0 %v4933
        %5262 = vmatpush1.bf16.msra.mxu0 %v4932
        %5263 = vmatprep.subr.bf16.mxu0 %v4935
        %5264 = vmatpush1.bf16.msra.mxu0 %v4934
        %5265 = vmatprep.subr.bf16.mxu0 %v4937
        %5266 = vmatpush1.bf16.msra.mxu0 %v4936
        %5267 = vmatprep.subr.bf16.mxu0 %v4939
        %5268 = vmatpush1.bf16.msra.mxu0 %v4938
        %5269 = vmatprep.subr.bf16.mxu0 %v4941
        %5270 = vmatpush1.bf16.msra.mxu0 %v4940
        %5271 = vmatprep.subr.bf16.mxu0 %v4943
        %5272 = vmatpush1.bf16.msra.mxu0 %v4942
        %5273 = vmatprep.subr.bf16.mxu0 %v4945
        %5274 = vmatpush1.bf16.msra.mxu0 %v4944
        %5275 = vmatprep.subr.bf16.mxu0 %v4947
        %5276 = vmatpush1.bf16.msra.mxu0 %v4946
        %5277 = vmatprep.subr.bf16.mxu0 %v4949
        %5278 = vmatpush1.bf16.msra.mxu0 %v4948
        %5279 = vmatprep.subr.bf16.mxu0 %v4951
        %5280 = vmatpush1.bf16.msra.mxu0 %v4950
        %5281 = vmatprep.mubr.bf16.mxu0 %v4389
        %5282 = vmatmul.mubr.bf16.gmra.mrb[0].mxu0 %v4388
        %v5283 = vpop.f32.mrb[0].mxu0
        %v5284 = vadd.f32 %v5243, %v5283
        %v5285 = vpop.f32.mrb[0].mxu0
        %v5286 = vadd.f32 %v5245, %v5285
        %v5287 = vpop.f32.mrb[0].mxu0
        %v5288 = vpop.f32.mrb[0].mxu0
        %5289 = vdwg.mxu0
        %5290 = vmatprep.subr.bf16.mxu0 %v4953
        %5291 = vmatpush1.bf16.msra.mxu0 %v4952
        %5292 = vmatprep.subr.bf16.mxu0 %v4955
        %5293 = vmatpush1.bf16.msra.mxu0 %v4954
        %5294 = vmatprep.subr.bf16.mxu0 %v4957
        %5295 = vmatpush1.bf16.msra.mxu0 %v4956
        %5296 = vmatprep.subr.bf16.mxu0 %v4959
        %5297 = vmatpush1.bf16.msra.mxu0 %v4958
        %5298 = vmatprep.subr.bf16.mxu0 %v4961
        %5299 = vmatpush1.bf16.msra.mxu0 %v4960
        %5300 = vmatprep.subr.bf16.mxu0 %v4963
        %5301 = vmatpush1.bf16.msra.mxu0 %v4962
        %5302 = vmatprep.subr.bf16.mxu0 %v4965
        %5303 = vmatpush1.bf16.msra.mxu0 %v4964
        %5304 = vmatprep.subr.bf16.mxu0 %v4967
        %5305 = vmatpush1.bf16.msra.mxu0 %v4966
        %5306 = vmatprep.subr.bf16.mxu0 %v4969
        %5307 = vmatpush1.bf16.msra.mxu0 %v4968
        %5308 = vmatprep.subr.bf16.mxu0 %v4971
        %5309 = vmatpush1.bf16.msra.mxu0 %v4970
        %5310 = vmatprep.subr.bf16.mxu0 %v4973
        %5311 = vmatpush1.bf16.msra.mxu0 %v4972
        %5312 = vmatprep.subr.bf16.mxu0 %v4975
        %5313 = vmatpush1.bf16.msra.mxu0 %v4974
        %5314 = vmatprep.subr.bf16.mxu0 %v4977
        %5315 = vmatpush1.bf16.msra.mxu0 %v4976
        %5316 = vmatprep.subr.bf16.mxu0 %v4979
        %5317 = vmatpush1.bf16.msra.mxu0 %v4978
        %5318 = vmatprep.subr.bf16.mxu0 %v4981
        %5319 = vmatpush1.bf16.msra.mxu0 %v4980
        %5320 = vmatprep.subr.bf16.mxu0 %v4983
        %5321 = vmatpush1.bf16.msra.mxu0 %v4982
        %5322 = vmatprep.mubr.bf16.mxu0 %v4391
        %5323 = vmatmul.mubr.bf16.gmra.mrb[0].mxu0 %v4390
        %v5324 = vpop.f32.mrb[0].mxu0
        %v5325 = vadd.f32 %v5284, %v5324
        %v5326 = vpop.f32.mrb[0].mxu0
        %v5327 = vadd.f32 %v5286, %v5326
        %v5328 = vpop.f32.mrb[0].mxu0
        %v5329 = vpop.f32.mrb[0].mxu0
        %5330 = vdwg.mxu0
        %5331 = vmatprep.subr.bf16.mxu0 %v4985
        %5332 = vmatpush1.bf16.msra.mxu0 %v4984
        %5333 = vmatprep.subr.bf16.mxu0 %v4987
        %5334 = vmatpush1.bf16.msra.mxu0 %v4986
        %5335 = vmatprep.subr.bf16.mxu0 %v4989
        %5336 = vmatpush1.bf16.msra.mxu0 %v4988
        %5337 = vmatprep.subr.bf16.mxu0 %v4991
        %5338 = vmatpush1.bf16.msra.mxu0 %v4990
        %5339 = vmatprep.subr.bf16.mxu0 %v4993
        %5340 = vmatpush1.bf16.msra.mxu0 %v4992
        %5341 = vmatprep.subr.bf16.mxu0 %v4995
        %5342 = vmatpush1.bf16.msra.mxu0 %v4994
        %5343 = vmatprep.subr.bf16.mxu0 %v4997
        %5344 = vmatpush1.bf16.msra.mxu0 %v4996
        %5345 = vmatprep.subr.bf16.mxu0 %v4999
        %5346 = vmatpush1.bf16.msra.mxu0 %v4998
        %5347 = vmatprep.subr.bf16.mxu0 %v5001
        %5348 = vmatpush1.bf16.msra.mxu0 %v5000
        %5349 = vmatprep.subr.bf16.mxu0 %v5003
        %5350 = vmatpush1.bf16.msra.mxu0 %v5002
        %5351 = vmatprep.subr.bf16.mxu0 %v5005
        %5352 = vmatpush1.bf16.msra.mxu0 %v5004
        %5353 = vmatprep.subr.bf16.mxu0 %v5007
        %5354 = vmatpush1.bf16.msra.mxu0 %v5006
        %5355 = vmatprep.subr.bf16.mxu0 %v5009
        %5356 = vmatpush1.bf16.msra.mxu0 %v5008
        %5357 = vmatprep.subr.bf16.mxu0 %v5011
        %5358 = vmatpush1.bf16.msra.mxu0 %v5010
        %5359 = vmatprep.subr.bf16.mxu0 %v5013
        %5360 = vmatpush1.bf16.msra.mxu0 %v5012
        %5361 = vmatprep.subr.bf16.mxu0 %v5015
        %5362 = vmatpush1.bf16.msra.mxu0 %v5014
        %5363 = vmatprep.mubr.bf16.mxu0 %v4393
        %5364 = vmatmul.mubr.bf16.gmra.mrb[0].mxu0 %v4392
        %v5365 = vpop.f32.mrb[0].mxu0
        %v5366 = vadd.f32 %v5325, %v5365
        %v5367 = vpop.f32.mrb[0].mxu0
        %v5368 = vadd.f32 %v5327, %v5367
        %v5369 = vpop.f32.mrb[0].mxu0
        %v5370 = vpop.f32.mrb[0].mxu0
        %5371 = vdwg.mxu0
        %5372 = vmatprep.subr.bf16.mxu0 %v5017
        %5373 = vmatpush1.bf16.msra.mxu0 %v5016
        %5374 = vmatprep.subr.bf16.mxu0 %v5019
        %5375 = vmatpush1.bf16.msra.mxu0 %v5018
        %5376 = vmatprep.subr.bf16.mxu0 %v5021
        %5377 = vmatpush1.bf16.msra.mxu0 %v5020
        %5378 = vmatprep.subr.bf16.mxu0 %v5023
        %5379 = vmatpush1.bf16.msra.mxu0 %v5022
        %5380 = vmatprep.subr.bf16.mxu0 %v5025
        %5381 = vmatpush1.bf16.msra.mxu0 %v5024
        %5382 = vmatprep.subr.bf16.mxu0 %v5027
        %5383 = vmatpush1.bf16.msra.mxu0 %v5026
        %5384 = vmatprep.subr.bf16.mxu0 %v5029
        %5385 = vmatpush1.bf16.msra.mxu0 %v5028
        %5386 = vmatprep.subr.bf16.mxu0 %v5031
        %5387 = vmatpush1.bf16.msra.mxu0 %v5030
        %5388 = vmatprep.subr.bf16.mxu0 %v5033
        %5389 = vmatpush1.bf16.msra.mxu0 %v5032
        %5390 = vmatprep.subr.bf16.mxu0 %v5035
        %5391 = vmatpush1.bf16.msra.mxu0 %v5034
        %5392 = vmatprep.subr.bf16.mxu0 %v5037
        %5393 = vmatpush1.bf16.msra.mxu0 %v5036
        %5394 = vmatprep.subr.bf16.mxu0 %v5039
        %5395 = vmatpush1.bf16.msra.mxu0 %v5038
        %5396 = vmatprep.subr.bf16.mxu0 %v5041
        %5397 = vmatpush1.bf16.msra.mxu0 %v5040
        %5398 = vmatprep.subr.bf16.mxu0 %v5043
        %5399 = vmatpush1.bf16.msra.mxu0 %v5042
        %5400 = vmatprep.subr.bf16.mxu0 %v5045
        %5401 = vmatpush1.bf16.msra.mxu0 %v5044
        %5402 = vmatprep.subr.bf16.mxu0 %v5047
        %5403 = vmatpush1.bf16.msra.mxu0 %v5046
        %5404 = vmatprep.mubr.bf16.mxu0 %v4395
        %5405 = vmatmul.mubr.bf16.gmra.mrb[0].mxu0 %v4394
        %v5406 = vpop.f32.mrb[0].mxu0
        %v5407 = vadd.f32 %v5366, %v5406
        %v5408 = vpop.f32.mrb[0].mxu0
        %v5409 = vadd.f32 %v5368, %v5408
        %v5410 = vpop.f32.mrb[0].mxu0
        %v5411 = vpop.f32.mrb[0].mxu0
        %5412 = vdwg.mxu0
        %v5413 = vmax.f32 %v5407, 0.0
        %v5414 = vmax.f32 %v5409, 0.0
        %v5415 = vpack.c.bf16 %v5413, %v5413
        %v5416 = vpack.c.bf16 %v5414, %v5414
        %v5417 = vld [vmem:[#allocation10 + $0x1] ss:$0 sm:$0xff]
        %v5450 = vunpack.c.l.b16 %v3285
        %v5451 = vunpack.c.l.b16 %v3286
        %v5452 = vunpack.c.l.b16 %v3287
        %v5453 = vunpack.c.l.b16 %v3288
        %v5454 = vunpack.c.l.b16 %v3289
        %v5455 = vunpack.c.l.b16 %v3290
        %v5456 = vunpack.c.l.b16 %v3291
        %v5457 = vunpack.c.l.b16 %v3292
        %v5458 = vunpack.c.l.b16 %v3293
        %v5459 = vunpack.c.l.b16 %v3294
        %v5460 = vunpack.c.l.b16 %v3295
        %v5461 = vunpack.c.l.b16 %v3296
        %v5462 = vunpack.c.l.b16 %v3297
        %v5463 = vunpack.c.l.b16 %v3298
        %v5464 = vunpack.c.l.b16 %v3299
        %v5465 = vunpack.c.l.b16 %v3300
        %v5466 = vunpack.c.l.b16 %v3301
        %v5467 = vunpack.c.l.b16 %v3302
        %v5468 = vunpack.c.l.b16 %v3303
        %v5469 = vunpack.c.l.b16 %v3304
        %v5470 = vunpack.c.l.b16 %v3305
        %v5471 = vunpack.c.l.b16 %v3306
        %v5472 = vunpack.c.l.b16 %v3307
        %v5473 = vunpack.c.l.b16 %v3308
        %v5474 = vunpack.c.l.b16 %v3309
        %v5475 = vunpack.c.l.b16 %v3310
        %v5476 = vunpack.c.l.b16 %v3311
        %v5477 = vunpack.c.l.b16 %v3312
        %v5478 = vunpack.c.l.b16 %v3313
        %v5479 = vunpack.c.l.b16 %v3314
        %v5480 = vunpack.c.l.b16 %v3315
        %v5481 = vunpack.c.l.b16 %v3316
        %v5482 = vpack.c.b16 %v5451, %v5450
        %v5483 = vpack.c.b16 %v5453, %v5452
        %v5484 = vpack.c.b16 %v5455, %v5454
        %v5485 = vpack.c.b16 %v5457, %v5456
        %v5486 = vpack.c.b16 %v5459, %v5458
        %v5487 = vpack.c.b16 %v5461, %v5460
        %v5488 = vpack.c.b16 %v5463, %v5462
        %v5489 = vpack.c.b16 %v5465, %v5464
        %v5490 = vpack.c.b16 %v5467, %v5466
        %v5491 = vpack.c.b16 %v5469, %v5468
        %v5492 = vpack.c.b16 %v5471, %v5470
        %v5493 = vpack.c.b16 %v5473, %v5472
        %v5494 = vpack.c.b16 %v5475, %v5474
        %v5495 = vpack.c.b16 %v5477, %v5476
        %v5496 = vpack.c.b16 %v5479, %v5478
        %v5497 = vpack.c.b16 %v5481, %v5480
        %5514 = vmatprep.subr.bf16.mxu0 0
        %5515 = vmatpush1.bf16.msra.mxu0 %v5482
        %5516 = vmatprep.subr.bf16.mxu0 0
        %5517 = vmatpush1.bf16.msra.mxu0 %v5483
        %5518 = vmatprep.subr.bf16.mxu0 0
        %5519 = vmatpush1.bf16.msra.mxu0 %v5484
        %5520 = vmatprep.subr.bf16.mxu0 0
        %5521 = vmatpush1.bf16.msra.mxu0 %v5485
        %5522 = vmatprep.subr.bf16.mxu0 0
        %5523 = vmatpush1.bf16.msra.mxu0 %v5486
        %5524 = vmatprep.subr.bf16.mxu0 0
        %5525 = vmatpush1.bf16.msra.mxu0 %v5487
        %5526 = vmatprep.subr.bf16.mxu0 0
        %5527 = vmatpush1.bf16.msra.mxu0 %v5488
        %5528 = vmatprep.subr.bf16.mxu0 0
        %5529 = vmatpush1.bf16.msra.mxu0 %v5489
        %5530 = vmatprep.subr.bf16.mxu0 0
        %5531 = vmatpush1.bf16.msra.mxu0 %v5490
        %5532 = vmatprep.subr.bf16.mxu0 0
        %5533 = vmatpush1.bf16.msra.mxu0 %v5491
        %5534 = vmatprep.subr.bf16.mxu0 0
        %5535 = vmatpush1.bf16.msra.mxu0 %v5492
        %5536 = vmatprep.subr.bf16.mxu0 0
        %5537 = vmatpush1.bf16.msra.mxu0 %v5493
        %5538 = vmatprep.subr.bf16.mxu0 0
        %5539 = vmatpush1.bf16.msra.mxu0 %v5494
        %5540 = vmatprep.subr.bf16.mxu0 0
        %5541 = vmatpush1.bf16.msra.mxu0 %v5495
        %5542 = vmatprep.subr.bf16.mxu0 0
        %5543 = vmatpush1.bf16.msra.mxu0 %v5496
        %5544 = vmatprep.subr.bf16.mxu0 0
        %5545 = vmatpush1.bf16.msra.mxu0 %v5497
        %5546 = vmatprep.mubr.bf16.mxu0 %v5416
        %5547 = vmatmul.mubr.bf16.gmra.mrb[0].mxu0 %v5415
        %v5548 = vpop.f32.mrb[0].mxu0
        %v5549 = vadd.f32 %v5417, %v5548
        %v5550 = vpop.f32.mrb[0].mxu0
        %v5551 = vpop.f32.mrb[0].mxu0
        %v5552 = vpop.f32.mrb[0].mxu0
        %5553 = vdwg.mxu0
        %5554 = vst [vmem:[%s352] sm:$0xff] %v5549
        %v5555 = vlaneseq
        %v5556 = vand.u32 %v5555, 127
        %vm5557 = vcmp.lt.s32.totalorder %v5556, 2
        %v5558 = vsel %vm5557, %v5549, -1e+30
        %5559 = vmax.xlane.f32.xlu0 %v5558
        %v5560 = vpop.xlane.xlu0 %5559
        %v5561 = vsub.f32 %v5558, %v5560
        %v5562 = vmul.f32 %v5561, 1.442695
        %v5563 = vpow.pop %v5562
        %5564 = vadd.xlane.f32.xlu0 %v5563
        %v5565 = vpop.xlane.xlu0 %5564
        %v5566 = vlog2.pop %v5565
        %v5567 = vmul.f32 %v5566, 0.6931472
        %v5568 = vadd.f32 %v5560, %v5567
        %v5569 = vmul.f32 %v5549, %v3328
        %5570 = vadd.xlane.f32.xlu0 %v5569
        %v5571 = vpop.xlane.xlu0 %5570
        %v5572 = vsub.f32 %v5568, %v5571
        %vm5573 = vcmask 7168
        %5574 = vst.msk [vmem:[%s364] sm:$0xff] %vm5573, %v5572
        %s5575 = sand.u32 %s151, 1
        %s5576 = scalar_lea.sflag [#allocation4], %s5575
        %s5577 = sand.u32 %s151, 1
        %s5578 = smul.addr %s5577, 8
        %s5579 = scalar_lea.vmem [#allocation11], %s5578
        %p5580 = scmp.lt.s32.totalorder %s28, 3
        %s5581 = scalar_select %p5580, %s28, 3
        %s5582 = smul.addr %s5581, 8
        %s5583 = scalar_lea.vmem %s6, %s5582
        // Predicated region
        $region61: #{tpu_custom_call.1} parent=39 // pred_check
          %p5584 = pneg %p161
        $region62: #{tpu_custom_call.1} parent=39 // pred_check_branch
          %5586 = sbr.rel (%p5584) target = $region64
        $region63: #{tpu_custom_call.1} parent=39 // pred_region
          %s5588 = ssub.s32 128, 128
          %5589 = vsyncadd %s5576, %s5588
          %s5590 = smul.addr %s28, 128
          %s5591 = scalar_lea.hbm %s5, %s5590
          %s5593 = sshll.u32 %s5579, 4
          %s5594 = int_to_ptr.vmem [resolvable:$true] %s5593
          %5596 = dma.vmem_to_hbm [thread:$0]  %s5594, 128, %s5591, %s5576
        $region64: #{tpu_custom_call.1} parent=39 // pred_fallthru
          _
        // Predicated region
        $region65: #{tpu_custom_call.1} parent=39 // pred_check
          %p5597 = pneg %p187
        $region66: #{tpu_custom_call.1} parent=39 // pred_check_branch
          %5599 = sbr.rel (%p5597) target = $region68
        $region67: #{tpu_custom_call.1} parent=39 // pred_region
          _
        $region68: #{tpu_custom_call.1} parent=39 // pred_fallthru
          _
      $region40: #{tpu_custom_call.1} parent=5 // pred_fallthru
        _
      %p5600 = scmp.le.s32.totalorder 2, %s23
      // Predicated region
      $region69: #{tpu_custom_call.1} parent=5 // pred_check
        %p5601 = pneg %p5600
      $region70: #{tpu_custom_call.1} parent=5 // pred_check_branch
        %5603 = sbr.rel (%p5601) target = $region72
      $region71: #{tpu_custom_call.1} parent=5 // pred_region
        %s5604 = ssub.s32 %s23, 2
        // Predicated region
        $region73: #{tpu_custom_call.1} parent=71 // pred_check
          %p5605 = pneg %p167
        $region74: #{tpu_custom_call.1} parent=71 // pred_check_branch
          %5607 = sbr.rel (%p5605) target = $region76
        $region75: #{tpu_custom_call.1} parent=71 // pred_region
          %s5608 = sand.u32 %s152, 1
          %s5609 = scalar_lea.sflag [#allocation4], %s5608
          %s5610 = sand.u32 %s152, 1
          %s5611 = smul.addr %s5610, 8
          %s5612 = scalar_lea.vmem [#allocation11], %s5611
          %5613 = dma.done %s5609, 128
        $region76: #{tpu_custom_call.1} parent=71 // pred_fallthru
          _
        // Predicated region
        $region77: #{tpu_custom_call.1} parent=71 // pred_check
          %p5614 = pneg %p193
        $region78: #{tpu_custom_call.1} parent=71 // pred_check_branch
          %5616 = sbr.rel (%p5614) target = $region80
        $region79: #{tpu_custom_call.1} parent=71 // pred_region
          %p5617 = scmp.lt.s32.totalorder %s29, 3
          %s5618 = scalar_select %p5617, %s29, 3
          %s5619 = smul.addr %s5618, 8
          %s5620 = scalar_lea.vmem %s6, %s5619
        $region80: #{tpu_custom_call.1} parent=71 // pred_fallthru
          _
      $region72: #{tpu_custom_call.1} parent=5 // pred_fallthru
        _
    $region6: #{tpu_custom_call.1} parent=1 // loop_footer
      %s27 = sadd.s32 1, %s23
    $region7: #{tpu_custom_call.1} parent=1 // loop_footer_branch
      %22 = sbr.rel target = $region3
    $region8: #{tpu_custom_call.1} parent=1 // loop_exit
      _
    %5621 = vsyncpa [#allocation3], 1
    %s5622 = scalar_lea.sflag [#allocation3], 1
    %5623 = vsyncpa %s5622, 1
    %5624 = vsyncpa [#allocation6], 1
    %s5625 = scalar_lea.sflag [#allocation6], 1
    %5626 = vsyncpa %s5625, 1
    %5627 = vsyncpa [#allocation9], 1
    %5628 = vsyncpa [#allocation4], 1
    %s5629 = scalar_lea.sflag [#allocation4], 1
    %5630 = vsyncpa %s5629, 1

</llo_original>
